<compile_context>
chip_gen: v7x
topology: tpu7x:2x2x1
jax: 0.10.0
libtpu: 0.0.40
codegen_flags: <defaults>
</compile_context>

<pallas_src>
import functools
import re

import jax
import jax.numpy as jnp
from jax.experimental import pallas as pl
from jax.experimental.pallas import tpu as pltpu


DEC_POINTS = 2048            # decoder output: (B, 3, 2048)
DEC_OUT = 3 * DEC_POINTS     # 6144


def _round_up(x, m):
    return ((x + m - 1) // m) * m


def _tpu_generation():
    """Best-effort TPU generation (5, 6, 7, ...); 0 if unknown."""
    try:
        kind = jax.devices()[0].device_kind.lower()
    except Exception:
        return 0
    m = re.search(r"(\d+)", kind)
    return int(m.group(1)) if m else 0


def _spec(shape, index_map, buffer_count=None):
    """BlockSpec, optionally N-deep buffered (safe fallback if unsupported)."""
    if buffer_count is not None:
        try:
            return pl.BlockSpec(shape, index_map,
                                pipeline_mode=pl.Buffered(buffer_count))
        except Exception:
            pass
    return pl.BlockSpec(shape, index_map)


# ---------------------------------------------------------------------------
# Kernel 1: encoder conv stack (conv2..conv5) + global max-pool + fc/mu/std head.
# ---------------------------------------------------------------------------
def _encoder_kernel(
    x_ref,                       # (Bt, Nt, 64) bf16   relu(x @ w1)  (conv1 hoisted)
    w2_ref, b2_ref,              # (64, 128)  bf16, (1, 128) act    (BN1 folded in)
    w3_ref, b3_ref,              # (128, 256)
    w4_ref, b4_ref,              # (256, 256)
    w5_ref, b5_ref,              # (256, 512)
    s5_ref,                      # (1, 512) act   BN5 scale (its shift folded into bfc)
    wfc_ref, bfc_ref,            # (512, 256) f32, (1, 256) f32
    whead_ref, bhead_ref,        # (256, HPAD) f32, (1, HPAD) f32   [wmu | wstd | 0]
    heads_ref,                   # out: (Bt, HPAD) f32              [mu | logvar | 0]
    pooled_acc,                  # scratch: (Bt, 512) f32 running max over point tiles
):
    ni = pl.program_id(1)
    bt, nt, cin = x_ref.shape
    m = bt * nt
    bf16 = jnp.bfloat16

    def conv_relu(h_in, w_ref, b_ref):
        # bf16 MXU matmul, f32 accumulation; bias-add + ReLU in the activation
        # dtype chosen by the wrapper (bf16 on v6e/v7x, f32 on v5e).
        o = jnp.dot(h_in, w_ref[...], preferred_element_type=jnp.float32)
        return jnp.maximum(o.astype(b_ref.dtype) + b_ref[...], 0.0)

    h = x_ref[...].reshape(m, cin)                         # (m, 64) bf16
    h = conv_relu(h, w2_ref, b2_ref).astype(bf16)          # (m, 128)
    h = conv_relu(h, w3_ref, b3_ref).astype(bf16)          # (m, 256)
    h = conv_relu(h, w4_ref, b4_ref).astype(bf16)          # (m, 256)
    g = conv_relu(h, w5_ref, b5_ref) * s5_ref[...]         # (m, 512)  only BN5 scale

    # Running global max-pool over the point axis (reduction grid axis).
    tile_max = jnp.max(g.reshape(bt, nt, 512), axis=1).astype(jnp.float32)

    @pl.when(ni == 0)
    def _init():
        pooled_acc[...] = jnp.full(pooled_acc.shape, -jnp.inf, pooled_acc.dtype)

    pooled_acc[...] = jnp.maximum(pooled_acc[...], tile_max)

    # fc -> ReLU -> [mu | logvar] head, once per batch tile, f32, lane-dense output.
    @pl.when(ni == pl.num_programs(1) - 1)
    def _head():
        pooled = pooled_acc[...]                            # (Bt, 512) f32
        logit = jnp.maximum(
            jnp.dot(pooled, wfc_ref[...], preferred_element_type=jnp.float32)
            + bfc_ref[...], 0.0)
        heads_ref[...] = (jnp.dot(logit, whead_ref[...],
                                  preferred_element_type=jnp.float32)
                          + bhead_ref[...])


# ---------------------------------------------------------------------------
# Kernel 2: reparameterization + decoder MLP (w5 streamed over output columns).
# ---------------------------------------------------------------------------
def _decoder_kernel(
    he_ref,                      # (B, HPAD) f32   [mu | logvar | eps | 0]
    w1_ref, b1_ref,              # (Z, 64)    bf16, (1, 64)    f32
    w2_ref, b2_ref,              # (64, 128)
    w3_ref, b3_ref,              # (128, 512)
    w4_ref, b4_ref,              # (512, 1024)
    w5_ref, b5_ref,              # (1024, Tn) bf16, (1, Tn) f32   (tiled over grid)
    y_ref,                       # out: (B, Tn) f32
    *, z_size,
):
    he = he_ref[...]
    mu = he[:, :z_size]
    logvar = he[:, z_size:2 * z_size]
    eps = he[:, 2 * z_size:3 * z_size]
    z = mu + eps * jnp.exp(0.5 * logvar)                   # reparameterize (f32)

    def linear(h_in, w_ref, b_ref, relu=True):
        o = jnp.dot(h_in.astype(jnp.bfloat16), w_ref[...],
                    preferred_element_type=jnp.float32) + b_ref[...]
        return jnp.maximum(o, 0.0) if relu else o

    h = linear(z, w1_ref, b1_ref)          # (B, 64)   cheap; recomputed per tile
    h = linear(h, w2_ref, b2_ref)          # (B, 128)
    h = linear(h, w3_ref, b3_ref)          # (B, 512)
    h = linear(h, w4_ref, b4_ref)          # (B, 1024)
    y_ref[...] = linear(h, w5_ref, b5_ref, relu=False)     # (B, Tn)


# ---------------------------------------------------------------------------
# Weight preparation (BN folding) -- shared by the wrapper and the reference.
# ---------------------------------------------------------------------------
def _fold_encoder_weights(e, act_dtype):
    bf16 = jnp.bfloat16
    z = e["wmu"].shape[1]
    hpad = _round_up(3 * z, 128)          # [mu | logvar | eps-slot], 128-lane padded

    def fold(s_prev, t_prev, w):
        # relu(o)*s + t followed by @w  ==  relu(o) @ (diag(s) w)  +  t @ w
        return ((s_prev.reshape(-1, 1) * w).astype(bf16),
                (t_prev @ w).astype(act_dtype))

    w2, b2 = fold(e["s1"], e["t1"], e["w2"])
    w3, b3 = fold(e["s2"], e["t2"], e["w3"])
    w4, b4 = fold(e["s3"], e["t3"], e["w4"])
    w5, b5 = fold(e["s4"], e["t4"], e["w5"])
    s5 = e["s5"].astype(act_dtype)
    # BN5 shift commutes with the max-pool -> fold into the fc bias.
    wfc = e["wfc"].astype(jnp.float32)
    bfc = (e["bfc"] + e["t5"] @ e["wfc"]).astype(jnp.float32)

    whead = jnp.zeros((256, hpad), jnp.float32)
    whead = whead.at[:, :z].set(e["wmu"]).at[:, z:2 * z].set(e["wstd"])
    bhead = jnp.zeros((1, hpad), jnp.float32)
    bhead = bhead.at[:, :z].set(e["bmu"]).at[:, z:2 * z].set(e["bstd"])

    return dict(w1=e["w1"].astype(jnp.float32),
                w2=w2, b2=b2, w3=w3, b3=b3, w4=w4, b4=b4, w5=w5, b5=b5, s5=s5,
                wfc=wfc, bfc=bfc, whead=whead, bhead=bhead, hpad=hpad, z=z)


def _pick_tiles(B, N, cap):
    """Batch / point tile sizes for the encoder grid (bt*nt <= cap)."""
    nt = N
    for cand in (2048, 1024, 512, 256, 128):
        if N % cand == 0:
            nt = cand
            break
    # Batch tile: 8-aligned (BlockSpec sublane rule) or full B; prefer >=2 batch
    # grid steps so both v7x TensorCores get work when B allows it cleanly.
    bt = B
    for cand in (32, 16, 8):
        if B % cand == 0 and B // cand >= 2:
            bt = cand
            break
    while bt * nt > cap and nt > 128 and (nt // 2) % 8 == 0 and N % (nt // 2) == 0:
        nt //= 2
    while (bt * nt > cap and bt >= 16 and (bt // 2) % 8 == 0
           and B % (bt // 2) == 0):
        bt //= 2
    return bt, nt


# ---------------------------------------------------------------------------
# Wrappers.
# ---------------------------------------------------------------------------
def encode(enc_params, x_bnc, *, act_dtype, vmem_limit, cap):
    """Encoder: points-major x (B, N, 3) f32 -> heads (B, HPAD) f32,
    with heads[:, :Z] = mu, heads[:, Z:2Z] = logvar (lane-dense, 128-padded)."""
    B, N, _ = x_bnc.shape
    f = _fold_encoder_weights(enc_params, act_dtype)
    hpad = f["hpad"]
    bt, nt = _pick_tiles(B, N, cap)

    # conv1 (+ReLU) hoisted to XLA: lane-dense bf16 (B, N, 64) kernel input.
    pre = jnp.maximum(jnp.einsum("bnc,cd->bnd", x_bnc, f["w1"]),
                      0.0).astype(jnp.bfloat16)

    weights = [f["w2"], f["b2"], f["w3"], f["b3"], f["w4"], f["b4"],
               f["w5"], f["b5"], f["s5"], f["wfc"], f["bfc"],
               f["whead"], f["bhead"]]

    def const_spec(a):
        return pl.BlockSpec(a.shape, lambda bi, ni: (0,) * a.ndim)

    in_specs = ([pl.BlockSpec((bt, nt, 64), lambda bi, ni: (bi, ni, 0))]
                + [const_spec(a) for a in weights])
    out_specs = pl.BlockSpec((bt, hpad), lambda bi, ni: (bi, 0))

    heads = pl.pallas_call(
        _encoder_kernel,
        out_shape=jax.ShapeDtypeStruct((B, hpad), jnp.float32),
        grid_spec=pltpu.PrefetchScalarGridSpec(
            num_scalar_prefetch=0,
            grid=(B // bt, N // nt),                # (batch tiles, point tiles)
            in_specs=in_specs,
            out_specs=out_specs,
            scratch_shapes=[pltpu.VMEM((bt, 512), jnp.float32)]),
        compiler_params=pltpu.CompilerParams(
            dimension_semantics=("parallel", "arbitrary"),
            vmem_limit_bytes=vmem_limit),
    )(pre, *weights)
    return heads


def decode(dec_params, heads_eps, z_size, *, tn, vmem_limit):
    """Reparameterize + decoder MLP.  heads_eps: (B, HPAD) f32 = [mu|logvar|eps|0]."""
    B, hpad = heads_eps.shape
    assert DEC_OUT % tn == 0 and 3 * z_size <= hpad
    bf16 = jnp.bfloat16
    d = dec_params

    small = [d["w1"].astype(bf16), d["b1"].astype(jnp.float32),
             d["w2"].astype(bf16), d["b2"].astype(jnp.float32),
             d["w3"].astype(bf16), d["b3"].astype(jnp.float32),
             d["w4"].astype(bf16), d["b4"].astype(jnp.float32)]
    w5 = d["w5"].astype(bf16)                      # (1024, 6144), streamed over grid
    b5 = d["b5"].astype(jnp.float32)               # (1, 6144)

    def const_spec(a):
        return pl.BlockSpec(a.shape, lambda j: (0,) * a.ndim)

    in_specs = ([pl.BlockSpec((B, hpad), lambda j: (0, 0))]
                + [const_spec(a) for a in small]
                + [_spec((1024, tn), lambda j: (0, j), buffer_count=3),
                   _spec((1, tn), lambda j: (0, j), buffer_count=3)])
    out_specs = pl.BlockSpec((B, tn), lambda j: (0, j))

    y = pl.pallas_call(
        functools.partial(_decoder_kernel, z_size=z_size),
        out_shape=jax.ShapeDtypeStruct((B, DEC_OUT), jnp.float32),
        grid_spec=pltpu.PrefetchScalarGridSpec(
            num_scalar_prefetch=0,
            grid=(DEC_OUT // tn,),
            in_specs=in_specs,
            out_specs=out_specs),
        compiler_params=pltpu.CompilerParams(
            dimension_semantics=("parallel",),
            vmem_limit_bytes=vmem_limit),
    )(heads_eps, *small, w5, b5)
    return y.reshape(B, 3, DEC_POINTS)


def soft_intro_vae_forward(params, x_ncw, eps, *, deterministic=False,
                           use_target_decoder=True):
    """Mirrors SoftIntroVAEBootstrap.forward: returns (y, mu, logvar)."""
    z_size = params["z_size"]
    gen = _tpu_generation()
    act_dtype = jnp.bfloat16 if gen >= 6 else jnp.float32   # v5e VPU has no bf16
    vmem_limit = (40 << 20) if gen >= 7 else ((64 << 20) if gen >= 5 else None)
    cap = 2048 if gen >= 5 else 1024
    tn = 1536 if gen >= 7 else 2048          # even (4-step) grid on v7x's 2 TCs

    x_bnc = jnp.transpose(x_ncw, (0, 2, 1)).astype(jnp.float32)   # NCW -> (B, N, 3)
    heads = encode(params["encoder"], x_bnc, act_dtype=act_dtype,
                   vmem_limit=vmem_limit, cap=cap)
    mu = heads[:, :z_size]
    logvar = heads[:, z_size:2 * z_size]
    if deterministic:
        eps = jnp.zeros_like(eps)                                  # z = mu
    # Pack eps into the spare padded lanes -> one lane-dense decoder input block.
    heads_eps = heads.at[:, 2 * z_size:3 * z_size].set(eps.astype(jnp.float32))
    dec = params["target_decoder"] if use_target_decoder else params["decoder"]
    y = decode(dec, heads_eps, z_size, tn=tn, vmem_limit=vmem_limit)
    return y, mu, logvar


# ---------------------------------------------------------------------------
# Deterministic synthetic parameters (shapes match the PyTorch module).
# ---------------------------------------------------------------------------
def _init_encoder(key, z_size):
    keys = iter(jax.random.split(key, 32))
    p = {}
    conv_dims = [(3, 64), (64, 128), (128, 256), (256, 256), (256, 512)]
    for i, (din, dout) in enumerate(conv_dims, start=1):
        s = 1.0 / jnp.sqrt(jnp.float32(din))
        p[f"w{i}"] = jax.random.uniform(next(keys), (din, dout), jnp.float32, -s, s)
        # Eval-mode BatchNorm1d folded to per-channel scale / shift.
        p[f"s{i}"] = 0.5 + jax.random.uniform(next(keys), (1, dout), jnp.float32)
        p[f"t{i}"] = 0.1 * jax.random.normal(next(keys), (1, dout), jnp.float32)
    for name, (din, dout) in (("fc", (512, 256)), ("mu", (256, z_size)),
                              ("std", (256, z_size))):
        s = 1.0 / jnp.sqrt(jnp.float32(din))
        p[f"w{name}"] = jax.random.uniform(next(keys), (din, dout), jnp.float32, -s, s)
        p[f"b{name}"] = jax.random.uniform(next(keys), (1, dout), jnp.float32, -s, s)
    return p


def _init_decoder(key, z_size):
    keys = iter(jax.random.split(key, 16))
    dims = [(z_size, 64), (64, 128), (128, 512), (512, 1024), (1024, DEC_OUT)]
    p = {}
    for i, (din, dout) in enumerate(dims, start=1):
        s = 1.0 / jnp.sqrt(jnp.float32(din))
        p[f"w{i}"] = jax.random.uniform(next(keys), (din, dout), jnp.float32, -s, s)
        p[f"b{i}"] = jax.random.uniform(next(keys), (1, dout), jnp.float32, -s, s)
    return p


def init_params(key, z_size):
    kenc, kdec, ktdec = jax.random.split(key, 3)
    return {
        "z_size": z_size,
        "encoder": _init_encoder(kenc, z_size),
        "decoder": _init_decoder(kdec, z_size),
        "target_decoder": _init_decoder(ktdec, z_size),
    }


# ---------------------------------------------------------------------------
# Plain-JAX reference, mirroring the kernel's folded-BN / precision choices.
# ---------------------------------------------------------------------------
def reference_forward(params, x_ncw, eps, use_target_decoder=True):
    gen = _tpu_generation()
    act_dtype = jnp.bfloat16 if gen >= 6 else jnp.float32
    bf16 = jnp.bfloat16
    z_size = params["z_size"]

    e = _fold_encoder_weights(params["encoder"], act_dtype)
    x = jnp.transpose(x_ncw, (0, 2, 1)).astype(jnp.float32)        # (B, N, 3)
    pre = jnp.maximum(jnp.einsum("bnc,cd->bnd", x, e["w1"]), 0.0).astype(bf16)

    def conv_relu(h, w, b):
        o = jnp.dot(h, w, preferred_element_type=jnp.float32)
        return jnp.maximum(o.astype(act_dtype) + b, 0.0)

    h = conv_relu(pre, e["w2"], e["b2"]).astype(bf16)
    h = conv_relu(h, e["w3"], e["b3"]).astype(bf16)
    h = conv_relu(h, e["w4"], e["b4"]).astype(bf16)
    g = conv_relu(h, e["w5"], e["b5"]) * e["s5"]
    pooled = jnp.max(g, axis=1).astype(jnp.float32)                 # (B, 512)
    logit = jnp.maximum(
        jnp.dot(pooled, e["wfc"], preferred_element_type=jnp.float32) + e["bfc"], 0.0)
    heads = jnp.dot(logit, e["whead"], preferred_element_type=jnp.float32) + e["bhead"]
    mu = heads[:, :z_size]
    logvar = heads[:, z_size:2 * z_size]

    zlat = mu + eps * jnp.exp(0.5 * logvar)
    d = params["target_decoder"] if use_target_decoder else params["decoder"]
    h = zlat
    for i in (1, 2, 3, 4):
        h = jnp.maximum(
            jnp.dot(h.astype(bf16), d[f"w{i}"].astype(bf16),
                    preferred_element_type=jnp.float32) + d[f"b{i}"], 0.0)
    y = jnp.dot(h.astype(bf16), d["w5"].astype(bf16),
                preferred_element_type=jnp.float32) + d["b5"]
    return y.reshape(-1, 3, DEC_POINTS), mu, logvar


if __name__ == "__main__":
    # Small shapes: batch=2, 3 channels, 128 points, z_size=32.
    B, N, Z = 2, 128, 32
    key = jax.random.PRNGKey(0)
    kx, kp, ke = jax.random.split(key, 3)

    x_ncw = jax.random.normal(kx, (B, 3, N), jnp.float32)    # PyTorch NCW input
    eps = jax.random.normal(ke, (B, Z), jnp.float32)         # reparameterization noise
    params = init_params(kp, Z)

    y, mu, logvar = soft_intro_vae_forward(params, x_ncw, eps)
    y, mu, logvar = jax.block_until_ready((y, mu, logvar))

    y_ref, mu_ref, logvar_ref = reference_forward(params, x_ncw, eps)

    assert y.shape == (B, 3, DEC_POINTS)
    assert mu.shape == (B, Z) and logvar.shape == (B, Z)
    assert jnp.allclose(mu, mu_ref, atol=2e-2, rtol=2e-2)
    assert jnp.allclose(logvar, logvar_ref, atol=2e-2, rtol=2e-2)
    assert jnp.allclose(y, y_ref, atol=2e-2, rtol=2e-2)

    print("KERNEL_OK")
</pallas_src>

<mosaic_0001>
module attributes {stable_mosaic.version = 11 : i64} {
  func.func @_encoder_kernel(%arg0: i32, %arg1: i32, %arg2: memref<2x128x64xbf16, #tpu.memory_space<vmem>>, %arg3: memref<64x128xbf16, #tpu.memory_space<vmem>>, %arg4: memref<1x128xf32, #tpu.memory_space<vmem>>, %arg5: memref<128x256xbf16, #tpu.memory_space<vmem>>, %arg6: memref<1x256xf32, #tpu.memory_space<vmem>>, %arg7: memref<256x256xbf16, #tpu.memory_space<vmem>>, %arg8: memref<1x256xf32, #tpu.memory_space<vmem>>, %arg9: memref<256x512xbf16, #tpu.memory_space<vmem>>, %arg10: memref<1x512xf32, #tpu.memory_space<vmem>>, %arg11: memref<1x512xf32, #tpu.memory_space<vmem>>, %arg12: memref<512x256xf32, #tpu.memory_space<vmem>>, %arg13: memref<1x256xf32, #tpu.memory_space<vmem>>, %arg14: memref<256x128xf32, #tpu.memory_space<vmem>>, %arg15: memref<1x128xf32, #tpu.memory_space<vmem>>, %arg16: memref<2x128xf32, #tpu.memory_space<vmem>>, %arg17: memref<2x512xf32, #tpu.memory_space<vmem>>) attributes {dimension_semantics = [#tpu.dimension_semantics<parallel>, #tpu.dimension_semantics<arbitrary>], iteration_bounds = array<i64: 1, 1>, scalar_prefetch = 0 : i64, scratch_operands = 1 : i64, tpu.core_type = #tpu.core_type<tc>, window_params = [{transform_indices = @transform_0, window_bounds = array<i64: 2, 128, 64>}, {pipeline_mode = #tpu.pipeline_mode<synchronous>, transform_indices = @transform_1, window_bounds = array<i64: 64, 128>}, {pipeline_mode = #tpu.pipeline_mode<synchronous>, transform_indices = @transform_2, window_bounds = array<i64: 1, 128>}, {pipeline_mode = #tpu.pipeline_mode<synchronous>, transform_indices = @transform_3, window_bounds = array<i64: 128, 256>}, {pipeline_mode = #tpu.pipeline_mode<synchronous>, transform_indices = @transform_4, window_bounds = array<i64: 1, 256>}, {pipeline_mode = #tpu.pipeline_mode<synchronous>, transform_indices = @transform_5, window_bounds = array<i64: 256, 256>}, {pipeline_mode = #tpu.pipeline_mode<synchronous>, transform_indices = @transform_6, window_bounds = array<i64: 1, 256>}, {pipeline_mode = #tpu.pipeline_mode<synchronous>, transform_indices = @transform_7, window_bounds = array<i64: 256, 512>}, {pipeline_mode = #tpu.pipeline_mode<synchronous>, transform_indices = @transform_8, window_bounds = array<i64: 1, 512>}, {pipeline_mode = #tpu.pipeline_mode<synchronous>, transform_indices = @transform_9, window_bounds = array<i64: 1, 512>}, {pipeline_mode = #tpu.pipeline_mode<synchronous>, transform_indices = @transform_10, window_bounds = array<i64: 512, 256>}, {pipeline_mode = #tpu.pipeline_mode<synchronous>, transform_indices = @transform_11, window_bounds = array<i64: 1, 256>}, {pipeline_mode = #tpu.pipeline_mode<synchronous>, transform_indices = @transform_12, window_bounds = array<i64: 256, 128>}, {pipeline_mode = #tpu.pipeline_mode<synchronous>, transform_indices = @transform_13, window_bounds = array<i64: 1, 128>}, {transform_indices = @transform_14, window_bounds = array<i64: 2, 128>}]} {
    %c0 = arith.constant 0 : index
    %c0_0 = arith.constant 0 : index
    %c0_1 = arith.constant 0 : index
    %0 = vector.load %arg2[%c0, %c0_0, %c0_1] : memref<2x128x64xbf16, #tpu.memory_space<vmem>>, vector<2x128x64xbf16>
    %1 = vector.shape_cast %0 : vector<2x128x64xbf16> to vector<256x64xbf16>
    %c0_2 = arith.constant 0 : index
    %c0_3 = arith.constant 0 : index
    %2 = vector.load %arg3[%c0_2, %c0_3] : memref<64x128xbf16, #tpu.memory_space<vmem>>, vector<64x128xbf16>
    %cst = arith.constant dense<0.000000e+00> : vector<256x128xf32>
    %3 = tpu.matmul %1, %2, %cst {dimension_numbers = #tpu.dot_dimension_numbers<[1], [0], [0], [1], [0, 0, 1, 1], [], []>} : vector<256x64xbf16>, vector<64x128xbf16>, vector<256x128xf32> -> vector<256x128xf32>
    %c0_4 = arith.constant 0 : index
    %c0_5 = arith.constant 0 : index
    %4 = vector.load %arg4[%c0_4, %c0_5] : memref<1x128xf32, #tpu.memory_space<vmem>>, vector<1x128xf32>
    %5 = vector.broadcast %4 : vector<1x128xf32> to vector<256x128xf32>
    %6 = arith.addf %3, %5 : vector<256x128xf32>
    %cst_6 = arith.constant 0.000000e+00 : f32
    %7 = vector.broadcast %cst_6 : f32 to vector<256x128xf32>
    %8 = arith.maximumf %6, %7 : vector<256x128xf32>
    %9 = arith.truncf %8 : vector<256x128xf32> to vector<256x128xbf16>
    %c0_7 = arith.constant 0 : index
    %c0_8 = arith.constant 0 : index
    %10 = vector.load %arg5[%c0_7, %c0_8] : memref<128x256xbf16, #tpu.memory_space<vmem>>, vector<128x256xbf16>
    %cst_9 = arith.constant dense<0.000000e+00> : vector<256x256xf32>
    %11 = tpu.matmul %9, %10, %cst_9 {dimension_numbers = #tpu.dot_dimension_numbers<[1], [0], [0], [1], [0, 0, 1, 1], [], []>} : vector<256x128xbf16>, vector<128x256xbf16>, vector<256x256xf32> -> vector<256x256xf32>
    %c0_10 = arith.constant 0 : index
    %c0_11 = arith.constant 0 : index
    %12 = vector.load %arg6[%c0_10, %c0_11] : memref<1x256xf32, #tpu.memory_space<vmem>>, vector<1x256xf32>
    %13 = vector.broadcast %12 : vector<1x256xf32> to vector<256x256xf32>
    %14 = arith.addf %11, %13 : vector<256x256xf32>
    %cst_12 = arith.constant 0.000000e+00 : f32
    %15 = vector.broadcast %cst_12 : f32 to vector<256x256xf32>
    %16 = arith.maximumf %14, %15 : vector<256x256xf32>
    %17 = arith.truncf %16 : vector<256x256xf32> to vector<256x256xbf16>
    %c0_13 = arith.constant 0 : index
    %c0_14 = arith.constant 0 : index
    %18 = vector.load %arg7[%c0_13, %c0_14] : memref<256x256xbf16, #tpu.memory_space<vmem>>, vector<256x256xbf16>
    %cst_15 = arith.constant dense<0.000000e+00> : vector<256x256xf32>
    %19 = tpu.matmul %17, %18, %cst_15 {dimension_numbers = #tpu.dot_dimension_numbers<[1], [0], [0], [1], [0, 0, 1, 1], [], []>} : vector<256x256xbf16>, vector<256x256xbf16>, vector<256x256xf32> -> vector<256x256xf32>
    %c0_16 = arith.constant 0 : index
    %c0_17 = arith.constant 0 : index
    %20 = vector.load %arg8[%c0_16, %c0_17] : memref<1x256xf32, #tpu.memory_space<vmem>>, vector<1x256xf32>
    %21 = vector.broadcast %20 : vector<1x256xf32> to vector<256x256xf32>
    %22 = arith.addf %19, %21 : vector<256x256xf32>
    %cst_18 = arith.constant 0.000000e+00 : f32
    %23 = vector.broadcast %cst_18 : f32 to vector<256x256xf32>
    %24 = arith.maximumf %22, %23 : vector<256x256xf32>
    %25 = arith.truncf %24 : vector<256x256xf32> to vector<256x256xbf16>
    %c0_19 = arith.constant 0 : index
    %c0_20 = arith.constant 0 : index
    %26 = vector.load %arg9[%c0_19, %c0_20] : memref<256x512xbf16, #tpu.memory_space<vmem>>, vector<256x512xbf16>
    %cst_21 = arith.constant dense<0.000000e+00> : vector<256x512xf32>
    %27 = tpu.matmul %25, %26, %cst_21 {dimension_numbers = #tpu.dot_dimension_numbers<[1], [0], [0], [1], [0, 0, 1, 1], [], []>} : vector<256x256xbf16>, vector<256x512xbf16>, vector<256x512xf32> -> vector<256x512xf32>
    %c0_22 = arith.constant 0 : index
    %c0_23 = arith.constant 0 : index
    %28 = vector.load %arg10[%c0_22, %c0_23] : memref<1x512xf32, #tpu.memory_space<vmem>>, vector<1x512xf32>
    %29 = vector.broadcast %28 : vector<1x512xf32> to vector<256x512xf32>
    %30 = arith.addf %27, %29 : vector<256x512xf32>
    %cst_24 = arith.constant 0.000000e+00 : f32
    %31 = vector.broadcast %cst_24 : f32 to vector<256x512xf32>
    %32 = arith.maximumf %30, %31 : vector<256x512xf32>
    %c0_25 = arith.constant 0 : index
    %c0_26 = arith.constant 0 : index
    %33 = vector.load %arg11[%c0_25, %c0_26] : memref<1x512xf32, #tpu.memory_space<vmem>>, vector<1x512xf32>
    %34 = vector.broadcast %33 : vector<1x512xf32> to vector<256x512xf32>
    %35 = arith.mulf %32, %34 : vector<256x512xf32>
    %36 = vector.shape_cast %35 : vector<256x512xf32> to vector<2x128x512xf32>
    %cst_27 = arith.constant dense<0xFF800000> : vector<2x512xf32>
    %37 = vector.multi_reduction <maximumf>, %36, %cst_27 [1] : vector<2x128x512xf32> to vector<2x512xf32>
    %c0_i32 = arith.constant 0 : i32
    %38 = arith.cmpi eq, %arg1, %c0_i32 : i32
    %39 = arith.extui %38 : i1 to i32
    %c0_i32_28 = arith.constant 0 : i32
    %40 = arith.cmpi ne, %39, %c0_i32_28 : i32
    scf.if %40 {
      %cst_35 = arith.constant 0xFF800000 : f32
      %47 = vector.broadcast %cst_35 : f32 to vector<2x512xf32>
      %c0_36 = arith.constant 0 : index
      %c0_37 = arith.constant 0 : index
      %48 = vector.load %arg17[%c0_36, %c0_37] : memref<2x512xf32, #tpu.memory_space<vmem>>, vector<2x512xf32>
      tpu.vector_store %arg17[%c0_36, %c0_37], %47 {strides = array<i32>} : memref<2x512xf32, #tpu.memory_space<vmem>>, vector<2x512xf32>,
    } else {
    }
    %c0_29 = arith.constant 0 : index
    %c0_30 = arith.constant 0 : index
    %41 = vector.load %arg17[%c0_29, %c0_30] : memref<2x512xf32, #tpu.memory_space<vmem>>, vector<2x512xf32>
    %42 = arith.maximumf %41, %37 : vector<2x512xf32>
    %c0_31 = arith.constant 0 : index
    %c0_32 = arith.constant 0 : index
    %43 = vector.load %arg17[%c0_31, %c0_32] : memref<2x512xf32, #tpu.memory_space<vmem>>, vector<2x512xf32>
    tpu.vector_store %arg17[%c0_31, %c0_32], %42 {strides = array<i32>} : memref<2x512xf32, #tpu.memory_space<vmem>>, vector<2x512xf32>,
    %c0_i32_33 = arith.constant 0 : i32
    %44 = arith.cmpi eq, %arg1, %c0_i32_33 : i32
    %45 = arith.extui %44 : i1 to i32
    %c0_i32_34 = arith.constant 0 : i32
    %46 = arith.cmpi ne, %45, %c0_i32_34 : i32
    scf.if %46 {
      %c0_35 = arith.constant 0 : index
      %c0_36 = arith.constant 0 : index
      %47 = vector.load %arg17[%c0_35, %c0_36] : memref<2x512xf32, #tpu.memory_space<vmem>>, vector<2x512xf32>
      %c0_37 = arith.constant 0 : index
      %c0_38 = arith.constant 0 : index
      %48 = vector.load %arg12[%c0_37, %c0_38] : memref<512x256xf32, #tpu.memory_space<vmem>>, vector<512x256xf32>
      %cst_39 = arith.constant dense<0.000000e+00> : vector<2x256xf32>
      %49 = tpu.matmul %47, %48, %cst_39 {dimension_numbers = #tpu.dot_dimension_numbers<[1], [0], [0], [1], [0, 0, 1, 1], [], []>} : vector<2x512xf32>, vector<512x256xf32>, vector<2x256xf32> -> vector<2x256xf32>
      %c0_40 = arith.constant 0 : index
      %c0_41 = arith.constant 0 : index
      %50 = vector.load %arg13[%c0_40, %c0_41] : memref<1x256xf32, #tpu.memory_space<vmem>>, vector<1x256xf32>
      %51 = vector.broadcast %50 : vector<1x256xf32> to vector<2x256xf32>
      %52 = arith.addf %49, %51 : vector<2x256xf32>
      %cst_42 = arith.constant 0.000000e+00 : f32
      %53 = vector.broadcast %cst_42 : f32 to vector<2x256xf32>
      %54 = arith.maximumf %52, %53 : vector<2x256xf32>
      %c0_43 = arith.constant 0 : index
      %c0_44 = arith.constant 0 : index
      %55 = vector.load %arg14[%c0_43, %c0_44] : memref<256x128xf32, #tpu.memory_space<vmem>>, vector<256x128xf32>
      %cst_45 = arith.constant dense<0.000000e+00> : vector<2x128xf32>
      %56 = tpu.matmul %54, %55, %cst_45 {dimension_numbers = #tpu.dot_dimension_numbers<[1], [0], [0], [1], [0, 0, 1, 1], [], []>} : vector<2x256xf32>, vector<256x128xf32>, vector<2x128xf32> -> vector<2x128xf32>
      %c0_46 = arith.constant 0 : index
      %c0_47 = arith.constant 0 : index
      %57 = vector.load %arg15[%c0_46, %c0_47] : memref<1x128xf32, #tpu.memory_space<vmem>>, vector<1x128xf32>
      %58 = vector.broadcast %57 : vector<1x128xf32> to vector<2x128xf32>
      %59 = arith.addf %56, %58 : vector<2x128xf32>
      %c0_48 = arith.constant 0 : index
      %c0_49 = arith.constant 0 : index
      %60 = vector.load %arg16[%c0_48, %c0_49] : memref<2x128xf32, #tpu.memory_space<vmem>>, vector<2x128xf32>
      tpu.vector_store %arg16[%c0_48, %c0_49], %59 {strides = array<i32>} : memref<2x128xf32, #tpu.memory_space<vmem>>, vector<2x128xf32>,
    } else {
    }
    return
  }
  func.func @transform_0(%arg0: i32, %arg1: i32) -> (i32, i32, i32) {
    %c0_i32 = arith.constant 0 : i32
    %c0_i32_0 = arith.constant 0 : i32
    return %arg0, %arg1, %c0_i32 : i32, i32, i32
  }
  func.func @transform_1(%arg0: i32, %arg1: i32) -> (i32, i32) {
    %c0_i32 = arith.constant 0 : i32
    %c0_i32_0 = arith.constant 0 : i32
    %c0_i32_1 = arith.constant 0 : i32
    return %c0_i32, %c0_i32_0 : i32, i32
  }
  func.func @transform_2(%arg0: i32, %arg1: i32) -> (i32, i32) {
    %c0_i32 = arith.constant 0 : i32
    %c0_i32_0 = arith.constant 0 : i32
    %c0_i32_1 = arith.constant 0 : i32
    return %c0_i32, %c0_i32_0 : i32, i32
  }
  func.func @transform_3(%arg0: i32, %arg1: i32) -> (i32, i32) {
    %c0_i32 = arith.constant 0 : i32
    %c0_i32_0 = arith.constant 0 : i32
    %c0_i32_1 = arith.constant 0 : i32
    return %c0_i32, %c0_i32_0 : i32, i32
  }
  func.func @transform_4(%arg0: i32, %arg1: i32) -> (i32, i32) {
    %c0_i32 = arith.constant 0 : i32
    %c0_i32_0 = arith.constant 0 : i32
    %c0_i32_1 = arith.constant 0 : i32
    return %c0_i32, %c0_i32_0 : i32, i32
  }
  func.func @transform_5(%arg0: i32, %arg1: i32) -> (i32, i32) {
    %c0_i32 = arith.constant 0 : i32
    %c0_i32_0 = arith.constant 0 : i32
    %c0_i32_1 = arith.constant 0 : i32
    return %c0_i32, %c0_i32_0 : i32, i32
  }
  func.func @transform_6(%arg0: i32, %arg1: i32) -> (i32, i32) {
    %c0_i32 = arith.constant 0 : i32
    %c0_i32_0 = arith.constant 0 : i32
    %c0_i32_1 = arith.constant 0 : i32
    return %c0_i32, %c0_i32_0 : i32, i32
  }
  func.func @transform_7(%arg0: i32, %arg1: i32) -> (i32, i32) {
    %c0_i32 = arith.constant 0 : i32
    %c0_i32_0 = arith.constant 0 : i32
    %c0_i32_1 = arith.constant 0 : i32
    return %c0_i32, %c0_i32_0 : i32, i32
  }
  func.func @transform_8(%arg0: i32, %arg1: i32) -> (i32, i32) {
    %c0_i32 = arith.constant 0 : i32
    %c0_i32_0 = arith.constant 0 : i32
    %c0_i32_1 = arith.constant 0 : i32
    return %c0_i32, %c0_i32_0 : i32, i32
  }
  func.func @transform_9(%arg0: i32, %arg1: i32) -> (i32, i32) {
    %c0_i32 = arith.constant 0 : i32
    %c0_i32_0 = arith.constant 0 : i32
    %c0_i32_1 = arith.constant 0 : i32
    return %c0_i32, %c0_i32_0 : i32, i32
  }
  func.func @transform_10(%arg0: i32, %arg1: i32) -> (i32, i32) {
    %c0_i32 = arith.constant 0 : i32
    %c0_i32_0 = arith.constant 0 : i32
    %c0_i32_1 = arith.constant 0 : i32
    return %c0_i32, %c0_i32_0 : i32, i32
  }
  func.func @transform_11(%arg0: i32, %arg1: i32) -> (i32, i32) {
    %c0_i32 = arith.constant 0 : i32
    %c0_i32_0 = arith.constant 0 : i32
    %c0_i32_1 = arith.constant 0 : i32
    return %c0_i32, %c0_i32_0 : i32, i32
  }
  func.func @transform_12(%arg0: i32, %arg1: i32) -> (i32, i32) {
    %c0_i32 = arith.constant 0 : i32
    %c0_i32_0 = arith.constant 0 : i32
    %c0_i32_1 = arith.constant 0 : i32
    return %c0_i32, %c0_i32_0 : i32, i32
  }
  func.func @transform_13(%arg0: i32, %arg1: i32) -> (i32, i32) {
    %c0_i32 = arith.constant 0 : i32
    %c0_i32_0 = arith.constant 0 : i32
    %c0_i32_1 = arith.constant 0 : i32
    return %c0_i32, %c0_i32_0 : i32, i32
  }
  func.func @transform_14(%arg0: i32, %arg1: i32) -> (i32, i32) {
    %c0_i32 = arith.constant 0 : i32
    %c0_i32_0 = arith.constant 0 : i32
    return %arg0, %c0_i32 : i32, i32
  }
}

</mosaic_0001>

<llo_original>
// kernel: tpu_custom_call.1
$region0: #{tpu_custom_call.1}
  #allocation0 [shape = 'u32[]', space=smem, size = 0x4, offset = 0x4, fixed_abs, tag = 'smem constant byte address 0x4 - core index']
  #allocation1 [shape = 'u32[144,128]{1,0:T(1,128)}', space=vmem, size = 0x12000, scoped, tag = 'internal scratch']
  #allocation2 [shape = 'f32[2,512]{1,0:T(2,128)}', space=vmem, size = 0x1000, scoped, tag = 'scratch operand']
  %s0 = inlined_call_operand.vmem [shape: bf16[2,128,64], index: 0, kind: input, shape index: {}]
  %s1 = inlined_call_operand.vmem [shape: bf16[64,128], index: 1, kind: input, shape index: {}]
  %s2 = inlined_call_operand.vmem [shape: f32[1,128], index: 2, kind: input, shape index: {}]
  %s3 = inlined_call_operand.vmem [shape: bf16[128,256], index: 3, kind: input, shape index: {}]
  %s4 = inlined_call_operand.vmem [shape: f32[1,256], index: 4, kind: input, shape index: {}]
  %s5 = inlined_call_operand.hbm [shape: bf16[256,256], index: 5, kind: input, shape index: {}]
  %s6 = inlined_call_operand.vmem [shape: f32[1,256], index: 6, kind: input, shape index: {}]
  %s7 = inlined_call_operand.hbm [shape: bf16[256,512], index: 7, kind: input, shape index: {}]
  %s8 = inlined_call_operand.vmem [shape: f32[1,512], index: 8, kind: input, shape index: {}]
  %s9 = inlined_call_operand.vmem [shape: f32[1,512], index: 9, kind: input, shape index: {}]
  %s10 = inlined_call_operand.hbm [shape: f32[512,256], index: 10, kind: input, shape index: {}]
  %s11 = inlined_call_operand.vmem [shape: f32[1,256], index: 11, kind: input, shape index: {}]
  %s12 = inlined_call_operand.hbm [shape: f32[256,128], index: 12, kind: input, shape index: {}]
  %s13 = inlined_call_operand.vmem [shape: f32[1,128], index: 13, kind: input, shape index: {}]
  %s14 = inlined_call_operand.hbm [shape: f32[2,128], index: 14, kind: output, shape index: {}]
  %s15 = sld [smem:[#allocation0]]
  $region90: #{tpu_custom_call.1} parent=0
    _
  %s17 = ssub.s32 1, %s15
  %s18 = scalar_select 0, %s17, %s15
  $region1: #{tpu_custom_call.1} parent=0
    #allocation3 [shape = 'u8[131072]{0}', space=vmem, size = 0x20000, scoped, tag = 'input window, operand 5, single buffered']
    #allocation4 [shape = 's32[1]{0}', space=sflag, size = 0x4, scoped, tag = 'scoped memory for tpu_custom_call.1']
    #allocation5 [shape = 's32[1]{0}', space=sflag, size = 0x4, scoped, tag = 'scoped memory for tpu_custom_call.1']
    #allocation6 [shape = 'u8[262144]{0}', space=vmem, size = 0x40000, scoped, tag = 'input window, operand 7, single buffered']
    #allocation7 [shape = 's32[1]{0}', space=sflag, size = 0x4, scoped, tag = 'scoped memory for tpu_custom_call.1']
    #allocation8 [shape = 'u8[524288]{0}', space=vmem, size = 0x80000, scoped, tag = 'input window, operand 10, single buffered']
    #allocation9 [shape = 'u8[131072]{0}', space=vmem, size = 0x20000, scoped, tag = 'input window, operand 12, single buffered']
    #allocation10 [shape = 's32[1]{0}', space=sflag, size = 0x4, scoped, tag = 'scoped memory for tpu_custom_call.1']
    #allocation11 [shape = 'u8[1024]{0}', space=vmem, size = 0x400, scoped, tag = 'output window, operand 0, single buffered']
    %19 = vsyncpa [#allocation4], 0
    %20 = vsyncpa [#allocation7], 0
    %21 = vsyncpa [#allocation10], 0
    %22 = vsyncpa [#allocation5], 0
    // Predicated region
    $region2: #{tpu_custom_call.1} parent=1 // pred_check
      _
    $region3: #{tpu_custom_call.1} parent=1 // pred_check_branch
      %24 = sbr.rel (0) target = $region5
    $region4: #{tpu_custom_call.1} parent=1 // pred_region
      _
    $region5: #{tpu_custom_call.1} parent=1 // pred_fallthru
      _
    // Predicated region
    $region6: #{tpu_custom_call.1} parent=1 // pred_check
      _
    $region7: #{tpu_custom_call.1} parent=1 // pred_check_branch
      %26 = sbr.rel (0) target = $region9
    $region8: #{tpu_custom_call.1} parent=1 // pred_region
      _
    $region9: #{tpu_custom_call.1} parent=1 // pred_fallthru
      _
    // Predicated region
    $region10: #{tpu_custom_call.1} parent=1 // pred_check
      _
    $region11: #{tpu_custom_call.1} parent=1 // pred_check_branch
      %28 = sbr.rel (0) target = $region13
    $region12: #{tpu_custom_call.1} parent=1 // pred_region
      _
    $region13: #{tpu_custom_call.1} parent=1 // pred_fallthru
      _
    // Predicated region
    $region14: #{tpu_custom_call.1} parent=1 // pred_check
      _
    $region15: #{tpu_custom_call.1} parent=1 // pred_check_branch
      %30 = sbr.rel (0) target = $region17
    $region16: #{tpu_custom_call.1} parent=1 // pred_region
      _
    $region17: #{tpu_custom_call.1} parent=1 // pred_fallthru
      _
    // Predicated region
    $region18: #{tpu_custom_call.1} parent=1 // pred_check
      _
    $region19: #{tpu_custom_call.1} parent=1 // pred_check_branch
      %32 = sbr.rel (0) target = $region21
    $region20: #{tpu_custom_call.1} parent=1 // pred_region
      _
    $region21: #{tpu_custom_call.1} parent=1 // pred_fallthru
      _
    // Predicated region
    $region22: #{tpu_custom_call.1} parent=1 // pred_check
      _
    $region23: #{tpu_custom_call.1} parent=1 // pred_check_branch
      %34 = sbr.rel (0) target = $region25
    $region24: #{tpu_custom_call.1} parent=1 // pred_region
      %s36 = ssub.s32 4096, 4096
      %37 = vsyncadd [#allocation4], %s36
      %s38 = sshll.u32 [#allocation3], 4
      %s39 = int_to_ptr.vmem [resolvable:$true] %s38
      %44 = dma.hbm_to_vmem [thread:$0]  %s5, 4096, %s39, [#allocation4], 128, 128, 8
    $region25: #{tpu_custom_call.1} parent=1 // pred_fallthru
      _
    // Predicated region
    $region26: #{tpu_custom_call.1} parent=1 // pred_check
      _
    $region27: #{tpu_custom_call.1} parent=1 // pred_check_branch
      %46 = sbr.rel (0) target = $region29
    $region28: #{tpu_custom_call.1} parent=1 // pred_region
      _
    $region29: #{tpu_custom_call.1} parent=1 // pred_fallthru
      _
    // Predicated region
    $region30: #{tpu_custom_call.1} parent=1 // pred_check
      _
    $region31: #{tpu_custom_call.1} parent=1 // pred_check_branch
      %48 = sbr.rel (0) target = $region33
    $region32: #{tpu_custom_call.1} parent=1 // pred_region
      %s50 = ssub.s32 8192, 8192
      %51 = vsyncadd [#allocation7], %s50
      %s52 = sshll.u32 [#allocation6], 4
      %s53 = int_to_ptr.vmem [resolvable:$true] %s52
      %58 = dma.hbm_to_vmem [thread:$0]  %s7, 8192, %s53, [#allocation7], 256, 256, 16
    $region33: #{tpu_custom_call.1} parent=1 // pred_fallthru
      _
    // Predicated region
    $region34: #{tpu_custom_call.1} parent=1 // pred_check
      _
    $region35: #{tpu_custom_call.1} parent=1 // pred_check_branch
      %60 = sbr.rel (0) target = $region37
    $region36: #{tpu_custom_call.1} parent=1 // pred_region
      _
    $region37: #{tpu_custom_call.1} parent=1 // pred_fallthru
      _
    // Predicated region
    $region38: #{tpu_custom_call.1} parent=1 // pred_check
      _
    $region39: #{tpu_custom_call.1} parent=1 // pred_check_branch
      %62 = sbr.rel (0) target = $region41
    $region40: #{tpu_custom_call.1} parent=1 // pred_region
      _
    $region41: #{tpu_custom_call.1} parent=1 // pred_fallthru
      _
    // Predicated region
    $region42: #{tpu_custom_call.1} parent=1 // pred_check
      _
    $region43: #{tpu_custom_call.1} parent=1 // pred_check_branch
      %64 = sbr.rel (0) target = $region45
    $region44: #{tpu_custom_call.1} parent=1 // pred_region
      %s66 = ssub.s32 16384, 16384
      %67 = vsyncadd [#allocation7], %s66
      %s68 = sshll.u32 [#allocation8], 4
      %s69 = int_to_ptr.vmem [resolvable:$true] %s68
      %74 = dma.hbm_to_vmem [thread:$0]  %s10, 16384, %s69, [#allocation7], 256, 256, 16
    $region45: #{tpu_custom_call.1} parent=1 // pred_fallthru
      _
    // Predicated region
    $region46: #{tpu_custom_call.1} parent=1 // pred_check
      _
    $region47: #{tpu_custom_call.1} parent=1 // pred_check_branch
      %76 = sbr.rel (0) target = $region49
    $region48: #{tpu_custom_call.1} parent=1 // pred_region
      _
    $region49: #{tpu_custom_call.1} parent=1 // pred_fallthru
      _
    // Predicated region
    $region50: #{tpu_custom_call.1} parent=1 // pred_check
      _
    $region51: #{tpu_custom_call.1} parent=1 // pred_check_branch
      %78 = sbr.rel (0) target = $region53
    $region52: #{tpu_custom_call.1} parent=1 // pred_region
      %s80 = ssub.s32 4096, 4096
      %81 = vsyncadd [#allocation10], %s80
      %s82 = sshll.u32 [#allocation9], 4
      %s83 = int_to_ptr.vmem [resolvable:$true] %s82
      %88 = dma.hbm_to_vmem [thread:$0]  %s12, 4096, %s83, [#allocation10], 128, 128, 8
    $region53: #{tpu_custom_call.1} parent=1 // pred_fallthru
      _
    // Predicated region
    $region54: #{tpu_custom_call.1} parent=1 // pred_check
      _
    $region55: #{tpu_custom_call.1} parent=1 // pred_check_branch
      %90 = sbr.rel (0) target = $region57
    $region56: #{tpu_custom_call.1} parent=1 // pred_region
      _
    $region57: #{tpu_custom_call.1} parent=1 // pred_fallthru
      _
    // Predicated region
    $region58: #{tpu_custom_call.1} parent=1 // pred_check
      _
    $region59: #{tpu_custom_call.1} parent=1 // pred_check_branch
      %92 = sbr.rel (0) target = $region61
    $region60: #{tpu_custom_call.1} parent=1 // pred_region
      %93 = dma.done [#allocation4], 4096
    $region61: #{tpu_custom_call.1} parent=1 // pred_fallthru
      _
    // Predicated region
    $region62: #{tpu_custom_call.1} parent=1 // pred_check
      _
    $region63: #{tpu_custom_call.1} parent=1 // pred_check_branch
      %95 = sbr.rel (0) target = $region65
    $region64: #{tpu_custom_call.1} parent=1 // pred_region
      %96 = dma.done [#allocation7], 8192
    $region65: #{tpu_custom_call.1} parent=1 // pred_fallthru
      _
    // Predicated region
    $region66: #{tpu_custom_call.1} parent=1 // pred_check
      _
    $region67: #{tpu_custom_call.1} parent=1 // pred_check_branch
      %98 = sbr.rel (0) target = $region69
    $region68: #{tpu_custom_call.1} parent=1 // pred_region
      %99 = dma.done [#allocation7], 16384
    $region69: #{tpu_custom_call.1} parent=1 // pred_fallthru
      _
    // Predicated region
    $region70: #{tpu_custom_call.1} parent=1 // pred_check
      _
    $region71: #{tpu_custom_call.1} parent=1 // pred_check_branch
      %101 = sbr.rel (0) target = $region73
    $region72: #{tpu_custom_call.1} parent=1 // pred_region
      %102 = dma.done [#allocation10], 4096
    $region73: #{tpu_custom_call.1} parent=1 // pred_fallthru
      _
    %v104 = vld [vmem:[%s0] sm:$0xf]
    %v105 = vld [vmem:[%s0 + $0x4] sm:$0xf]
    %v106 = vld [vmem:[%s0 + $0x8] sm:$0xf]
    %v107 = vld [vmem:[%s0 + $0xc] sm:$0xf]
    %v108 = vld [vmem:[%s0 + $0x10] sm:$0xf]
    %v109 = vld [vmem:[%s0 + $0x14] sm:$0xf]
    %v110 = vld [vmem:[%s0 + $0x18] sm:$0xf]
    %v111 = vld [vmem:[%s0 + $0x1c] sm:$0xf]
    %v112 = vld [vmem:[%s0 + $0x20] sm:$0xf]
    %v113 = vld [vmem:[%s0 + $0x24] sm:$0xf]
    %v114 = vld [vmem:[%s0 + $0x28] sm:$0xf]
    %v115 = vld [vmem:[%s0 + $0x2c] sm:$0xf]
    %v116 = vld [vmem:[%s0 + $0x30] sm:$0xf]
    %v117 = vld [vmem:[%s0 + $0x34] sm:$0xf]
    %v118 = vld [vmem:[%s0 + $0x38] sm:$0xf]
    %v119 = vld [vmem:[%s0 + $0x3c] sm:$0xf]
    %v120 = vld [vmem:[%s0 + $0x40] sm:$0xf]
    %v121 = vld [vmem:[%s0 + $0x44] sm:$0xf]
    %v122 = vld [vmem:[%s0 + $0x48] sm:$0xf]
    %v123 = vld [vmem:[%s0 + $0x4c] sm:$0xf]
    %v124 = vld [vmem:[%s0 + $0x50] sm:$0xf]
    %v125 = vld [vmem:[%s0 + $0x54] sm:$0xf]
    %v126 = vld [vmem:[%s0 + $0x58] sm:$0xf]
    %v127 = vld [vmem:[%s0 + $0x5c] sm:$0xf]
    %v128 = vld [vmem:[%s0 + $0x60] sm:$0xf]
    %v129 = vld [vmem:[%s0 + $0x64] sm:$0xf]
    %v130 = vld [vmem:[%s0 + $0x68] sm:$0xf]
    %v131 = vld [vmem:[%s0 + $0x6c] sm:$0xf]
    %v132 = vld [vmem:[%s0 + $0x70] sm:$0xf]
    %v133 = vld [vmem:[%s0 + $0x74] sm:$0xf]
    %v134 = vld [vmem:[%s0 + $0x78] sm:$0xf]
    %v135 = vld [vmem:[%s0 + $0x7c] sm:$0xf]
    %v136 = vld [vmem:[%s1] sm:$0xf]
    %v137 = vld [vmem:[%s1 + $0x4] sm:$0xf]
    %v138 = vld [vmem:[%s1 + $0x8] sm:$0xf]
    %v139 = vld [vmem:[%s1 + $0xc] sm:$0xf]
    %v140 = vld [vmem:[%s1 + $0x10] sm:$0xf]
    %v141 = vld [vmem:[%s1 + $0x14] sm:$0xf]
    %v142 = vld [vmem:[%s1 + $0x18] sm:$0xf]
    %v143 = vld [vmem:[%s1 + $0x1c] sm:$0xf]
    %v144 = vld [vmem:[%s2] sm:$0x1]
    %v146 = vlaneseq
    %v147 = vshrl.u32 %v146, 7
    %v148 = vsub.s32 0, %v147
    %v149 = vrot.slane %v144, %v148
    %v183 = vunpack.c.l.b16 %v104
    %v184 = vunpack.c.l.b16 %v105
    %v185 = vunpack.c.l.b16 %v106
    %v186 = vunpack.c.l.b16 %v107
    %v187 = vunpack.c.l.b16 %v108
    %v188 = vunpack.c.l.b16 %v109
    %v189 = vunpack.c.l.b16 %v110
    %v190 = vunpack.c.l.b16 %v111
    %v191 = vunpack.c.l.b16 %v112
    %v192 = vunpack.c.l.b16 %v113
    %v193 = vunpack.c.l.b16 %v114
    %v194 = vunpack.c.l.b16 %v115
    %v195 = vunpack.c.l.b16 %v116
    %v196 = vunpack.c.l.b16 %v117
    %v197 = vunpack.c.l.b16 %v118
    %v198 = vunpack.c.l.b16 %v119
    %v199 = vunpack.c.l.b16 %v120
    %v200 = vunpack.c.l.b16 %v121
    %v201 = vunpack.c.l.b16 %v122
    %v202 = vunpack.c.l.b16 %v123
    %v203 = vunpack.c.l.b16 %v124
    %v204 = vunpack.c.l.b16 %v125
    %v205 = vunpack.c.l.b16 %v126
    %v206 = vunpack.c.l.b16 %v127
    %v207 = vunpack.c.l.b16 %v128
    %v208 = vunpack.c.l.b16 %v129
    %v209 = vunpack.c.l.b16 %v130
    %v210 = vunpack.c.l.b16 %v131
    %v211 = vunpack.c.l.b16 %v132
    %v212 = vunpack.c.l.b16 %v133
    %v213 = vunpack.c.l.b16 %v134
    %v214 = vunpack.c.l.b16 %v135
    %v215 = vpack.c.b16 %v184, %v183
    %v216 = vpack.c.b16 %v186, %v185
    %v217 = vpack.c.b16 %v188, %v187
    %v218 = vpack.c.b16 %v190, %v189
    %v219 = vpack.c.b16 %v192, %v191
    %v220 = vpack.c.b16 %v194, %v193
    %v221 = vpack.c.b16 %v196, %v195
    %v222 = vpack.c.b16 %v198, %v197
    %v223 = vpack.c.b16 %v200, %v199
    %v224 = vpack.c.b16 %v202, %v201
    %v225 = vpack.c.b16 %v204, %v203
    %v226 = vpack.c.b16 %v206, %v205
    %v227 = vpack.c.b16 %v208, %v207
    %v228 = vpack.c.b16 %v210, %v209
    %v229 = vpack.c.b16 %v212, %v211
    %v230 = vpack.c.b16 %v214, %v213
    %v239 = vunpack.c.l.b16 %v136
    %v240 = vunpack.c.l.b16 %v137
    %v241 = vunpack.c.l.b16 %v138
    %v242 = vunpack.c.l.b16 %v139
    %v243 = vunpack.c.l.b16 %v140
    %v244 = vunpack.c.l.b16 %v141
    %v245 = vunpack.c.l.b16 %v142
    %v246 = vunpack.c.l.b16 %v143
    %v247 = vpack.c.b16 %v240, %v239
    %v248 = vpack.c.b16 %v242, %v241
    %v249 = vpack.c.b16 %v244, %v243
    %v250 = vpack.c.b16 %v246, %v245
    %vm255 = vcmask 523264
    %v257 = vsel %vm255, %v215, 0
    %v260 = vsel %vm255, %v216, 0
    %v263 = vsel %vm255, %v217, 0
    %v266 = vsel %vm255, %v218, 0
    %v269 = vsel %vm255, %v219, 0
    %v272 = vsel %vm255, %v220, 0
    %v275 = vsel %vm255, %v221, 0
    %v278 = vsel %vm255, %v222, 0
    %v281 = vsel %vm255, %v223, 0
    %v284 = vsel %vm255, %v224, 0
    %v287 = vsel %vm255, %v225, 0
    %v290 = vsel %vm255, %v226, 0
    %v293 = vsel %vm255, %v227, 0
    %v296 = vsel %vm255, %v228, 0
    %v299 = vsel %vm255, %v229, 0
    %v302 = vsel %vm255, %v230, 0
    %304 = vmatprep.subr.bf16.mxu0 0
    %305 = vmatpush1.bf16.msra.mxu0 %v247
    %306 = vmatprep.subr.bf16.mxu0 0
    %307 = vmatpush1.bf16.msra.mxu0 %v248
    %308 = vmatprep.subr.bf16.mxu0 0
    %309 = vmatpush1.bf16.msra.mxu0 %v249
    %310 = vmatprep.subr.bf16.mxu0 0
    %311 = vmatpush1.bf16.msra.mxu0 %v250
    %312 = vmatprep.subr.bf16.mxu0 0
    %313 = vmatpush1.bf16.msra.mxu0 0
    %314 = vmatprep.subr.bf16.mxu0 0
    %315 = vmatpush1.bf16.msra.mxu0 0
    %316 = vmatprep.subr.bf16.mxu0 0
    %317 = vmatpush1.bf16.msra.mxu0 0
    %318 = vmatprep.subr.bf16.mxu0 0
    %319 = vmatpush1.bf16.msra.mxu0 0
    %320 = vmatprep.subr.bf16.mxu0 0
    %321 = vmatpush1.bf16.msra.mxu0 0
    %322 = vmatprep.subr.bf16.mxu0 0
    %323 = vmatpush1.bf16.msra.mxu0 0
    %324 = vmatprep.subr.bf16.mxu0 0
    %325 = vmatpush1.bf16.msra.mxu0 0
    %326 = vmatprep.subr.bf16.mxu0 0
    %327 = vmatpush1.bf16.msra.mxu0 0
    %328 = vmatprep.subr.bf16.mxu0 0
    %329 = vmatpush1.bf16.msra.mxu0 0
    %330 = vmatprep.subr.bf16.mxu0 0
    %331 = vmatpush1.bf16.msra.mxu0 0
    %332 = vmatprep.subr.bf16.mxu0 0
    %333 = vmatpush1.bf16.msra.mxu0 0
    %334 = vmatprep.subr.bf16.mxu0 0
    %335 = vmatpush1.bf16.msra.mxu0 0
    %336 = vmatprep.mubr.bf16.mxu0 0
    %337 = vmatmul.mubr.bf16.gmra.mrb[0].mxu0 %v257
    %v338 = vpop.f32.mrb[0].mxu0
    %v339 = vadd.f32 %v149, %v338
    %v340 = vpop.f32.mrb[0].mxu0
    %v341 = vpop.f32.mrb[0].mxu0
    %v342 = vadd.f32 %v149, %v341
    %v343 = vpop.f32.mrb[0].mxu0
    %344 = vmatprep.mubr.bf16.mxu0 0
    %345 = vmatmul.mubr.bf16.gmra.mrb[0].mxu0 %v260
    %v346 = vpop.f32.mrb[0].mxu0
    %v347 = vadd.f32 %v149, %v346
    %v348 = vpop.f32.mrb[0].mxu0
    %v349 = vpop.f32.mrb[0].mxu0
    %v350 = vadd.f32 %v149, %v349
    %v351 = vpop.f32.mrb[0].mxu0
    %352 = vmatprep.mubr.bf16.mxu0 0
    %353 = vmatmul.mubr.bf16.gmra.mrb[0].mxu0 %v263
    %v354 = vpop.f32.mrb[0].mxu0
    %v355 = vadd.f32 %v149, %v354
    %v356 = vpop.f32.mrb[0].mxu0
    %v357 = vpop.f32.mrb[0].mxu0
    %v358 = vadd.f32 %v149, %v357
    %v359 = vpop.f32.mrb[0].mxu0
    %360 = vmatprep.mubr.bf16.mxu0 0
    %361 = vmatmul.mubr.bf16.gmra.mrb[0].mxu0 %v266
    %v362 = vpop.f32.mrb[0].mxu0
    %v363 = vadd.f32 %v149, %v362
    %v364 = vpop.f32.mrb[0].mxu0
    %v365 = vpop.f32.mrb[0].mxu0
    %v366 = vadd.f32 %v149, %v365
    %v367 = vpop.f32.mrb[0].mxu0
    %368 = vmatprep.mubr.bf16.mxu0 0
    %369 = vmatmul.mubr.bf16.gmra.mrb[0].mxu0 %v269
    %v370 = vpop.f32.mrb[0].mxu0
    %v371 = vadd.f32 %v149, %v370
    %v372 = vpop.f32.mrb[0].mxu0
    %v373 = vpop.f32.mrb[0].mxu0
    %v374 = vadd.f32 %v149, %v373
    %v375 = vpop.f32.mrb[0].mxu0
    %376 = vmatprep.mubr.bf16.mxu0 0
    %377 = vmatmul.mubr.bf16.gmra.mrb[0].mxu0 %v272
    %v378 = vpop.f32.mrb[0].mxu0
    %v379 = vadd.f32 %v149, %v378
    %v380 = vpop.f32.mrb[0].mxu0
    %v381 = vpop.f32.mrb[0].mxu0
    %v382 = vadd.f32 %v149, %v381
    %v383 = vpop.f32.mrb[0].mxu0
    %384 = vmatprep.mubr.bf16.mxu0 0
    %385 = vmatmul.mubr.bf16.gmra.mrb[0].mxu0 %v275
    %v386 = vpop.f32.mrb[0].mxu0
    %v387 = vadd.f32 %v149, %v386
    %v388 = vpop.f32.mrb[0].mxu0
    %v389 = vpop.f32.mrb[0].mxu0
    %v390 = vadd.f32 %v149, %v389
    %v391 = vpop.f32.mrb[0].mxu0
    %392 = vmatprep.mubr.bf16.mxu0 0
    %393 = vmatmul.mubr.bf16.gmra.mrb[0].mxu0 %v278
    %v394 = vpop.f32.mrb[0].mxu0
    %v395 = vadd.f32 %v149, %v394
    %v396 = vpop.f32.mrb[0].mxu0
    %v397 = vpop.f32.mrb[0].mxu0
    %v398 = vadd.f32 %v149, %v397
    %v399 = vpop.f32.mrb[0].mxu0
    %400 = vmatprep.mubr.bf16.mxu0 0
    %401 = vmatmul.mubr.bf16.gmra.mrb[0].mxu0 %v281
    %v402 = vpop.f32.mrb[0].mxu0
    %v403 = vadd.f32 %v149, %v402
    %v404 = vpop.f32.mrb[0].mxu0
    %v405 = vpop.f32.mrb[0].mxu0
    %v406 = vadd.f32 %v149, %v405
    %v407 = vpop.f32.mrb[0].mxu0
    %408 = vmatprep.mubr.bf16.mxu0 0
    %409 = vmatmul.mubr.bf16.gmra.mrb[0].mxu0 %v284
    %v410 = vpop.f32.mrb[0].mxu0
    %v411 = vadd.f32 %v149, %v410
    %v412 = vpop.f32.mrb[0].mxu0
    %v413 = vpop.f32.mrb[0].mxu0
    %v414 = vadd.f32 %v149, %v413
    %v415 = vpop.f32.mrb[0].mxu0
    %416 = vmatprep.mubr.bf16.mxu0 0
    %417 = vmatmul.mubr.bf16.gmra.mrb[0].mxu0 %v287
    %v418 = vpop.f32.mrb[0].mxu0
    %v419 = vadd.f32 %v149, %v418
    %v420 = vpop.f32.mrb[0].mxu0
    %v421 = vpop.f32.mrb[0].mxu0
    %v422 = vadd.f32 %v149, %v421
    %v423 = vpop.f32.mrb[0].mxu0
    %424 = vmatprep.mubr.bf16.mxu0 0
    %425 = vmatmul.mubr.bf16.gmra.mrb[0].mxu0 %v290
    %v426 = vpop.f32.mrb[0].mxu0
    %v427 = vadd.f32 %v149, %v426
    %v428 = vpop.f32.mrb[0].mxu0
    %v429 = vpop.f32.mrb[0].mxu0
    %v430 = vadd.f32 %v149, %v429
    %v431 = vpop.f32.mrb[0].mxu0
    %432 = vmatprep.mubr.bf16.mxu0 0
    %433 = vmatmul.mubr.bf16.gmra.mrb[0].mxu0 %v293
    %v434 = vpop.f32.mrb[0].mxu0
    %v435 = vadd.f32 %v149, %v434
    %v436 = vpop.f32.mrb[0].mxu0
    %v437 = vpop.f32.mrb[0].mxu0
    %v438 = vadd.f32 %v149, %v437
    %v439 = vpop.f32.mrb[0].mxu0
    %440 = vmatprep.mubr.bf16.mxu0 0
    %441 = vmatmul.mubr.bf16.gmra.mrb[0].mxu0 %v296
    %v442 = vpop.f32.mrb[0].mxu0
    %v443 = vadd.f32 %v149, %v442
    %v444 = vpop.f32.mrb[0].mxu0
    %v445 = vpop.f32.mrb[0].mxu0
    %v446 = vadd.f32 %v149, %v445
    %v447 = vpop.f32.mrb[0].mxu0
    %448 = vmatprep.mubr.bf16.mxu0 0
    %449 = vmatmul.mubr.bf16.gmra.mrb[0].mxu0 %v299
    %v450 = vpop.f32.mrb[0].mxu0
    %v451 = vadd.f32 %v149, %v450
    %v452 = vpop.f32.mrb[0].mxu0
    %v453 = vpop.f32.mrb[0].mxu0
    %v454 = vadd.f32 %v149, %v453
    %v455 = vpop.f32.mrb[0].mxu0
    %456 = vmatprep.mubr.bf16.mxu0 0
    %457 = vmatmul.mubr.bf16.gmra.mrb[0].mxu0 %v302
    %v458 = vpop.f32.mrb[0].mxu0
    %v459 = vadd.f32 %v149, %v458
    %v460 = vpop.f32.mrb[0].mxu0
    %v461 = vpop.f32.mrb[0].mxu0
    %v462 = vadd.f32 %v149, %v461
    %v463 = vpop.f32.mrb[0].mxu0
    %464 = vdwg.mxu0
    %v465 = vmax.f32 %v339, 0.0
    %v466 = vmax.f32 %v342, 0.0
    %v467 = vmax.f32 %v347, 0.0
    %v468 = vmax.f32 %v350, 0.0
    %v469 = vmax.f32 %v355, 0.0
    %v470 = vmax.f32 %v358, 0.0
    %v471 = vmax.f32 %v363, 0.0
    %v472 = vmax.f32 %v366, 0.0
    %v473 = vmax.f32 %v371, 0.0
    %v474 = vmax.f32 %v374, 0.0
    %v475 = vmax.f32 %v379, 0.0
    %v476 = vmax.f32 %v382, 0.0
    %v477 = vmax.f32 %v387, 0.0
    %v478 = vmax.f32 %v390, 0.0
    %v479 = vmax.f32 %v395, 0.0
    %v480 = vmax.f32 %v398, 0.0
    %v481 = vmax.f32 %v403, 0.0
    %v482 = vmax.f32 %v406, 0.0
    %v483 = vmax.f32 %v411, 0.0
    %v484 = vmax.f32 %v414, 0.0
    %v485 = vmax.f32 %v419, 0.0
    %v486 = vmax.f32 %v422, 0.0
    %v487 = vmax.f32 %v427, 0.0
    %v488 = vmax.f32 %v430, 0.0
    %v489 = vmax.f32 %v435, 0.0
    %v490 = vmax.f32 %v438, 0.0
    %v491 = vmax.f32 %v443, 0.0
    %v492 = vmax.f32 %v446, 0.0
    %v493 = vmax.f32 %v451, 0.0
    %v494 = vmax.f32 %v454, 0.0
    %v495 = vmax.f32 %v459, 0.0
    %v496 = vmax.f32 %v462, 0.0
    %v497 = vpack.c.bf16 %v466, %v465
    %v498 = vpack.c.bf16 %v468, %v467
    %v499 = vpack.c.bf16 %v470, %v469
    %v500 = vpack.c.bf16 %v472, %v471
    %v501 = vpack.c.bf16 %v474, %v473
    %v502 = vpack.c.bf16 %v476, %v475
    %v503 = vpack.c.bf16 %v478, %v477
    %v504 = vpack.c.bf16 %v480, %v479
    %v505 = vpack.c.bf16 %v482, %v481
    %v506 = vpack.c.bf16 %v484, %v483
    %v507 = vpack.c.bf16 %v486, %v485
    %v508 = vpack.c.bf16 %v488, %v487
    %v509 = vpack.c.bf16 %v490, %v489
    %v510 = vpack.c.bf16 %v492, %v491
    %v511 = vpack.c.bf16 %v494, %v493
    %v512 = vpack.c.bf16 %v496, %v495
    %v513 = vld [vmem:[%s3] sm:$0xff]
    %v514 = vld [vmem:[%s3 + $0x8] sm:$0xff]
    %v515 = vld [vmem:[%s3 + $0x10] sm:$0xff]
    %v516 = vld [vmem:[%s3 + $0x18] sm:$0xff]
    %v517 = vld [vmem:[%s3 + $0x20] sm:$0xff]
    %v518 = vld [vmem:[%s3 + $0x28] sm:$0xff]
    %v519 = vld [vmem:[%s3 + $0x30] sm:$0xff]
    %v520 = vld [vmem:[%s3 + $0x38] sm:$0xff]
    %v521 = vld [vmem:[%s3 + $0x40] sm:$0xff]
    %v522 = vld [vmem:[%s3 + $0x48] sm:$0xff]
    %v523 = vld [vmem:[%s3 + $0x50] sm:$0xff]
    %v524 = vld [vmem:[%s3 + $0x58] sm:$0xff]
    %v525 = vld [vmem:[%s3 + $0x60] sm:$0xff]
    %v526 = vld [vmem:[%s3 + $0x68] sm:$0xff]
    %v527 = vld [vmem:[%s3 + $0x70] sm:$0xff]
    %v528 = vld [vmem:[%s3 + $0x78] sm:$0xff]
    %v529 = vld [vmem:[%s4] sm:$0x3]
    %v531 = vlaneseq
    %v532 = vshrl.u32 %v531, 7
    %v533 = vsub.s32 0, %v532
    %v534 = vrot.slane %v529, %v533
    %v535 = vlaneseq
    %v536 = vshrl.u32 %v535, 7
    %v537 = vsub.s32 1, %v536
    %v538 = vrot.slane %v529, %v537
    %v557 = vunpack.c.l.b16 %v513
    %v558 = vunpack.c.h.b16 %v513
    %v559 = vunpack.c.l.b16 %v514
    %v560 = vunpack.c.h.b16 %v514
    %v561 = vunpack.c.l.b16 %v515
    %v562 = vunpack.c.h.b16 %v515
    %v563 = vunpack.c.l.b16 %v516
    %v564 = vunpack.c.h.b16 %v516
    %v565 = vunpack.c.l.b16 %v517
    %v566 = vunpack.c.h.b16 %v517
    %v567 = vunpack.c.l.b16 %v518
    %v568 = vunpack.c.h.b16 %v518
    %v569 = vunpack.c.l.b16 %v519
    %v570 = vunpack.c.h.b16 %v519
    %v571 = vunpack.c.l.b16 %v520
    %v572 = vunpack.c.h.b16 %v520
    %v573 = vunpack.c.l.b16 %v521
    %v574 = vunpack.c.h.b16 %v521
    %v575 = vunpack.c.l.b16 %v522
    %v576 = vunpack.c.h.b16 %v522
    %v577 = vunpack.c.l.b16 %v523
    %v578 = vunpack.c.h.b16 %v523
    %v579 = vunpack.c.l.b16 %v524
    %v580 = vunpack.c.h.b16 %v524
    %v581 = vunpack.c.l.b16 %v525
    %v582 = vunpack.c.h.b16 %v525
    %v583 = vunpack.c.l.b16 %v526
    %v584 = vunpack.c.h.b16 %v526
    %v585 = vunpack.c.l.b16 %v527
    %v586 = vunpack.c.h.b16 %v527
    %v587 = vunpack.c.l.b16 %v528
    %v588 = vunpack.c.h.b16 %v528
    %v589 = vpack.c.b16 %v559, %v557
    %v590 = vpack.c.b16 %v560, %v558
    %v591 = vpack.c.b16 %v563, %v561
    %v592 = vpack.c.b16 %v564, %v562
    %v593 = vpack.c.b16 %v567, %v565
    %v594 = vpack.c.b16 %v568, %v566
    %v595 = vpack.c.b16 %v571, %v569
    %v596 = vpack.c.b16 %v572, %v570
    %v597 = vpack.c.b16 %v575, %v573
    %v598 = vpack.c.b16 %v576, %v574
    %v599 = vpack.c.b16 %v579, %v577
    %v600 = vpack.c.b16 %v580, %v578
    %v601 = vpack.c.b16 %v583, %v581
    %v602 = vpack.c.b16 %v584, %v582
    %v603 = vpack.c.b16 %v587, %v585
    %v604 = vpack.c.b16 %v588, %v586
    %621 = vmatprep.subr.bf16.mxu0 %v590
    %622 = vmatpush1.bf16.msra.mxu0 %v589
    %623 = vmatprep.subr.bf16.mxu0 %v592
    %624 = vmatpush1.bf16.msra.mxu0 %v591
    %625 = vmatprep.subr.bf16.mxu0 %v594
    %626 = vmatpush1.bf16.msra.mxu0 %v593
    %627 = vmatprep.subr.bf16.mxu0 %v596
    %628 = vmatpush1.bf16.msra.mxu0 %v595
    %629 = vmatprep.subr.bf16.mxu0 %v598
    %630 = vmatpush1.bf16.msra.mxu0 %v597
    %631 = vmatprep.subr.bf16.mxu0 %v600
    %632 = vmatpush1.bf16.msra.mxu0 %v599
    %633 = vmatprep.subr.bf16.mxu0 %v602
    %634 = vmatpush1.bf16.msra.mxu0 %v601
    %635 = vmatprep.subr.bf16.mxu0 %v604
    %636 = vmatpush1.bf16.msra.mxu0 %v603
    %637 = vmatprep.subr.bf16.mxu0 0
    %638 = vmatpush1.bf16.msra.mxu0 0
    %639 = vmatprep.subr.bf16.mxu0 0
    %640 = vmatpush1.bf16.msra.mxu0 0
    %641 = vmatprep.subr.bf16.mxu0 0
    %642 = vmatpush1.bf16.msra.mxu0 0
    %643 = vmatprep.subr.bf16.mxu0 0
    %644 = vmatpush1.bf16.msra.mxu0 0
    %645 = vmatprep.subr.bf16.mxu0 0
    %646 = vmatpush1.bf16.msra.mxu0 0
    %647 = vmatprep.subr.bf16.mxu0 0
    %648 = vmatpush1.bf16.msra.mxu0 0
    %649 = vmatprep.subr.bf16.mxu0 0
    %650 = vmatpush1.bf16.msra.mxu0 0
    %651 = vmatprep.subr.bf16.mxu0 0
    %652 = vmatpush1.bf16.msra.mxu0 0
    %653 = vmatprep.mubr.bf16.mxu0 0
    %654 = vmatmul.mubr.bf16.gmra.mrb[0].mxu0 %v497
    %v655 = vpop.f32.mrb[0].mxu0
    %v656 = vadd.f32 %v534, %v655
    %v657 = vpop.f32.mrb[0].mxu0
    %v658 = vadd.f32 %v538, %v657
    %v659 = vpop.f32.mrb[0].mxu0
    %v660 = vadd.f32 %v534, %v659
    %v661 = vpop.f32.mrb[0].mxu0
    %v662 = vadd.f32 %v538, %v661
    %663 = vmatprep.mubr.bf16.mxu0 0
    %664 = vmatmul.mubr.bf16.gmra.mrb[0].mxu0 %v498
    %v665 = vpop.f32.mrb[0].mxu0
    %v666 = vadd.f32 %v534, %v665
    %v667 = vpop.f32.mrb[0].mxu0
    %v668 = vadd.f32 %v538, %v667
    %v669 = vpop.f32.mrb[0].mxu0
    %v670 = vadd.f32 %v534, %v669
    %v671 = vpop.f32.mrb[0].mxu0
    %v672 = vadd.f32 %v538, %v671
    %673 = vmatprep.mubr.bf16.mxu0 0
    %674 = vmatmul.mubr.bf16.gmra.mrb[0].mxu0 %v499
    %v675 = vpop.f32.mrb[0].mxu0
    %v676 = vadd.f32 %v534, %v675
    %v677 = vpop.f32.mrb[0].mxu0
    %v678 = vadd.f32 %v538, %v677
    %v679 = vpop.f32.mrb[0].mxu0
    %v680 = vadd.f32 %v534, %v679
    %v681 = vpop.f32.mrb[0].mxu0
    %v682 = vadd.f32 %v538, %v681
    %683 = vmatprep.mubr.bf16.mxu0 0
    %684 = vmatmul.mubr.bf16.gmra.mrb[0].mxu0 %v500
    %v685 = vpop.f32.mrb[0].mxu0
    %v686 = vadd.f32 %v534, %v685
    %v687 = vpop.f32.mrb[0].mxu0
    %v688 = vadd.f32 %v538, %v687
    %v689 = vpop.f32.mrb[0].mxu0
    %v690 = vadd.f32 %v534, %v689
    %v691 = vpop.f32.mrb[0].mxu0
    %v692 = vadd.f32 %v538, %v691
    %693 = vmatprep.mubr.bf16.mxu0 0
    %694 = vmatmul.mubr.bf16.gmra.mrb[0].mxu0 %v501
    %v695 = vpop.f32.mrb[0].mxu0
    %v696 = vadd.f32 %v534, %v695
    %v697 = vpop.f32.mrb[0].mxu0
    %v698 = vadd.f32 %v538, %v697
    %v699 = vpop.f32.mrb[0].mxu0
    %v700 = vadd.f32 %v534, %v699
    %v701 = vpop.f32.mrb[0].mxu0
    %v702 = vadd.f32 %v538, %v701
    %703 = vmatprep.mubr.bf16.mxu0 0
    %704 = vmatmul.mubr.bf16.gmra.mrb[0].mxu0 %v502
    %v705 = vpop.f32.mrb[0].mxu0
    %v706 = vadd.f32 %v534, %v705
    %v707 = vpop.f32.mrb[0].mxu0
    %v708 = vadd.f32 %v538, %v707
    %v709 = vpop.f32.mrb[0].mxu0
    %v710 = vadd.f32 %v534, %v709
    %v711 = vpop.f32.mrb[0].mxu0
    %v712 = vadd.f32 %v538, %v711
    %713 = vmatprep.mubr.bf16.mxu0 0
    %714 = vmatmul.mubr.bf16.gmra.mrb[0].mxu0 %v503
    %v715 = vpop.f32.mrb[0].mxu0
    %v716 = vadd.f32 %v534, %v715
    %v717 = vpop.f32.mrb[0].mxu0
    %v718 = vadd.f32 %v538, %v717
    %v719 = vpop.f32.mrb[0].mxu0
    %v720 = vadd.f32 %v534, %v719
    %v721 = vpop.f32.mrb[0].mxu0
    %v722 = vadd.f32 %v538, %v721
    %723 = vmatprep.mubr.bf16.mxu0 0
    %724 = vmatmul.mubr.bf16.gmra.mrb[0].mxu0 %v504
    %v725 = vpop.f32.mrb[0].mxu0
    %v726 = vadd.f32 %v534, %v725
    %v727 = vpop.f32.mrb[0].mxu0
    %v728 = vadd.f32 %v538, %v727
    %v729 = vpop.f32.mrb[0].mxu0
    %v730 = vadd.f32 %v534, %v729
    %v731 = vpop.f32.mrb[0].mxu0
    %v732 = vadd.f32 %v538, %v731
    %733 = vmatprep.mubr.bf16.mxu0 0
    %734 = vmatmul.mubr.bf16.gmra.mrb[0].mxu0 %v505
    %v735 = vpop.f32.mrb[0].mxu0
    %v736 = vadd.f32 %v534, %v735
    %v737 = vpop.f32.mrb[0].mxu0
    %v738 = vadd.f32 %v538, %v737
    %v739 = vpop.f32.mrb[0].mxu0
    %v740 = vadd.f32 %v534, %v739
    %v741 = vpop.f32.mrb[0].mxu0
    %v742 = vadd.f32 %v538, %v741
    %743 = vmatprep.mubr.bf16.mxu0 0
    %744 = vmatmul.mubr.bf16.gmra.mrb[0].mxu0 %v506
    %v745 = vpop.f32.mrb[0].mxu0
    %v746 = vadd.f32 %v534, %v745
    %v747 = vpop.f32.mrb[0].mxu0
    %v748 = vadd.f32 %v538, %v747
    %v749 = vpop.f32.mrb[0].mxu0
    %v750 = vadd.f32 %v534, %v749
    %v751 = vpop.f32.mrb[0].mxu0
    %v752 = vadd.f32 %v538, %v751
    %753 = vmatprep.mubr.bf16.mxu0 0
    %754 = vmatmul.mubr.bf16.gmra.mrb[0].mxu0 %v507
    %v755 = vpop.f32.mrb[0].mxu0
    %v756 = vadd.f32 %v534, %v755
    %v757 = vpop.f32.mrb[0].mxu0
    %v758 = vadd.f32 %v538, %v757
    %v759 = vpop.f32.mrb[0].mxu0
    %v760 = vadd.f32 %v534, %v759
    %v761 = vpop.f32.mrb[0].mxu0
    %v762 = vadd.f32 %v538, %v761
    %763 = vmatprep.mubr.bf16.mxu0 0
    %764 = vmatmul.mubr.bf16.gmra.mrb[0].mxu0 %v508
    %v765 = vpop.f32.mrb[0].mxu0
    %v766 = vadd.f32 %v534, %v765
    %v767 = vpop.f32.mrb[0].mxu0
    %v768 = vadd.f32 %v538, %v767
    %v769 = vpop.f32.mrb[0].mxu0
    %v770 = vadd.f32 %v534, %v769
    %v771 = vpop.f32.mrb[0].mxu0
    %v772 = vadd.f32 %v538, %v771
    %773 = vmatprep.mubr.bf16.mxu0 0
    %774 = vmatmul.mubr.bf16.gmra.mrb[0].mxu0 %v509
    %v775 = vpop.f32.mrb[0].mxu0
    %v776 = vadd.f32 %v534, %v775
    %v777 = vpop.f32.mrb[0].mxu0
    %v778 = vadd.f32 %v538, %v777
    %v779 = vpop.f32.mrb[0].mxu0
    %v780 = vadd.f32 %v534, %v779
    %v781 = vpop.f32.mrb[0].mxu0
    %v782 = vadd.f32 %v538, %v781
    %783 = vmatprep.mubr.bf16.mxu0 0
    %784 = vmatmul.mubr.bf16.gmra.mrb[0].mxu0 %v510
    %v785 = vpop.f32.mrb[0].mxu0
    %v786 = vadd.f32 %v534, %v785
    %v787 = vpop.f32.mrb[0].mxu0
    %v788 = vadd.f32 %v538, %v787
    %v789 = vpop.f32.mrb[0].mxu0
    %v790 = vadd.f32 %v534, %v789
    %v791 = vpop.f32.mrb[0].mxu0
    %v792 = vadd.f32 %v538, %v791
    %793 = vmatprep.mubr.bf16.mxu0 0
    %794 = vmatmul.mubr.bf16.gmra.mrb[0].mxu0 %v511
    %v795 = vpop.f32.mrb[0].mxu0
    %v796 = vadd.f32 %v534, %v795
    %v797 = vpop.f32.mrb[0].mxu0
    %v798 = vadd.f32 %v538, %v797
    %v799 = vpop.f32.mrb[0].mxu0
    %v800 = vadd.f32 %v534, %v799
    %v801 = vpop.f32.mrb[0].mxu0
    %v802 = vadd.f32 %v538, %v801
    %803 = vmatprep.mubr.bf16.mxu0 0
    %804 = vmatmul.mubr.bf16.gmra.mrb[0].mxu0 %v512
    %v805 = vpop.f32.mrb[0].mxu0
    %v806 = vadd.f32 %v534, %v805
    %v807 = vpop.f32.mrb[0].mxu0
    %v808 = vadd.f32 %v538, %v807
    %v809 = vpop.f32.mrb[0].mxu0
    %v810 = vadd.f32 %v534, %v809
    %v811 = vpop.f32.mrb[0].mxu0
    %v812 = vadd.f32 %v538, %v811
    %813 = vdwg.mxu0
    %v814 = vmax.f32 %v656, 0.0
    %v815 = vmax.f32 %v658, 0.0
    %v816 = vmax.f32 %v660, 0.0
    %v817 = vmax.f32 %v662, 0.0
    %v818 = vmax.f32 %v666, 0.0
    %v819 = vmax.f32 %v668, 0.0
    %v820 = vmax.f32 %v670, 0.0
    %v821 = vmax.f32 %v672, 0.0
    %v822 = vmax.f32 %v676, 0.0
    %v823 = vmax.f32 %v678, 0.0
    %v824 = vmax.f32 %v680, 0.0
    %v825 = vmax.f32 %v682, 0.0
    %v826 = vmax.f32 %v686, 0.0
    %v827 = vmax.f32 %v688, 0.0
    %v828 = vmax.f32 %v690, 0.0
    %v829 = vmax.f32 %v692, 0.0
    %v830 = vmax.f32 %v696, 0.0
    %v831 = vmax.f32 %v698, 0.0
    %v832 = vmax.f32 %v700, 0.0
    %v833 = vmax.f32 %v702, 0.0
    %v834 = vmax.f32 %v706, 0.0
    %v835 = vmax.f32 %v708, 0.0
    %v836 = vmax.f32 %v710, 0.0
    %v837 = vmax.f32 %v712, 0.0
    %v838 = vmax.f32 %v716, 0.0
    %v839 = vmax.f32 %v718, 0.0
    %v840 = vmax.f32 %v720, 0.0
    %v841 = vmax.f32 %v722, 0.0
    %v842 = vmax.f32 %v726, 0.0
    %v843 = vmax.f32 %v728, 0.0
    %v844 = vmax.f32 %v730, 0.0
    %v845 = vmax.f32 %v732, 0.0
    %v846 = vmax.f32 %v736, 0.0
    %v847 = vmax.f32 %v738, 0.0
    %v848 = vmax.f32 %v740, 0.0
    %v849 = vmax.f32 %v742, 0.0
    %v850 = vmax.f32 %v746, 0.0
    %v851 = vmax.f32 %v748, 0.0
    %v852 = vmax.f32 %v750, 0.0
    %v853 = vmax.f32 %v752, 0.0
    %v854 = vmax.f32 %v756, 0.0
    %v855 = vmax.f32 %v758, 0.0
    %v856 = vmax.f32 %v760, 0.0
    %v857 = vmax.f32 %v762, 0.0
    %v858 = vmax.f32 %v766, 0.0
    %v859 = vmax.f32 %v768, 0.0
    %v860 = vmax.f32 %v770, 0.0
    %v861 = vmax.f32 %v772, 0.0
    %v862 = vmax.f32 %v776, 0.0
    %v863 = vmax.f32 %v778, 0.0
    %v864 = vmax.f32 %v780, 0.0
    %v865 = vmax.f32 %v782, 0.0
    %v866 = vmax.f32 %v786, 0.0
    %v867 = vmax.f32 %v788, 0.0
    %v868 = vmax.f32 %v790, 0.0
    %v869 = vmax.f32 %v792, 0.0
    %v870 = vmax.f32 %v796, 0.0
    %v871 = vmax.f32 %v798, 0.0
    %v872 = vmax.f32 %v800, 0.0
    %v873 = vmax.f32 %v802, 0.0
    %v874 = vmax.f32 %v806, 0.0
    %v875 = vmax.f32 %v808, 0.0
    %v876 = vmax.f32 %v810, 0.0
    %v877 = vmax.f32 %v812, 0.0
    %v878 = vpack.c.bf16 %v816, %v814
    %v879 = vpack.c.bf16 %v817, %v815
    %v880 = vpack.c.bf16 %v820, %v818
    %v881 = vpack.c.bf16 %v821, %v819
    %v882 = vpack.c.bf16 %v824, %v822
    %v883 = vpack.c.bf16 %v825, %v823
    %v884 = vpack.c.bf16 %v828, %v826
    %v885 = vpack.c.bf16 %v829, %v827
    %v886 = vpack.c.bf16 %v832, %v830
    %v887 = vpack.c.bf16 %v833, %v831
    %v888 = vpack.c.bf16 %v836, %v834
    %v889 = vpack.c.bf16 %v837, %v835
    %v890 = vpack.c.bf16 %v840, %v838
    %v891 = vpack.c.bf16 %v841, %v839
    %v892 = vpack.c.bf16 %v844, %v842
    %v893 = vpack.c.bf16 %v845, %v843
    %v894 = vpack.c.bf16 %v848, %v846
    %v895 = vpack.c.bf16 %v849, %v847
    %v896 = vpack.c.bf16 %v852, %v850
    %v897 = vpack.c.bf16 %v853, %v851
    %v898 = vpack.c.bf16 %v856, %v854
    %v899 = vpack.c.bf16 %v857, %v855
    %v900 = vpack.c.bf16 %v860, %v858
    %v901 = vpack.c.bf16 %v861, %v859
    %v902 = vpack.c.bf16 %v864, %v862
    %v903 = vpack.c.bf16 %v865, %v863
    %v904 = vpack.c.bf16 %v868, %v866
    %v905 = vpack.c.bf16 %v869, %v867
    %v906 = vpack.c.bf16 %v872, %v870
    %v907 = vpack.c.bf16 %v873, %v871
    %v908 = vpack.c.bf16 %v876, %v874
    %v909 = vpack.c.bf16 %v877, %v875
    %v910 = vld [vmem:[#allocation3] sm:$0xff]
    %v911 = vld [vmem:[#allocation3 + $0x8] sm:$0xff]
    %v912 = vld [vmem:[#allocation3 + $0x10] sm:$0xff]
    %v913 = vld [vmem:[#allocation3 + $0x18] sm:$0xff]
    %v914 = vld [vmem:[#allocation3 + $0x20] sm:$0xff]
    %v915 = vld [vmem:[#allocation3 + $0x28] sm:$0xff]
    %v916 = vld [vmem:[#allocation3 + $0x30] sm:$0xff]
    %v917 = vld [vmem:[#allocation3 + $0x38] sm:$0xff]
    %v918 = vld [vmem:[#allocation3 + $0x40] sm:$0xff]
    %v919 = vld [vmem:[#allocation3 + $0x48] sm:$0xff]
    %v920 = vld [vmem:[#allocation3 + $0x50] sm:$0xff]
    %v921 = vld [vmem:[#allocation3 + $0x58] sm:$0xff]
    %v922 = vld [vmem:[#allocation3 + $0x60] sm:$0xff]
    %v923 = vld [vmem:[#allocation3 + $0x68] sm:$0xff]
    %v924 = vld [vmem:[#allocation3 + $0x70] sm:$0xff]
    %v925 = vld [vmem:[#allocation3 + $0x78] sm:$0xff]
    %v926 = vld [vmem:[#allocation3 + $0x80] sm:$0xff]
    %v927 = vld [vmem:[#allocation3 + $0x88] sm:$0xff]
    %v928 = vld [vmem:[#allocation3 + $0x90] sm:$0xff]
    %v929 = vld [vmem:[#allocation3 + $0x98] sm:$0xff]
    %v930 = vld [vmem:[#allocation3 + $0xa0] sm:$0xff]
    %v931 = vld [vmem:[#allocation3 + $0xa8] sm:$0xff]
    %v932 = vld [vmem:[#allocation3 + $0xb0] sm:$0xff]
    %v933 = vld [vmem:[#allocation3 + $0xb8] sm:$0xff]
    %v934 = vld [vmem:[#allocation3 + $0xc0] sm:$0xff]
    %v935 = vld [vmem:[#allocation3 + $0xc8] sm:$0xff]
    %v936 = vld [vmem:[#allocation3 + $0xd0] sm:$0xff]
    %v937 = vld [vmem:[#allocation3 + $0xd8] sm:$0xff]
    %v938 = vld [vmem:[#allocation3 + $0xe0] sm:$0xff]
    %v939 = vld [vmem:[#allocation3 + $0xe8] sm:$0xff]
    %v940 = vld [vmem:[#allocation3 + $0xf0] sm:$0xff]
    %v941 = vld [vmem:[#allocation3 + $0xf8] sm:$0xff]
    %v942 = vld [vmem:[%s6] sm:$0x3]
    %v944 = vlaneseq
    %v945 = vshrl.u32 %v944, 7
    %v946 = vsub.s32 0, %v945
    %v947 = vrot.slane %v942, %v946
    %v948 = vlaneseq
    %v949 = vshrl.u32 %v948, 7
    %v950 = vsub.s32 1, %v949
    %v951 = vrot.slane %v942, %v950
    %v986 = vunpack.c.l.b16 %v910
    %v987 = vunpack.c.h.b16 %v910
    %v988 = vunpack.c.l.b16 %v911
    %v989 = vunpack.c.h.b16 %v911
    %v990 = vunpack.c.l.b16 %v912
    %v991 = vunpack.c.h.b16 %v912
    %v992 = vunpack.c.l.b16 %v913
    %v993 = vunpack.c.h.b16 %v913
    %v994 = vunpack.c.l.b16 %v914
    %v995 = vunpack.c.h.b16 %v914
    %v996 = vunpack.c.l.b16 %v915
    %v997 = vunpack.c.h.b16 %v915
    %v998 = vunpack.c.l.b16 %v916
    %v999 = vunpack.c.h.b16 %v916
    %v1000 = vunpack.c.l.b16 %v917
    %v1001 = vunpack.c.h.b16 %v917
    %v1002 = vunpack.c.l.b16 %v918
    %v1003 = vunpack.c.h.b16 %v918
    %v1004 = vunpack.c.l.b16 %v919
    %v1005 = vunpack.c.h.b16 %v919
    %v1006 = vunpack.c.l.b16 %v920
    %v1007 = vunpack.c.h.b16 %v920
    %v1008 = vunpack.c.l.b16 %v921
    %v1009 = vunpack.c.h.b16 %v921
    %v1010 = vunpack.c.l.b16 %v922
    %v1011 = vunpack.c.h.b16 %v922
    %v1012 = vunpack.c.l.b16 %v923
    %v1013 = vunpack.c.h.b16 %v923
    %v1014 = vunpack.c.l.b16 %v924
    %v1015 = vunpack.c.h.b16 %v924
    %v1016 = vunpack.c.l.b16 %v925
    %v1017 = vunpack.c.h.b16 %v925
    %v1018 = vunpack.c.l.b16 %v926
    %v1019 = vunpack.c.h.b16 %v926
    %v1020 = vunpack.c.l.b16 %v927
    %v1021 = vunpack.c.h.b16 %v927
    %v1022 = vunpack.c.l.b16 %v928
    %v1023 = vunpack.c.h.b16 %v928
    %v1024 = vunpack.c.l.b16 %v929
    %v1025 = vunpack.c.h.b16 %v929
    %v1026 = vunpack.c.l.b16 %v930
    %v1027 = vunpack.c.h.b16 %v930
    %v1028 = vunpack.c.l.b16 %v931
    %v1029 = vunpack.c.h.b16 %v931
    %v1030 = vunpack.c.l.b16 %v932
    %v1031 = vunpack.c.h.b16 %v932
    %v1032 = vunpack.c.l.b16 %v933
    %v1033 = vunpack.c.h.b16 %v933
    %v1034 = vunpack.c.l.b16 %v934
    %v1035 = vunpack.c.h.b16 %v934
    %v1036 = vunpack.c.l.b16 %v935
    %v1037 = vunpack.c.h.b16 %v935
    %v1038 = vunpack.c.l.b16 %v936
    %v1039 = vunpack.c.h.b16 %v936
    %v1040 = vunpack.c.l.b16 %v937
    %v1041 = vunpack.c.h.b16 %v937
    %v1042 = vunpack.c.l.b16 %v938
    %v1043 = vunpack.c.h.b16 %v938
    %v1044 = vunpack.c.l.b16 %v939
    %v1045 = vunpack.c.h.b16 %v939
    %v1046 = vunpack.c.l.b16 %v940
    %v1047 = vunpack.c.h.b16 %v940
    %v1048 = vunpack.c.l.b16 %v941
    %v1049 = vunpack.c.h.b16 %v941
    %v1050 = vpack.c.b16 %v988, %v986
    %v1051 = vpack.c.b16 %v989, %v987
    %v1052 = vpack.c.b16 %v992, %v990
    %v1053 = vpack.c.b16 %v993, %v991
    %v1054 = vpack.c.b16 %v996, %v994
    %v1055 = vpack.c.b16 %v997, %v995
    %v1056 = vpack.c.b16 %v1000, %v998
    %v1057 = vpack.c.b16 %v1001, %v999
    %v1058 = vpack.c.b16 %v1004, %v1002
    %v1059 = vpack.c.b16 %v1005, %v1003
    %v1060 = vpack.c.b16 %v1008, %v1006
    %v1061 = vpack.c.b16 %v1009, %v1007
    %v1062 = vpack.c.b16 %v1012, %v1010
    %v1063 = vpack.c.b16 %v1013, %v1011
    %v1064 = vpack.c.b16 %v1016, %v1014
    %v1065 = vpack.c.b16 %v1017, %v1015
    %v1066 = vpack.c.b16 %v1020, %v1018
    %v1067 = vpack.c.b16 %v1021, %v1019
    %v1068 = vpack.c.b16 %v1024, %v1022
    %v1069 = vpack.c.b16 %v1025, %v1023
    %v1070 = vpack.c.b16 %v1028, %v1026
    %v1071 = vpack.c.b16 %v1029, %v1027
    %v1072 = vpack.c.b16 %v1032, %v1030
    %v1073 = vpack.c.b16 %v1033, %v1031
    %v1074 = vpack.c.b16 %v1036, %v1034
    %v1075 = vpack.c.b16 %v1037, %v1035
    %v1076 = vpack.c.b16 %v1040, %v1038
    %v1077 = vpack.c.b16 %v1041, %v1039
    %v1078 = vpack.c.b16 %v1044, %v1042
    %v1079 = vpack.c.b16 %v1045, %v1043
    %v1080 = vpack.c.b16 %v1048, %v1046
    %v1081 = vpack.c.b16 %v1049, %v1047
    %1114 = vmatprep.subr.bf16.mxu0 %v1051
    %1115 = vmatpush1.bf16.msra.mxu0 %v1050
    %1116 = vmatprep.subr.bf16.mxu0 %v1053
    %1117 = vmatpush1.bf16.msra.mxu0 %v1052
    %1118 = vmatprep.subr.bf16.mxu0 %v1055
    %1119 = vmatpush1.bf16.msra.mxu0 %v1054
    %1120 = vmatprep.subr.bf16.mxu0 %v1057
    %1121 = vmatpush1.bf16.msra.mxu0 %v1056
    %1122 = vmatprep.subr.bf16.mxu0 %v1059
    %1123 = vmatpush1.bf16.msra.mxu0 %v1058
    %1124 = vmatprep.subr.bf16.mxu0 %v1061
    %1125 = vmatpush1.bf16.msra.mxu0 %v1060
    %1126 = vmatprep.subr.bf16.mxu0 %v1063
    %1127 = vmatpush1.bf16.msra.mxu0 %v1062
    %1128 = vmatprep.subr.bf16.mxu0 %v1065
    %1129 = vmatpush1.bf16.msra.mxu0 %v1064
    %1130 = vmatprep.subr.bf16.mxu0 %v1067
    %1131 = vmatpush1.bf16.msra.mxu0 %v1066
    %1132 = vmatprep.subr.bf16.mxu0 %v1069
    %1133 = vmatpush1.bf16.msra.mxu0 %v1068
    %1134 = vmatprep.subr.bf16.mxu0 %v1071
    %1135 = vmatpush1.bf16.msra.mxu0 %v1070
    %1136 = vmatprep.subr.bf16.mxu0 %v1073
    %1137 = vmatpush1.bf16.msra.mxu0 %v1072
    %1138 = vmatprep.subr.bf16.mxu0 %v1075
    %1139 = vmatpush1.bf16.msra.mxu0 %v1074
    %1140 = vmatprep.subr.bf16.mxu0 %v1077
    %1141 = vmatpush1.bf16.msra.mxu0 %v1076
    %1142 = vmatprep.subr.bf16.mxu0 %v1079
    %1143 = vmatpush1.bf16.msra.mxu0 %v1078
    %1144 = vmatprep.subr.bf16.mxu0 %v1081
    %1145 = vmatpush1.bf16.msra.mxu0 %v1080
    %1146 = vmatprep.mubr.bf16.mxu0 %v879
    %1147 = vmatmul.mubr.bf16.gmra.mrb[0].mxu0 %v878
    %v1148 = vpop.f32.mrb[0].mxu0
    %v1149 = vadd.f32 %v947, %v1148
    %v1150 = vpop.f32.mrb[0].mxu0
    %v1151 = vadd.f32 %v951, %v1150
    %v1152 = vpop.f32.mrb[0].mxu0
    %v1153 = vadd.f32 %v947, %v1152
    %v1154 = vpop.f32.mrb[0].mxu0
    %v1155 = vadd.f32 %v951, %v1154
    %1156 = vmatprep.mubr.bf16.mxu0 %v881
    %1157 = vmatmul.mubr.bf16.gmra.mrb[0].mxu0 %v880
    %v1158 = vpop.f32.mrb[0].mxu0
    %v1159 = vadd.f32 %v947, %v1158
    %v1160 = vpop.f32.mrb[0].mxu0
    %v1161 = vadd.f32 %v951, %v1160
    %v1162 = vpop.f32.mrb[0].mxu0
    %v1163 = vadd.f32 %v947, %v1162
    %v1164 = vpop.f32.mrb[0].mxu0
    %v1165 = vadd.f32 %v951, %v1164
    %1166 = vmatprep.mubr.bf16.mxu0 %v883
    %1167 = vmatmul.mubr.bf16.gmra.mrb[0].mxu0 %v882
    %v1168 = vpop.f32.mrb[0].mxu0
    %v1169 = vadd.f32 %v947, %v1168
    %v1170 = vpop.f32.mrb[0].mxu0
    %v1171 = vadd.f32 %v951, %v1170
    %v1172 = vpop.f32.mrb[0].mxu0
    %v1173 = vadd.f32 %v947, %v1172
    %v1174 = vpop.f32.mrb[0].mxu0
    %v1175 = vadd.f32 %v951, %v1174
    %1176 = vmatprep.mubr.bf16.mxu0 %v885
    %1177 = vmatmul.mubr.bf16.gmra.mrb[0].mxu0 %v884
    %v1178 = vpop.f32.mrb[0].mxu0
    %v1179 = vadd.f32 %v947, %v1178
    %v1180 = vpop.f32.mrb[0].mxu0
    %v1181 = vadd.f32 %v951, %v1180
    %v1182 = vpop.f32.mrb[0].mxu0
    %v1183 = vadd.f32 %v947, %v1182
    %v1184 = vpop.f32.mrb[0].mxu0
    %v1185 = vadd.f32 %v951, %v1184
    %1186 = vmatprep.mubr.bf16.mxu0 %v887
    %1187 = vmatmul.mubr.bf16.gmra.mrb[0].mxu0 %v886
    %v1188 = vpop.f32.mrb[0].mxu0
    %v1189 = vadd.f32 %v947, %v1188
    %v1190 = vpop.f32.mrb[0].mxu0
    %v1191 = vadd.f32 %v951, %v1190
    %v1192 = vpop.f32.mrb[0].mxu0
    %v1193 = vadd.f32 %v947, %v1192
    %v1194 = vpop.f32.mrb[0].mxu0
    %v1195 = vadd.f32 %v951, %v1194
    %1196 = vmatprep.mubr.bf16.mxu0 %v889
    %1197 = vmatmul.mubr.bf16.gmra.mrb[0].mxu0 %v888
    %v1198 = vpop.f32.mrb[0].mxu0
    %v1199 = vadd.f32 %v947, %v1198
    %v1200 = vpop.f32.mrb[0].mxu0
    %v1201 = vadd.f32 %v951, %v1200
    %v1202 = vpop.f32.mrb[0].mxu0
    %v1203 = vadd.f32 %v947, %v1202
    %v1204 = vpop.f32.mrb[0].mxu0
    %v1205 = vadd.f32 %v951, %v1204
    %1206 = vmatprep.mubr.bf16.mxu0 %v891
    %1207 = vmatmul.mubr.bf16.gmra.mrb[0].mxu0 %v890
    %v1208 = vpop.f32.mrb[0].mxu0
    %v1209 = vadd.f32 %v947, %v1208
    %v1210 = vpop.f32.mrb[0].mxu0
    %v1211 = vadd.f32 %v951, %v1210
    %v1212 = vpop.f32.mrb[0].mxu0
    %v1213 = vadd.f32 %v947, %v1212
    %v1214 = vpop.f32.mrb[0].mxu0
    %v1215 = vadd.f32 %v951, %v1214
    %1216 = vmatprep.mubr.bf16.mxu0 %v893
    %1217 = vmatmul.mubr.bf16.gmra.mrb[0].mxu0 %v892
    %v1218 = vpop.f32.mrb[0].mxu0
    %v1219 = vadd.f32 %v947, %v1218
    %v1220 = vpop.f32.mrb[0].mxu0
    %v1221 = vadd.f32 %v951, %v1220
    %v1222 = vpop.f32.mrb[0].mxu0
    %v1223 = vadd.f32 %v947, %v1222
    %v1224 = vpop.f32.mrb[0].mxu0
    %v1225 = vadd.f32 %v951, %v1224
    %1226 = vmatprep.mubr.bf16.mxu0 %v895
    %1227 = vmatmul.mubr.bf16.gmra.mrb[0].mxu0 %v894
    %v1228 = vpop.f32.mrb[0].mxu0
    %v1229 = vadd.f32 %v947, %v1228
    %v1230 = vpop.f32.mrb[0].mxu0
    %v1231 = vadd.f32 %v951, %v1230
    %v1232 = vpop.f32.mrb[0].mxu0
    %v1233 = vadd.f32 %v947, %v1232
    %v1234 = vpop.f32.mrb[0].mxu0
    %v1235 = vadd.f32 %v951, %v1234
    %1236 = vmatprep.mubr.bf16.mxu0 %v897
    %1237 = vmatmul.mubr.bf16.gmra.mrb[0].mxu0 %v896
    %v1238 = vpop.f32.mrb[0].mxu0
    %v1239 = vadd.f32 %v947, %v1238
    %v1240 = vpop.f32.mrb[0].mxu0
    %v1241 = vadd.f32 %v951, %v1240
    %v1242 = vpop.f32.mrb[0].mxu0
    %v1243 = vadd.f32 %v947, %v1242
    %v1244 = vpop.f32.mrb[0].mxu0
    %v1245 = vadd.f32 %v951, %v1244
    %1246 = vmatprep.mubr.bf16.mxu0 %v899
    %1247 = vmatmul.mubr.bf16.gmra.mrb[0].mxu0 %v898
    %v1248 = vpop.f32.mrb[0].mxu0
    %v1249 = vadd.f32 %v947, %v1248
    %v1250 = vpop.f32.mrb[0].mxu0
    %v1251 = vadd.f32 %v951, %v1250
    %v1252 = vpop.f32.mrb[0].mxu0
    %v1253 = vadd.f32 %v947, %v1252
    %v1254 = vpop.f32.mrb[0].mxu0
    %v1255 = vadd.f32 %v951, %v1254
    %1256 = vmatprep.mubr.bf16.mxu0 %v901
    %1257 = vmatmul.mubr.bf16.gmra.mrb[0].mxu0 %v900
    %v1258 = vpop.f32.mrb[0].mxu0
    %v1259 = vadd.f32 %v947, %v1258
    %v1260 = vpop.f32.mrb[0].mxu0
    %v1261 = vadd.f32 %v951, %v1260
    %v1262 = vpop.f32.mrb[0].mxu0
    %v1263 = vadd.f32 %v947, %v1262
    %v1264 = vpop.f32.mrb[0].mxu0
    %v1265 = vadd.f32 %v951, %v1264
    %1266 = vmatprep.mubr.bf16.mxu0 %v903
    %1267 = vmatmul.mubr.bf16.gmra.mrb[0].mxu0 %v902
    %v1268 = vpop.f32.mrb[0].mxu0
    %v1269 = vadd.f32 %v947, %v1268
    %v1270 = vpop.f32.mrb[0].mxu0
    %v1271 = vadd.f32 %v951, %v1270
    %v1272 = vpop.f32.mrb[0].mxu0
    %v1273 = vadd.f32 %v947, %v1272
    %v1274 = vpop.f32.mrb[0].mxu0
    %v1275 = vadd.f32 %v951, %v1274
    %1276 = vmatprep.mubr.bf16.mxu0 %v905
    %1277 = vmatmul.mubr.bf16.gmra.mrb[0].mxu0 %v904
    %v1278 = vpop.f32.mrb[0].mxu0
    %v1279 = vadd.f32 %v947, %v1278
    %v1280 = vpop.f32.mrb[0].mxu0
    %v1281 = vadd.f32 %v951, %v1280
    %v1282 = vpop.f32.mrb[0].mxu0
    %v1283 = vadd.f32 %v947, %v1282
    %v1284 = vpop.f32.mrb[0].mxu0
    %v1285 = vadd.f32 %v951, %v1284
    %1286 = vmatprep.mubr.bf16.mxu0 %v907
    %1287 = vmatmul.mubr.bf16.gmra.mrb[0].mxu0 %v906
    %v1288 = vpop.f32.mrb[0].mxu0
    %v1289 = vadd.f32 %v947, %v1288
    %v1290 = vpop.f32.mrb[0].mxu0
    %v1291 = vadd.f32 %v951, %v1290
    %v1292 = vpop.f32.mrb[0].mxu0
    %v1293 = vadd.f32 %v947, %v1292
    %v1294 = vpop.f32.mrb[0].mxu0
    %v1295 = vadd.f32 %v951, %v1294
    %1296 = vmatprep.mubr.bf16.mxu0 %v909
    %1297 = vmatmul.mubr.bf16.gmra.mrb[0].mxu0 %v908
    %v1298 = vpop.f32.mrb[0].mxu0
    %v1299 = vadd.f32 %v947, %v1298
    %v1300 = vpop.f32.mrb[0].mxu0
    %v1301 = vadd.f32 %v951, %v1300
    %v1302 = vpop.f32.mrb[0].mxu0
    %v1303 = vadd.f32 %v947, %v1302
    %v1304 = vpop.f32.mrb[0].mxu0
    %v1305 = vadd.f32 %v951, %v1304
    %1306 = vdwg.mxu0
    %v1307 = vmax.f32 %v1149, 0.0
    %v1308 = vmax.f32 %v1151, 0.0
    %v1309 = vmax.f32 %v1153, 0.0
    %v1310 = vmax.f32 %v1155, 0.0
    %v1311 = vmax.f32 %v1159, 0.0
    %v1312 = vmax.f32 %v1161, 0.0
    %v1313 = vmax.f32 %v1163, 0.0
    %v1314 = vmax.f32 %v1165, 0.0
    %v1315 = vmax.f32 %v1169, 0.0
    %v1316 = vmax.f32 %v1171, 0.0
    %v1317 = vmax.f32 %v1173, 0.0
    %v1318 = vmax.f32 %v1175, 0.0
    %v1319 = vmax.f32 %v1179, 0.0
    %v1320 = vmax.f32 %v1181, 0.0
    %v1321 = vmax.f32 %v1183, 0.0
    %v1322 = vmax.f32 %v1185, 0.0
    %v1323 = vmax.f32 %v1189, 0.0
    %v1324 = vmax.f32 %v1191, 0.0
    %v1325 = vmax.f32 %v1193, 0.0
    %v1326 = vmax.f32 %v1195, 0.0
    %v1327 = vmax.f32 %v1199, 0.0
    %v1328 = vmax.f32 %v1201, 0.0
    %v1329 = vmax.f32 %v1203, 0.0
    %v1330 = vmax.f32 %v1205, 0.0
    %v1331 = vmax.f32 %v1209, 0.0
    %v1332 = vmax.f32 %v1211, 0.0
    %v1333 = vmax.f32 %v1213, 0.0
    %v1334 = vmax.f32 %v1215, 0.0
    %v1335 = vmax.f32 %v1219, 0.0
    %v1336 = vmax.f32 %v1221, 0.0
    %v1337 = vmax.f32 %v1223, 0.0
    %v1338 = vmax.f32 %v1225, 0.0
    %v1339 = vmax.f32 %v1229, 0.0
    %v1340 = vmax.f32 %v1231, 0.0
    %v1341 = vmax.f32 %v1233, 0.0
    %v1342 = vmax.f32 %v1235, 0.0
    %v1343 = vmax.f32 %v1239, 0.0
    %v1344 = vmax.f32 %v1241, 0.0
    %v1345 = vmax.f32 %v1243, 0.0
    %v1346 = vmax.f32 %v1245, 0.0
    %v1347 = vmax.f32 %v1249, 0.0
    %v1348 = vmax.f32 %v1251, 0.0
    %v1349 = vmax.f32 %v1253, 0.0
    %v1350 = vmax.f32 %v1255, 0.0
    %v1351 = vmax.f32 %v1259, 0.0
    %v1352 = vmax.f32 %v1261, 0.0
    %v1353 = vmax.f32 %v1263, 0.0
    %v1354 = vmax.f32 %v1265, 0.0
    %v1355 = vmax.f32 %v1269, 0.0
    %v1356 = vmax.f32 %v1271, 0.0
    %v1357 = vmax.f32 %v1273, 0.0
    %v1358 = vmax.f32 %v1275, 0.0
    %v1359 = vmax.f32 %v1279, 0.0
    %v1360 = vmax.f32 %v1281, 0.0
    %v1361 = vmax.f32 %v1283, 0.0
    %v1362 = vmax.f32 %v1285, 0.0
    %v1363 = vmax.f32 %v1289, 0.0
    %v1364 = vmax.f32 %v1291, 0.0
    %v1365 = vmax.f32 %v1293, 0.0
    %v1366 = vmax.f32 %v1295, 0.0
    %v1367 = vmax.f32 %v1299, 0.0
    %v1368 = vmax.f32 %v1301, 0.0
    %v1369 = vmax.f32 %v1303, 0.0
    %v1370 = vmax.f32 %v1305, 0.0
    %v1371 = vpack.c.bf16 %v1309, %v1307
    %v1372 = vpack.c.bf16 %v1310, %v1308
    %v1373 = vpack.c.bf16 %v1313, %v1311
    %v1374 = vpack.c.bf16 %v1314, %v1312
    %v1375 = vpack.c.bf16 %v1317, %v1315
    %v1376 = vpack.c.bf16 %v1318, %v1316
    %v1377 = vpack.c.bf16 %v1321, %v1319
    %v1378 = vpack.c.bf16 %v1322, %v1320
    %v1379 = vpack.c.bf16 %v1325, %v1323
    %v1380 = vpack.c.bf16 %v1326, %v1324
    %v1381 = vpack.c.bf16 %v1329, %v1327
    %v1382 = vpack.c.bf16 %v1330, %v1328
    %v1383 = vpack.c.bf16 %v1333, %v1331
    %v1384 = vpack.c.bf16 %v1334, %v1332
    %v1385 = vpack.c.bf16 %v1337, %v1335
    %v1386 = vpack.c.bf16 %v1338, %v1336
    %v1387 = vpack.c.bf16 %v1341, %v1339
    %v1388 = vpack.c.bf16 %v1342, %v1340
    %v1389 = vpack.c.bf16 %v1345, %v1343
    %v1390 = vpack.c.bf16 %v1346, %v1344
    %v1391 = vpack.c.bf16 %v1349, %v1347
    %v1392 = vpack.c.bf16 %v1350, %v1348
    %v1393 = vpack.c.bf16 %v1353, %v1351
    %v1394 = vpack.c.bf16 %v1354, %v1352
    %v1395 = vpack.c.bf16 %v1357, %v1355
    %v1396 = vpack.c.bf16 %v1358, %v1356
    %v1397 = vpack.c.bf16 %v1361, %v1359
    %v1398 = vpack.c.bf16 %v1362, %v1360
    %v1399 = vpack.c.bf16 %v1365, %v1363
    %v1400 = vpack.c.bf16 %v1366, %v1364
    %v1401 = vpack.c.bf16 %v1369, %v1367
    %v1402 = vpack.c.bf16 %v1370, %v1368
    %v1403 = vld [vmem:[#allocation6] sm:$0xff]
    %v1404 = vld [vmem:[#allocation6 + $0x8] sm:$0xff]
    %v1405 = vld [vmem:[#allocation6 + $0x10] sm:$0xff]
    %v1406 = vld [vmem:[#allocation6 + $0x18] sm:$0xff]
    %v1407 = vld [vmem:[#allocation6 + $0x20] sm:$0xff]
    %v1408 = vld [vmem:[#allocation6 + $0x28] sm:$0xff]
    %v1409 = vld [vmem:[#allocation6 + $0x30] sm:$0xff]
    %v1410 = vld [vmem:[#allocation6 + $0x38] sm:$0xff]
    %v1411 = vld [vmem:[#allocation6 + $0x40] sm:$0xff]
    %v1412 = vld [vmem:[#allocation6 + $0x48] sm:$0xff]
    %v1413 = vld [vmem:[#allocation6 + $0x50] sm:$0xff]
    %v1414 = vld [vmem:[#allocation6 + $0x58] sm:$0xff]
    %v1415 = vld [vmem:[#allocation6 + $0x60] sm:$0xff]
    %v1416 = vld [vmem:[#allocation6 + $0x68] sm:$0xff]
    %v1417 = vld [vmem:[#allocation6 + $0x70] sm:$0xff]
    %v1418 = vld [vmem:[#allocation6 + $0x78] sm:$0xff]
    %v1419 = vld [vmem:[#allocation6 + $0x80] sm:$0xff]
    %v1420 = vld [vmem:[#allocation6 + $0x88] sm:$0xff]
    %v1421 = vld [vmem:[#allocation6 + $0x90] sm:$0xff]
    %v1422 = vld [vmem:[#allocation6 + $0x98] sm:$0xff]
    %v1423 = vld [vmem:[#allocation6 + $0xa0] sm:$0xff]
    %v1424 = vld [vmem:[#allocation6 + $0xa8] sm:$0xff]
    %v1425 = vld [vmem:[#allocation6 + $0xb0] sm:$0xff]
    %v1426 = vld [vmem:[#allocation6 + $0xb8] sm:$0xff]
    %v1427 = vld [vmem:[#allocation6 + $0xc0] sm:$0xff]
    %v1428 = vld [vmem:[#allocation6 + $0xc8] sm:$0xff]
    %v1429 = vld [vmem:[#allocation6 + $0xd0] sm:$0xff]
    %v1430 = vld [vmem:[#allocation6 + $0xd8] sm:$0xff]
    %v1431 = vld [vmem:[#allocation6 + $0xe0] sm:$0xff]
    %v1432 = vld [vmem:[#allocation6 + $0xe8] sm:$0xff]
    %v1433 = vld [vmem:[#allocation6 + $0xf0] sm:$0xff]
    %v1434 = vld [vmem:[#allocation6 + $0xf8] sm:$0xff]
    %v1435 = vld [vmem:[#allocation6 + $0x100] sm:$0xff]
    %v1436 = vld [vmem:[#allocation6 + $0x108] sm:$0xff]
    %v1437 = vld [vmem:[#allocation6 + $0x110] sm:$0xff]
    %v1438 = vld [vmem:[#allocation6 + $0x118] sm:$0xff]
    %v1439 = vld [vmem:[#allocation6 + $0x120] sm:$0xff]
    %v1440 = vld [vmem:[#allocation6 + $0x128] sm:$0xff]
    %v1441 = vld [vmem:[#allocation6 + $0x130] sm:$0xff]
    %v1442 = vld [vmem:[#allocation6 + $0x138] sm:$0xff]
    %v1443 = vld [vmem:[#allocation6 + $0x140] sm:$0xff]
    %v1444 = vld [vmem:[#allocation6 + $0x148] sm:$0xff]
    %v1445 = vld [vmem:[#allocation6 + $0x150] sm:$0xff]
    %v1446 = vld [vmem:[#allocation6 + $0x158] sm:$0xff]
    %v1447 = vld [vmem:[#allocation6 + $0x160] sm:$0xff]
    %v1448 = vld [vmem:[#allocation6 + $0x168] sm:$0xff]
    %v1449 = vld [vmem:[#allocation6 + $0x170] sm:$0xff]
    %v1450 = vld [vmem:[#allocation6 + $0x178] sm:$0xff]
    %v1451 = vld [vmem:[#allocation6 + $0x180] sm:$0xff]
    %v1452 = vld [vmem:[#allocation6 + $0x188] sm:$0xff]
    %v1453 = vld [vmem:[#allocation6 + $0x190] sm:$0xff]
    %v1454 = vld [vmem:[#allocation6 + $0x198] sm:$0xff]
    %v1455 = vld [vmem:[#allocation6 + $0x1a0] sm:$0xff]
    %v1456 = vld [vmem:[#allocation6 + $0x1a8] sm:$0xff]
    %v1457 = vld [vmem:[#allocation6 + $0x1b0] sm:$0xff]
    %v1458 = vld [vmem:[#allocation6 + $0x1b8] sm:$0xff]
    %v1459 = vld [vmem:[#allocation6 + $0x1c0] sm:$0xff]
    %v1460 = vld [vmem:[#allocation6 + $0x1c8] sm:$0xff]
    %v1461 = vld [vmem:[#allocation6 + $0x1d0] sm:$0xff]
    %v1462 = vld [vmem:[#allocation6 + $0x1d8] sm:$0xff]
    %v1463 = vld [vmem:[#allocation6 + $0x1e0] sm:$0xff]
    %v1464 = vld [vmem:[#allocation6 + $0x1e8] sm:$0xff]
    %v1465 = vld [vmem:[#allocation6 + $0x1f0] sm:$0xff]
    %v1466 = vld [vmem:[#allocation6 + $0x1f8] sm:$0xff]
    %v1467 = vld [vmem:[%s8] sm:$0xf]
    %v1469 = vlaneseq
    %v1470 = vshrl.u32 %v1469, 7
    %v1471 = vsub.s32 0, %v1470
    %v1472 = vrot.slane %v1467, %v1471
    %v1473 = vlaneseq
    %v1474 = vshrl.u32 %v1473, 7
    %v1475 = vsub.s32 1, %v1474
    %v1476 = vrot.slane %v1467, %v1475
    %v1477 = vlaneseq
    %v1478 = vshrl.u32 %v1477, 7
    %v1479 = vsub.s32 2, %v1478
    %v1480 = vrot.slane %v1467, %v1479
    %v1481 = vlaneseq
    %v1482 = vshrl.u32 %v1481, 7
    %v1483 = vsub.s32 3, %v1482
    %v1484 = vrot.slane %v1467, %v1483
    %v1553 = vunpack.c.l.b16 %v1403
    %v1554 = vunpack.c.h.b16 %v1403
    %v1555 = vunpack.c.l.b16 %v1404
    %v1556 = vunpack.c.h.b16 %v1404
    %v1557 = vunpack.c.l.b16 %v1405
    %v1558 = vunpack.c.h.b16 %v1405
    %v1559 = vunpack.c.l.b16 %v1406
    %v1560 = vunpack.c.h.b16 %v1406
    %v1561 = vunpack.c.l.b16 %v1407
    %v1562 = vunpack.c.h.b16 %v1407
    %v1563 = vunpack.c.l.b16 %v1408
    %v1564 = vunpack.c.h.b16 %v1408
    %v1565 = vunpack.c.l.b16 %v1409
    %v1566 = vunpack.c.h.b16 %v1409
    %v1567 = vunpack.c.l.b16 %v1410
    %v1568 = vunpack.c.h.b16 %v1410
    %v1569 = vunpack.c.l.b16 %v1411
    %v1570 = vunpack.c.h.b16 %v1411
    %v1571 = vunpack.c.l.b16 %v1412
    %v1572 = vunpack.c.h.b16 %v1412
    %v1573 = vunpack.c.l.b16 %v1413
    %v1574 = vunpack.c.h.b16 %v1413
    %v1575 = vunpack.c.l.b16 %v1414
    %v1576 = vunpack.c.h.b16 %v1414
    %v1577 = vunpack.c.l.b16 %v1415
    %v1578 = vunpack.c.h.b16 %v1415
    %v1579 = vunpack.c.l.b16 %v1416
    %v1580 = vunpack.c.h.b16 %v1416
    %v1581 = vunpack.c.l.b16 %v1417
    %v1582 = vunpack.c.h.b16 %v1417
    %v1583 = vunpack.c.l.b16 %v1418
    %v1584 = vunpack.c.h.b16 %v1418
    %v1585 = vunpack.c.l.b16 %v1419
    %v1586 = vunpack.c.h.b16 %v1419
    %v1587 = vunpack.c.l.b16 %v1420
    %v1588 = vunpack.c.h.b16 %v1420
    %v1589 = vunpack.c.l.b16 %v1421
    %v1590 = vunpack.c.h.b16 %v1421
    %v1591 = vunpack.c.l.b16 %v1422
    %v1592 = vunpack.c.h.b16 %v1422
    %v1593 = vunpack.c.l.b16 %v1423
    %v1594 = vunpack.c.h.b16 %v1423
    %v1595 = vunpack.c.l.b16 %v1424
    %v1596 = vunpack.c.h.b16 %v1424
    %v1597 = vunpack.c.l.b16 %v1425
    %v1598 = vunpack.c.h.b16 %v1425
    %v1599 = vunpack.c.l.b16 %v1426
    %v1600 = vunpack.c.h.b16 %v1426
    %v1601 = vunpack.c.l.b16 %v1427
    %v1602 = vunpack.c.h.b16 %v1427
    %v1603 = vunpack.c.l.b16 %v1428
    %v1604 = vunpack.c.h.b16 %v1428
    %v1605 = vunpack.c.l.b16 %v1429
    %v1606 = vunpack.c.h.b16 %v1429
    %v1607 = vunpack.c.l.b16 %v1430
    %v1608 = vunpack.c.h.b16 %v1430
    %v1609 = vunpack.c.l.b16 %v1431
    %v1610 = vunpack.c.h.b16 %v1431
    %v1611 = vunpack.c.l.b16 %v1432
    %v1612 = vunpack.c.h.b16 %v1432
    %v1613 = vunpack.c.l.b16 %v1433
    %v1614 = vunpack.c.h.b16 %v1433
    %v1615 = vunpack.c.l.b16 %v1434
    %v1616 = vunpack.c.h.b16 %v1434
    %v1617 = vunpack.c.l.b16 %v1435
    %v1618 = vunpack.c.h.b16 %v1435
    %v1619 = vunpack.c.l.b16 %v1436
    %v1620 = vunpack.c.h.b16 %v1436
    %v1621 = vunpack.c.l.b16 %v1437
    %v1622 = vunpack.c.h.b16 %v1437
    %v1623 = vunpack.c.l.b16 %v1438
    %v1624 = vunpack.c.h.b16 %v1438
    %v1625 = vunpack.c.l.b16 %v1439
    %v1626 = vunpack.c.h.b16 %v1439
    %v1627 = vunpack.c.l.b16 %v1440
    %v1628 = vunpack.c.h.b16 %v1440
    %v1629 = vunpack.c.l.b16 %v1441
    %v1630 = vunpack.c.h.b16 %v1441
    %v1631 = vunpack.c.l.b16 %v1442
    %v1632 = vunpack.c.h.b16 %v1442
    %v1633 = vunpack.c.l.b16 %v1443
    %v1634 = vunpack.c.h.b16 %v1443
    %v1635 = vunpack.c.l.b16 %v1444
    %v1636 = vunpack.c.h.b16 %v1444
    %v1637 = vunpack.c.l.b16 %v1445
    %v1638 = vunpack.c.h.b16 %v1445
    %v1639 = vunpack.c.l.b16 %v1446
    %v1640 = vunpack.c.h.b16 %v1446
    %v1641 = vunpack.c.l.b16 %v1447
    %v1642 = vunpack.c.h.b16 %v1447
    %v1643 = vunpack.c.l.b16 %v1448
    %v1644 = vunpack.c.h.b16 %v1448
    %v1645 = vunpack.c.l.b16 %v1449
    %v1646 = vunpack.c.h.b16 %v1449
    %v1647 = vunpack.c.l.b16 %v1450
    %v1648 = vunpack.c.h.b16 %v1450
    %v1649 = vunpack.c.l.b16 %v1451
    %v1650 = vunpack.c.h.b16 %v1451
    %v1651 = vunpack.c.l.b16 %v1452
    %v1652 = vunpack.c.h.b16 %v1452
    %v1653 = vunpack.c.l.b16 %v1453
    %v1654 = vunpack.c.h.b16 %v1453
    %v1655 = vunpack.c.l.b16 %v1454
    %v1656 = vunpack.c.h.b16 %v1454
    %v1657 = vunpack.c.l.b16 %v1455
    %v1658 = vunpack.c.h.b16 %v1455
    %v1659 = vunpack.c.l.b16 %v1456
    %v1660 = vunpack.c.h.b16 %v1456
    %v1661 = vunpack.c.l.b16 %v1457
    %v1662 = vunpack.c.h.b16 %v1457
    %v1663 = vunpack.c.l.b16 %v1458
    %v1664 = vunpack.c.h.b16 %v1458
    %v1665 = vunpack.c.l.b16 %v1459
    %v1666 = vunpack.c.h.b16 %v1459
    %v1667 = vunpack.c.l.b16 %v1460
    %v1668 = vunpack.c.h.b16 %v1460
    %v1669 = vunpack.c.l.b16 %v1461
    %v1670 = vunpack.c.h.b16 %v1461
    %v1671 = vunpack.c.l.b16 %v1462
    %v1672 = vunpack.c.h.b16 %v1462
    %v1673 = vunpack.c.l.b16 %v1463
    %v1674 = vunpack.c.h.b16 %v1463
    %v1675 = vunpack.c.l.b16 %v1464
    %v1676 = vunpack.c.h.b16 %v1464
    %v1677 = vunpack.c.l.b16 %v1465
    %v1678 = vunpack.c.h.b16 %v1465
    %v1679 = vunpack.c.l.b16 %v1466
    %v1680 = vunpack.c.h.b16 %v1466
    %v1681 = vpack.c.b16 %v1557, %v1553
    %v1682 = vpack.c.b16 %v1558, %v1554
    %v1683 = vpack.c.b16 %v1559, %v1555
    %v1684 = vpack.c.b16 %v1560, %v1556
    %v1685 = vpack.c.b16 %v1565, %v1561
    %v1686 = vpack.c.b16 %v1566, %v1562
    %v1687 = vpack.c.b16 %v1567, %v1563
    %v1688 = vpack.c.b16 %v1568, %v1564
    %v1689 = vpack.c.b16 %v1573, %v1569
    %v1690 = vpack.c.b16 %v1574, %v1570
    %v1691 = vpack.c.b16 %v1575, %v1571
    %v1692 = vpack.c.b16 %v1576, %v1572
    %v1693 = vpack.c.b16 %v1581, %v1577
    %v1694 = vpack.c.b16 %v1582, %v1578
    %v1695 = vpack.c.b16 %v1583, %v1579
    %v1696 = vpack.c.b16 %v1584, %v1580
    %v1697 = vpack.c.b16 %v1589, %v1585
    %v1698 = vpack.c.b16 %v1590, %v1586
    %v1699 = vpack.c.b16 %v1591, %v1587
    %v1700 = vpack.c.b16 %v1592, %v1588
    %v1701 = vpack.c.b16 %v1597, %v1593
    %v1702 = vpack.c.b16 %v1598, %v1594
    %v1703 = vpack.c.b16 %v1599, %v1595
    %v1704 = vpack.c.b16 %v1600, %v1596
    %v1705 = vpack.c.b16 %v1605, %v1601
    %v1706 = vpack.c.b16 %v1606, %v1602
    %v1707 = vpack.c.b16 %v1607, %v1603
    %v1708 = vpack.c.b16 %v1608, %v1604
    %v1709 = vpack.c.b16 %v1613, %v1609
    %v1710 = vpack.c.b16 %v1614, %v1610
    %v1711 = vpack.c.b16 %v1615, %v1611
    %v1712 = vpack.c.b16 %v1616, %v1612
    %v1713 = vpack.c.b16 %v1621, %v1617
    %v1714 = vpack.c.b16 %v1622, %v1618
    %v1715 = vpack.c.b16 %v1623, %v1619
    %v1716 = vpack.c.b16 %v1624, %v1620
    %v1717 = vpack.c.b16 %v1629, %v1625
    %v1718 = vpack.c.b16 %v1630, %v1626
    %v1719 = vpack.c.b16 %v1631, %v1627
    %v1720 = vpack.c.b16 %v1632, %v1628
    %v1721 = vpack.c.b16 %v1637, %v1633
    %v1722 = vpack.c.b16 %v1638, %v1634
    %v1723 = vpack.c.b16 %v1639, %v1635
    %v1724 = vpack.c.b16 %v1640, %v1636
    %v1725 = vpack.c.b16 %v1645, %v1641
    %v1726 = vpack.c.b16 %v1646, %v1642
    %v1727 = vpack.c.b16 %v1647, %v1643
    %v1728 = vpack.c.b16 %v1648, %v1644
    %v1729 = vpack.c.b16 %v1653, %v1649
    %v1730 = vpack.c.b16 %v1654, %v1650
    %v1731 = vpack.c.b16 %v1655, %v1651
    %v1732 = vpack.c.b16 %v1656, %v1652
    %v1733 = vpack.c.b16 %v1661, %v1657
    %v1734 = vpack.c.b16 %v1662, %v1658
    %v1735 = vpack.c.b16 %v1663, %v1659
    %v1736 = vpack.c.b16 %v1664, %v1660
    %v1737 = vpack.c.b16 %v1669, %v1665
    %v1738 = vpack.c.b16 %v1670, %v1666
    %v1739 = vpack.c.b16 %v1671, %v1667
    %v1740 = vpack.c.b16 %v1672, %v1668
    %v1741 = vpack.c.b16 %v1677, %v1673
    %v1742 = vpack.c.b16 %v1678, %v1674
    %v1743 = vpack.c.b16 %v1679, %v1675
    %v1744 = vpack.c.b16 %v1680, %v1676
    %1809 = vmatprep.subr.bf16.mxu0 %v1682
    %1810 = vmatpush1.bf16.msra.mxu0 %v1681
    %1811 = vmatprep.subr.bf16.mxu0 %v1686
    %1812 = vmatpush1.bf16.msra.mxu0 %v1685
    %1813 = vmatprep.subr.bf16.mxu0 %v1690
    %1814 = vmatpush1.bf16.msra.mxu0 %v1689
    %1815 = vmatprep.subr.bf16.mxu0 %v1694
    %1816 = vmatpush1.bf16.msra.mxu0 %v1693
    %1817 = vmatprep.subr.bf16.mxu0 %v1698
    %1818 = vmatpush1.bf16.msra.mxu0 %v1697
    %1819 = vmatprep.subr.bf16.mxu0 %v1702
    %1820 = vmatpush1.bf16.msra.mxu0 %v1701
    %1821 = vmatprep.subr.bf16.mxu0 %v1706
    %1822 = vmatpush1.bf16.msra.mxu0 %v1705
    %1823 = vmatprep.subr.bf16.mxu0 %v1710
    %1824 = vmatpush1.bf16.msra.mxu0 %v1709
    %1825 = vmatprep.subr.bf16.mxu0 %v1714
    %1826 = vmatpush1.bf16.msra.mxu0 %v1713
    %1827 = vmatprep.subr.bf16.mxu0 %v1718
    %1828 = vmatpush1.bf16.msra.mxu0 %v1717
    %1829 = vmatprep.subr.bf16.mxu0 %v1722
    %1830 = vmatpush1.bf16.msra.mxu0 %v1721
    %1831 = vmatprep.subr.bf16.mxu0 %v1726
    %1832 = vmatpush1.bf16.msra.mxu0 %v1725
    %1833 = vmatprep.subr.bf16.mxu0 %v1730
    %1834 = vmatpush1.bf16.msra.mxu0 %v1729
    %1835 = vmatprep.subr.bf16.mxu0 %v1734
    %1836 = vmatpush1.bf16.msra.mxu0 %v1733
    %1837 = vmatprep.subr.bf16.mxu0 %v1738
    %1838 = vmatpush1.bf16.msra.mxu0 %v1737
    %1839 = vmatprep.subr.bf16.mxu0 %v1742
    %1840 = vmatpush1.bf16.msra.mxu0 %v1741
    %1841 = vmatprep.mubr.bf16.mxu0 %v1372
    %1842 = vmatmul.mubr.bf16.gmra.mrb[0].mxu0 %v1371
    %v1843 = vpop.f32.mrb[0].mxu0
    %v1844 = vadd.f32 %v1472, %v1843
    %v1845 = vpop.f32.mrb[0].mxu0
    %v1846 = vadd.f32 %v1476, %v1845
    %v1847 = vpop.f32.mrb[0].mxu0
    %v1848 = vadd.f32 %v1472, %v1847
    %v1849 = vpop.f32.mrb[0].mxu0
    %v1850 = vadd.f32 %v1476, %v1849
    %1851 = vmatprep.mubr.bf16.mxu0 %v1374
    %1852 = vmatmul.mubr.bf16.gmra.mrb[0].mxu0 %v1373
    %v1853 = vpop.f32.mrb[0].mxu0
    %v1854 = vadd.f32 %v1472, %v1853
    %v1855 = vpop.f32.mrb[0].mxu0
    %v1856 = vadd.f32 %v1476, %v1855
    %v1857 = vpop.f32.mrb[0].mxu0
    %v1858 = vadd.f32 %v1472, %v1857
    %v1859 = vpop.f32.mrb[0].mxu0
    %v1860 = vadd.f32 %v1476, %v1859
    %1861 = vmatprep.mubr.bf16.mxu0 %v1376
    %1862 = vmatmul.mubr.bf16.gmra.mrb[0].mxu0 %v1375
    %v1863 = vpop.f32.mrb[0].mxu0
    %v1864 = vadd.f32 %v1472, %v1863
    %v1865 = vpop.f32.mrb[0].mxu0
    %v1866 = vadd.f32 %v1476, %v1865
    %v1867 = vpop.f32.mrb[0].mxu0
    %v1868 = vadd.f32 %v1472, %v1867
    %v1869 = vpop.f32.mrb[0].mxu0
    %v1870 = vadd.f32 %v1476, %v1869
    %1871 = vmatprep.mubr.bf16.mxu0 %v1378
    %1872 = vmatmul.mubr.bf16.gmra.mrb[0].mxu0 %v1377
    %v1873 = vpop.f32.mrb[0].mxu0
    %v1874 = vadd.f32 %v1472, %v1873
    %v1875 = vpop.f32.mrb[0].mxu0
    %v1876 = vadd.f32 %v1476, %v1875
    %v1877 = vpop.f32.mrb[0].mxu0
    %v1878 = vadd.f32 %v1472, %v1877
    %v1879 = vpop.f32.mrb[0].mxu0
    %v1880 = vadd.f32 %v1476, %v1879
    %1881 = vmatprep.mubr.bf16.mxu0 %v1380
    %1882 = vmatmul.mubr.bf16.gmra.mrb[0].mxu0 %v1379
    %v1883 = vpop.f32.mrb[0].mxu0
    %v1884 = vadd.f32 %v1472, %v1883
    %v1885 = vpop.f32.mrb[0].mxu0
    %v1886 = vadd.f32 %v1476, %v1885
    %v1887 = vpop.f32.mrb[0].mxu0
    %v1888 = vadd.f32 %v1472, %v1887
    %v1889 = vpop.f32.mrb[0].mxu0
    %v1890 = vadd.f32 %v1476, %v1889
    %1891 = vmatprep.mubr.bf16.mxu0 %v1382
    %1892 = vmatmul.mubr.bf16.gmra.mrb[0].mxu0 %v1381
    %v1893 = vpop.f32.mrb[0].mxu0
    %v1894 = vadd.f32 %v1472, %v1893
    %v1895 = vpop.f32.mrb[0].mxu0
    %v1896 = vadd.f32 %v1476, %v1895
    %v1897 = vpop.f32.mrb[0].mxu0
    %v1898 = vadd.f32 %v1472, %v1897
    %v1899 = vpop.f32.mrb[0].mxu0
    %v1900 = vadd.f32 %v1476, %v1899
    %1901 = vmatprep.mubr.bf16.mxu0 %v1384
    %1902 = vmatmul.mubr.bf16.gmra.mrb[0].mxu0 %v1383
    %v1903 = vpop.f32.mrb[0].mxu0
    %v1904 = vadd.f32 %v1472, %v1903
    %v1905 = vpop.f32.mrb[0].mxu0
    %v1906 = vadd.f32 %v1476, %v1905
    %v1907 = vpop.f32.mrb[0].mxu0
    %v1908 = vadd.f32 %v1472, %v1907
    %v1909 = vpop.f32.mrb[0].mxu0
    %v1910 = vadd.f32 %v1476, %v1909
    %1911 = vmatprep.mubr.bf16.mxu0 %v1386
    %1912 = vmatmul.mubr.bf16.gmra.mrb[0].mxu0 %v1385
    %v1913 = vpop.f32.mrb[0].mxu0
    %v1914 = vadd.f32 %v1472, %v1913
    %v1915 = vpop.f32.mrb[0].mxu0
    %v1916 = vadd.f32 %v1476, %v1915
    %v1917 = vpop.f32.mrb[0].mxu0
    %v1918 = vadd.f32 %v1472, %v1917
    %v1919 = vpop.f32.mrb[0].mxu0
    %v1920 = vadd.f32 %v1476, %v1919
    %1921 = vmatprep.mubr.bf16.mxu0 %v1388
    %1922 = vmatmul.mubr.bf16.gmra.mrb[0].mxu0 %v1387
    %v1923 = vpop.f32.mrb[0].mxu0
    %v1924 = vadd.f32 %v1472, %v1923
    %v1925 = vpop.f32.mrb[0].mxu0
    %v1926 = vadd.f32 %v1476, %v1925
    %v1927 = vpop.f32.mrb[0].mxu0
    %v1928 = vadd.f32 %v1472, %v1927
    %v1929 = vpop.f32.mrb[0].mxu0
    %v1930 = vadd.f32 %v1476, %v1929
    %1931 = vmatprep.mubr.bf16.mxu0 %v1390
    %1932 = vmatmul.mubr.bf16.gmra.mrb[0].mxu0 %v1389
    %v1933 = vpop.f32.mrb[0].mxu0
    %v1934 = vadd.f32 %v1472, %v1933
    %v1935 = vpop.f32.mrb[0].mxu0
    %v1936 = vadd.f32 %v1476, %v1935
    %v1937 = vpop.f32.mrb[0].mxu0
    %v1938 = vadd.f32 %v1472, %v1937
    %v1939 = vpop.f32.mrb[0].mxu0
    %v1940 = vadd.f32 %v1476, %v1939
    %1941 = vmatprep.mubr.bf16.mxu0 %v1392
    %1942 = vmatmul.mubr.bf16.gmra.mrb[0].mxu0 %v1391
    %v1943 = vpop.f32.mrb[0].mxu0
    %v1944 = vadd.f32 %v1472, %v1943
    %v1945 = vpop.f32.mrb[0].mxu0
    %v1946 = vadd.f32 %v1476, %v1945
    %v1947 = vpop.f32.mrb[0].mxu0
    %v1948 = vadd.f32 %v1472, %v1947
    %v1949 = vpop.f32.mrb[0].mxu0
    %v1950 = vadd.f32 %v1476, %v1949
    %1951 = vmatprep.mubr.bf16.mxu0 %v1394
    %1952 = vmatmul.mubr.bf16.gmra.mrb[0].mxu0 %v1393
    %v1953 = vpop.f32.mrb[0].mxu0
    %v1954 = vadd.f32 %v1472, %v1953
    %v1955 = vpop.f32.mrb[0].mxu0
    %v1956 = vadd.f32 %v1476, %v1955
    %v1957 = vpop.f32.mrb[0].mxu0
    %v1958 = vadd.f32 %v1472, %v1957
    %v1959 = vpop.f32.mrb[0].mxu0
    %v1960 = vadd.f32 %v1476, %v1959
    %1961 = vmatprep.mubr.bf16.mxu0 %v1396
    %1962 = vmatmul.mubr.bf16.gmra.mrb[0].mxu0 %v1395
    %v1963 = vpop.f32.mrb[0].mxu0
    %v1964 = vadd.f32 %v1472, %v1963
    %v1965 = vpop.f32.mrb[0].mxu0
    %v1966 = vadd.f32 %v1476, %v1965
    %v1967 = vpop.f32.mrb[0].mxu0
    %v1968 = vadd.f32 %v1472, %v1967
    %v1969 = vpop.f32.mrb[0].mxu0
    %v1970 = vadd.f32 %v1476, %v1969
    %1971 = vmatprep.mubr.bf16.mxu0 %v1398
    %1972 = vmatmul.mubr.bf16.gmra.mrb[0].mxu0 %v1397
    %v1973 = vpop.f32.mrb[0].mxu0
    %v1974 = vadd.f32 %v1472, %v1973
    %v1975 = vpop.f32.mrb[0].mxu0
    %v1976 = vadd.f32 %v1476, %v1975
    %v1977 = vpop.f32.mrb[0].mxu0
    %v1978 = vadd.f32 %v1472, %v1977
    %v1979 = vpop.f32.mrb[0].mxu0
    %v1980 = vadd.f32 %v1476, %v1979
    %1981 = vmatprep.mubr.bf16.mxu0 %v1400
    %1982 = vmatmul.mubr.bf16.gmra.mrb[0].mxu0 %v1399
    %v1983 = vpop.f32.mrb[0].mxu0
    %v1984 = vadd.f32 %v1472, %v1983
    %v1985 = vpop.f32.mrb[0].mxu0
    %v1986 = vadd.f32 %v1476, %v1985
    %v1987 = vpop.f32.mrb[0].mxu0
    %v1988 = vadd.f32 %v1472, %v1987
    %v1989 = vpop.f32.mrb[0].mxu0
    %v1990 = vadd.f32 %v1476, %v1989
    %1991 = vmatprep.mubr.bf16.mxu0 %v1402
    %1992 = vmatmul.mubr.bf16.gmra.mrb[0].mxu0 %v1401
    %v1993 = vpop.f32.mrb[0].mxu0
    %v1994 = vadd.f32 %v1472, %v1993
    %v1995 = vpop.f32.mrb[0].mxu0
    %v1996 = vadd.f32 %v1476, %v1995
    %v1997 = vpop.f32.mrb[0].mxu0
    %v1998 = vadd.f32 %v1472, %v1997
    %v1999 = vpop.f32.mrb[0].mxu0
    %v2000 = vadd.f32 %v1476, %v1999
    %2001 = vdwg.mxu0
    %2002 = vmatprep.subr.bf16.mxu0 %v1684
    %2003 = vmatpush1.bf16.msra.mxu0 %v1683
    %2004 = vmatprep.subr.bf16.mxu0 %v1688
    %2005 = vmatpush1.bf16.msra.mxu0 %v1687
    %2006 = vmatprep.subr.bf16.mxu0 %v1692
    %2007 = vmatpush1.bf16.msra.mxu0 %v1691
    %2008 = vmatprep.subr.bf16.mxu0 %v1696
    %2009 = vmatpush1.bf16.msra.mxu0 %v1695
    %2010 = vmatprep.subr.bf16.mxu0 %v1700
    %2011 = vmatpush1.bf16.msra.mxu0 %v1699
    %2012 = vmatprep.subr.bf16.mxu0 %v1704
    %2013 = vmatpush1.bf16.msra.mxu0 %v1703
    %2014 = vmatprep.subr.bf16.mxu0 %v1708
    %2015 = vmatpush1.bf16.msra.mxu0 %v1707
    %2016 = vmatprep.subr.bf16.mxu0 %v1712
    %2017 = vmatpush1.bf16.msra.mxu0 %v1711
    %2018 = vmatprep.subr.bf16.mxu0 %v1716
    %2019 = vmatpush1.bf16.msra.mxu0 %v1715
    %2020 = vmatprep.subr.bf16.mxu0 %v1720
    %2021 = vmatpush1.bf16.msra.mxu0 %v1719
    %2022 = vmatprep.subr.bf16.mxu0 %v1724
    %2023 = vmatpush1.bf16.msra.mxu0 %v1723
    %2024 = vmatprep.subr.bf16.mxu0 %v1728
    %2025 = vmatpush1.bf16.msra.mxu0 %v1727
    %2026 = vmatprep.subr.bf16.mxu0 %v1732
    %2027 = vmatpush1.bf16.msra.mxu0 %v1731
    %2028 = vmatprep.subr.bf16.mxu0 %v1736
    %2029 = vmatpush1.bf16.msra.mxu0 %v1735
    %2030 = vmatprep.subr.bf16.mxu0 %v1740
    %2031 = vmatpush1.bf16.msra.mxu0 %v1739
    %2032 = vmatprep.subr.bf16.mxu0 %v1744
    %2033 = vmatpush1.bf16.msra.mxu0 %v1743
    %2034 = vmatprep.mubr.bf16.mxu0 %v1372
    %2035 = vmatmul.mubr.bf16.gmra.mrb[0].mxu0 %v1371
    %v2036 = vpop.f32.mrb[0].mxu0
    %v2037 = vadd.f32 %v1480, %v2036
    %v2038 = vpop.f32.mrb[0].mxu0
    %v2039 = vadd.f32 %v1484, %v2038
    %v2040 = vpop.f32.mrb[0].mxu0
    %v2041 = vadd.f32 %v1480, %v2040
    %v2042 = vpop.f32.mrb[0].mxu0
    %v2043 = vadd.f32 %v1484, %v2042
    %2044 = vmatprep.mubr.bf16.mxu0 %v1374
    %2045 = vmatmul.mubr.bf16.gmra.mrb[0].mxu0 %v1373
    %v2046 = vpop.f32.mrb[0].mxu0
    %v2047 = vadd.f32 %v1480, %v2046
    %v2048 = vpop.f32.mrb[0].mxu0
    %v2049 = vadd.f32 %v1484, %v2048
    %v2050 = vpop.f32.mrb[0].mxu0
    %v2051 = vadd.f32 %v1480, %v2050
    %v2052 = vpop.f32.mrb[0].mxu0
    %v2053 = vadd.f32 %v1484, %v2052
    %2054 = vmatprep.mubr.bf16.mxu0 %v1376
    %2055 = vmatmul.mubr.bf16.gmra.mrb[0].mxu0 %v1375
    %v2056 = vpop.f32.mrb[0].mxu0
    %v2057 = vadd.f32 %v1480, %v2056
    %v2058 = vpop.f32.mrb[0].mxu0
    %v2059 = vadd.f32 %v1484, %v2058
    %v2060 = vpop.f32.mrb[0].mxu0
    %v2061 = vadd.f32 %v1480, %v2060
    %v2062 = vpop.f32.mrb[0].mxu0
    %v2063 = vadd.f32 %v1484, %v2062
    %2064 = vmatprep.mubr.bf16.mxu0 %v1378
    %2065 = vmatmul.mubr.bf16.gmra.mrb[0].mxu0 %v1377
    %v2066 = vpop.f32.mrb[0].mxu0
    %v2067 = vadd.f32 %v1480, %v2066
    %v2068 = vpop.f32.mrb[0].mxu0
    %v2069 = vadd.f32 %v1484, %v2068
    %v2070 = vpop.f32.mrb[0].mxu0
    %v2071 = vadd.f32 %v1480, %v2070
    %v2072 = vpop.f32.mrb[0].mxu0
    %v2073 = vadd.f32 %v1484, %v2072
    %2074 = vmatprep.mubr.bf16.mxu0 %v1380
    %2075 = vmatmul.mubr.bf16.gmra.mrb[0].mxu0 %v1379
    %v2076 = vpop.f32.mrb[0].mxu0
    %v2077 = vadd.f32 %v1480, %v2076
    %v2078 = vpop.f32.mrb[0].mxu0
    %v2079 = vadd.f32 %v1484, %v2078
    %v2080 = vpop.f32.mrb[0].mxu0
    %v2081 = vadd.f32 %v1480, %v2080
    %v2082 = vpop.f32.mrb[0].mxu0
    %v2083 = vadd.f32 %v1484, %v2082
    %2084 = vmatprep.mubr.bf16.mxu0 %v1382
    %2085 = vmatmul.mubr.bf16.gmra.mrb[0].mxu0 %v1381
    %v2086 = vpop.f32.mrb[0].mxu0
    %v2087 = vadd.f32 %v1480, %v2086
    %v2088 = vpop.f32.mrb[0].mxu0
    %v2089 = vadd.f32 %v1484, %v2088
    %v2090 = vpop.f32.mrb[0].mxu0
    %v2091 = vadd.f32 %v1480, %v2090
    %v2092 = vpop.f32.mrb[0].mxu0
    %v2093 = vadd.f32 %v1484, %v2092
    %2094 = vmatprep.mubr.bf16.mxu0 %v1384
    %2095 = vmatmul.mubr.bf16.gmra.mrb[0].mxu0 %v1383
    %v2096 = vpop.f32.mrb[0].mxu0
    %v2097 = vadd.f32 %v1480, %v2096
    %v2098 = vpop.f32.mrb[0].mxu0
    %v2099 = vadd.f32 %v1484, %v2098
    %v2100 = vpop.f32.mrb[0].mxu0
    %v2101 = vadd.f32 %v1480, %v2100
    %v2102 = vpop.f32.mrb[0].mxu0
    %v2103 = vadd.f32 %v1484, %v2102
    %2104 = vmatprep.mubr.bf16.mxu0 %v1386
    %2105 = vmatmul.mubr.bf16.gmra.mrb[0].mxu0 %v1385
    %v2106 = vpop.f32.mrb[0].mxu0
    %v2107 = vadd.f32 %v1480, %v2106
    %v2108 = vpop.f32.mrb[0].mxu0
    %v2109 = vadd.f32 %v1484, %v2108
    %v2110 = vpop.f32.mrb[0].mxu0
    %v2111 = vadd.f32 %v1480, %v2110
    %v2112 = vpop.f32.mrb[0].mxu0
    %v2113 = vadd.f32 %v1484, %v2112
    %2114 = vmatprep.mubr.bf16.mxu0 %v1388
    %2115 = vmatmul.mubr.bf16.gmra.mrb[0].mxu0 %v1387
    %v2116 = vpop.f32.mrb[0].mxu0
    %v2117 = vadd.f32 %v1480, %v2116
    %v2118 = vpop.f32.mrb[0].mxu0
    %v2119 = vadd.f32 %v1484, %v2118
    %v2120 = vpop.f32.mrb[0].mxu0
    %v2121 = vadd.f32 %v1480, %v2120
    %v2122 = vpop.f32.mrb[0].mxu0
    %v2123 = vadd.f32 %v1484, %v2122
    %2124 = vmatprep.mubr.bf16.mxu0 %v1390
    %2125 = vmatmul.mubr.bf16.gmra.mrb[0].mxu0 %v1389
    %v2126 = vpop.f32.mrb[0].mxu0
    %v2127 = vadd.f32 %v1480, %v2126
    %v2128 = vpop.f32.mrb[0].mxu0
    %v2129 = vadd.f32 %v1484, %v2128
    %v2130 = vpop.f32.mrb[0].mxu0
    %v2131 = vadd.f32 %v1480, %v2130
    %v2132 = vpop.f32.mrb[0].mxu0
    %v2133 = vadd.f32 %v1484, %v2132
    %2134 = vmatprep.mubr.bf16.mxu0 %v1392
    %2135 = vmatmul.mubr.bf16.gmra.mrb[0].mxu0 %v1391
    %v2136 = vpop.f32.mrb[0].mxu0
    %v2137 = vadd.f32 %v1480, %v2136
    %v2138 = vpop.f32.mrb[0].mxu0
    %v2139 = vadd.f32 %v1484, %v2138
    %v2140 = vpop.f32.mrb[0].mxu0
    %v2141 = vadd.f32 %v1480, %v2140
    %v2142 = vpop.f32.mrb[0].mxu0
    %v2143 = vadd.f32 %v1484, %v2142
    %2144 = vmatprep.mubr.bf16.mxu0 %v1394
    %2145 = vmatmul.mubr.bf16.gmra.mrb[0].mxu0 %v1393
    %v2146 = vpop.f32.mrb[0].mxu0
    %v2147 = vadd.f32 %v1480, %v2146
    %v2148 = vpop.f32.mrb[0].mxu0
    %v2149 = vadd.f32 %v1484, %v2148
    %v2150 = vpop.f32.mrb[0].mxu0
    %v2151 = vadd.f32 %v1480, %v2150
    %v2152 = vpop.f32.mrb[0].mxu0
    %v2153 = vadd.f32 %v1484, %v2152
    %2154 = vmatprep.mubr.bf16.mxu0 %v1396
    %2155 = vmatmul.mubr.bf16.gmra.mrb[0].mxu0 %v1395
    %v2156 = vpop.f32.mrb[0].mxu0
    %v2157 = vadd.f32 %v1480, %v2156
    %v2158 = vpop.f32.mrb[0].mxu0
    %v2159 = vadd.f32 %v1484, %v2158
    %v2160 = vpop.f32.mrb[0].mxu0
    %v2161 = vadd.f32 %v1480, %v2160
    %v2162 = vpop.f32.mrb[0].mxu0
    %v2163 = vadd.f32 %v1484, %v2162
    %2164 = vmatprep.mubr.bf16.mxu0 %v1398
    %2165 = vmatmul.mubr.bf16.gmra.mrb[0].mxu0 %v1397
    %v2166 = vpop.f32.mrb[0].mxu0
    %v2167 = vadd.f32 %v1480, %v2166
    %v2168 = vpop.f32.mrb[0].mxu0
    %v2169 = vadd.f32 %v1484, %v2168
    %v2170 = vpop.f32.mrb[0].mxu0
    %v2171 = vadd.f32 %v1480, %v2170
    %v2172 = vpop.f32.mrb[0].mxu0
    %v2173 = vadd.f32 %v1484, %v2172
    %2174 = vmatprep.mubr.bf16.mxu0 %v1400
    %2175 = vmatmul.mubr.bf16.gmra.mrb[0].mxu0 %v1399
    %v2176 = vpop.f32.mrb[0].mxu0
    %v2177 = vadd.f32 %v1480, %v2176
    %v2178 = vpop.f32.mrb[0].mxu0
    %v2179 = vadd.f32 %v1484, %v2178
    %v2180 = vpop.f32.mrb[0].mxu0
    %v2181 = vadd.f32 %v1480, %v2180
    %v2182 = vpop.f32.mrb[0].mxu0
    %v2183 = vadd.f32 %v1484, %v2182
    %2184 = vmatprep.mubr.bf16.mxu0 %v1402
    %2185 = vmatmul.mubr.bf16.gmra.mrb[0].mxu0 %v1401
    %v2186 = vpop.f32.mrb[0].mxu0
    %v2187 = vadd.f32 %v1480, %v2186
    %v2188 = vpop.f32.mrb[0].mxu0
    %v2189 = vadd.f32 %v1484, %v2188
    %v2190 = vpop.f32.mrb[0].mxu0
    %v2191 = vadd.f32 %v1480, %v2190
    %v2192 = vpop.f32.mrb[0].mxu0
    %v2193 = vadd.f32 %v1484, %v2192
    %2194 = vdwg.mxu0
    %v2195 = vmax.f32 %v1844, 0.0
    %v2196 = vmax.f32 %v1846, 0.0
    %v2197 = vmax.f32 %v2037, 0.0
    %v2198 = vmax.f32 %v2039, 0.0
    %v2199 = vmax.f32 %v1848, 0.0
    %v2200 = vmax.f32 %v1850, 0.0
    %v2201 = vmax.f32 %v2041, 0.0
    %v2202 = vmax.f32 %v2043, 0.0
    %v2203 = vmax.f32 %v1854, 0.0
    %v2204 = vmax.f32 %v1856, 0.0
    %v2205 = vmax.f32 %v2047, 0.0
    %v2206 = vmax.f32 %v2049, 0.0
    %v2207 = vmax.f32 %v1858, 0.0
    %v2208 = vmax.f32 %v1860, 0.0
    %v2209 = vmax.f32 %v2051, 0.0
    %v2210 = vmax.f32 %v2053, 0.0
    %v2211 = vmax.f32 %v1864, 0.0
    %v2212 = vmax.f32 %v1866, 0.0
    %v2213 = vmax.f32 %v2057, 0.0
    %v2214 = vmax.f32 %v2059, 0.0
    %v2215 = vmax.f32 %v1868, 0.0
    %v2216 = vmax.f32 %v1870, 0.0
    %v2217 = vmax.f32 %v2061, 0.0
    %v2218 = vmax.f32 %v2063, 0.0
    %v2219 = vmax.f32 %v1874, 0.0
    %v2220 = vmax.f32 %v1876, 0.0
    %v2221 = vmax.f32 %v2067, 0.0
    %v2222 = vmax.f32 %v2069, 0.0
    %v2223 = vmax.f32 %v1878, 0.0
    %v2224 = vmax.f32 %v1880, 0.0
    %v2225 = vmax.f32 %v2071, 0.0
    %v2226 = vmax.f32 %v2073, 0.0
    %v2227 = vmax.f32 %v1884, 0.0
    %v2228 = vmax.f32 %v1886, 0.0
    %v2229 = vmax.f32 %v2077, 0.0
    %v2230 = vmax.f32 %v2079, 0.0
    %v2231 = vmax.f32 %v1888, 0.0
    %v2232 = vmax.f32 %v1890, 0.0
    %v2233 = vmax.f32 %v2081, 0.0
    %v2234 = vmax.f32 %v2083, 0.0
    %v2235 = vmax.f32 %v1894, 0.0
    %v2236 = vmax.f32 %v1896, 0.0
    %v2237 = vmax.f32 %v2087, 0.0
    %v2238 = vmax.f32 %v2089, 0.0
    %v2239 = vmax.f32 %v1898, 0.0
    %v2240 = vmax.f32 %v1900, 0.0
    %v2241 = vmax.f32 %v2091, 0.0
    %v2242 = vmax.f32 %v2093, 0.0
    %v2243 = vmax.f32 %v1904, 0.0
    %v2244 = vmax.f32 %v1906, 0.0
    %v2245 = vmax.f32 %v2097, 0.0
    %v2246 = vmax.f32 %v2099, 0.0
    %v2247 = vmax.f32 %v1908, 0.0
    %v2248 = vmax.f32 %v1910, 0.0
    %v2249 = vmax.f32 %v2101, 0.0
    %v2250 = vmax.f32 %v2103, 0.0
    %v2251 = vmax.f32 %v1914, 0.0
    %v2252 = vmax.f32 %v1916, 0.0
    %v2253 = vmax.f32 %v2107, 0.0
    %v2254 = vmax.f32 %v2109, 0.0
    %v2255 = vmax.f32 %v1918, 0.0
    %v2256 = vmax.f32 %v1920, 0.0
    %v2257 = vmax.f32 %v2111, 0.0
    %v2258 = vmax.f32 %v2113, 0.0
    %v2259 = vmax.f32 %v1924, 0.0
    %v2260 = vmax.f32 %v1926, 0.0
    %v2261 = vmax.f32 %v2117, 0.0
    %v2262 = vmax.f32 %v2119, 0.0
    %v2263 = vmax.f32 %v1928, 0.0
    %v2264 = vmax.f32 %v1930, 0.0
    %v2265 = vmax.f32 %v2121, 0.0
    %v2266 = vmax.f32 %v2123, 0.0
    %v2267 = vmax.f32 %v1934, 0.0
    %v2268 = vmax.f32 %v1936, 0.0
    %v2269 = vmax.f32 %v2127, 0.0
    %v2270 = vmax.f32 %v2129, 0.0
    %v2271 = vmax.f32 %v1938, 0.0
    %v2272 = vmax.f32 %v1940, 0.0
    %v2273 = vmax.f32 %v2131, 0.0
    %v2274 = vmax.f32 %v2133, 0.0
    %v2275 = vmax.f32 %v1944, 0.0
    %v2276 = vmax.f32 %v1946, 0.0
    %v2277 = vmax.f32 %v2137, 0.0
    %v2278 = vmax.f32 %v2139, 0.0
    %v2279 = vmax.f32 %v1948, 0.0
    %v2280 = vmax.f32 %v1950, 0.0
    %v2281 = vmax.f32 %v2141, 0.0
    %v2282 = vmax.f32 %v2143, 0.0
    %v2283 = vmax.f32 %v1954, 0.0
    %v2284 = vmax.f32 %v1956, 0.0
    %v2285 = vmax.f32 %v2147, 0.0
    %v2286 = vmax.f32 %v2149, 0.0
    %v2287 = vmax.f32 %v1958, 0.0
    %v2288 = vmax.f32 %v1960, 0.0
    %v2289 = vmax.f32 %v2151, 0.0
    %v2290 = vmax.f32 %v2153, 0.0
    %v2291 = vmax.f32 %v1964, 0.0
    %v2292 = vmax.f32 %v1966, 0.0
    %v2293 = vmax.f32 %v2157, 0.0
    %v2294 = vmax.f32 %v2159, 0.0
    %v2295 = vmax.f32 %v1968, 0.0
    %v2296 = vmax.f32 %v1970, 0.0
    %v2297 = vmax.f32 %v2161, 0.0
    %v2298 = vmax.f32 %v2163, 0.0
    %v2299 = vmax.f32 %v1974, 0.0
    %v2300 = vmax.f32 %v1976, 0.0
    %v2301 = vmax.f32 %v2167, 0.0
    %v2302 = vmax.f32 %v2169, 0.0
    %v2303 = vmax.f32 %v1978, 0.0
    %v2304 = vmax.f32 %v1980, 0.0
    %v2305 = vmax.f32 %v2171, 0.0
    %v2306 = vmax.f32 %v2173, 0.0
    %v2307 = vmax.f32 %v1984, 0.0
    %v2308 = vmax.f32 %v1986, 0.0
    %v2309 = vmax.f32 %v2177, 0.0
    %v2310 = vmax.f32 %v2179, 0.0
    %v2311 = vmax.f32 %v1988, 0.0
    %v2312 = vmax.f32 %v1990, 0.0
    %v2313 = vmax.f32 %v2181, 0.0
    %v2314 = vmax.f32 %v2183, 0.0
    %v2315 = vmax.f32 %v1994, 0.0
    %v2316 = vmax.f32 %v1996, 0.0
    %v2317 = vmax.f32 %v2187, 0.0
    %v2318 = vmax.f32 %v2189, 0.0
    %v2319 = vmax.f32 %v1998, 0.0
    %v2320 = vmax.f32 %v2000, 0.0
    %v2321 = vmax.f32 %v2191, 0.0
    %v2322 = vmax.f32 %v2193, 0.0
    %v2323 = vld [vmem:[%s9] sm:$0xf]
    %v2325 = vlaneseq
    %v2326 = vshrl.u32 %v2325, 7
    %v2327 = vsub.s32 0, %v2326
    %v2328 = vrot.slane %v2323, %v2327
    %v2329 = vlaneseq
    %v2330 = vshrl.u32 %v2329, 7
    %v2331 = vsub.s32 1, %v2330
    %v2332 = vrot.slane %v2323, %v2331
    %v2333 = vlaneseq
    %v2334 = vshrl.u32 %v2333, 7
    %v2335 = vsub.s32 2, %v2334
    %v2336 = vrot.slane %v2323, %v2335
    %v2337 = vlaneseq
    %v2338 = vshrl.u32 %v2337, 7
    %v2339 = vsub.s32 3, %v2338
    %v2340 = vrot.slane %v2323, %v2339
    %v2345 = vmul.f32 %v2195, %v2328
    %v2346 = vmul.f32 %v2196, %v2332
    %v2347 = vmul.f32 %v2197, %v2336
    %v2348 = vmul.f32 %v2198, %v2340
    %v2349 = vmul.f32 %v2199, %v2328
    %v2350 = vmul.f32 %v2200, %v2332
    %v2351 = vmul.f32 %v2201, %v2336
    %v2352 = vmul.f32 %v2202, %v2340
    %v2353 = vmul.f32 %v2203, %v2328
    %v2354 = vmul.f32 %v2204, %v2332
    %v2355 = vmul.f32 %v2205, %v2336
    %v2356 = vmul.f32 %v2206, %v2340
    %v2357 = vmul.f32 %v2207, %v2328
    %v2358 = vmul.f32 %v2208, %v2332
    %v2359 = vmul.f32 %v2209, %v2336
    %v2360 = vmul.f32 %v2210, %v2340
    %v2361 = vmul.f32 %v2211, %v2328
    %v2362 = vmul.f32 %v2212, %v2332
    %v2363 = vmul.f32 %v2213, %v2336
    %v2364 = vmul.f32 %v2214, %v2340
    %v2365 = vmul.f32 %v2215, %v2328
    %v2366 = vmul.f32 %v2216, %v2332
    %v2367 = vmul.f32 %v2217, %v2336
    %v2368 = vmul.f32 %v2218, %v2340
    %v2369 = vmul.f32 %v2219, %v2328
    %v2370 = vmul.f32 %v2220, %v2332
    %v2371 = vmul.f32 %v2221, %v2336
    %v2372 = vmul.f32 %v2222, %v2340
    %v2373 = vmul.f32 %v2223, %v2328
    %v2374 = vmul.f32 %v2224, %v2332
    %v2375 = vmul.f32 %v2225, %v2336
    %v2376 = vmul.f32 %v2226, %v2340
    %v2377 = vmul.f32 %v2227, %v2328
    %v2378 = vmul.f32 %v2228, %v2332
    %v2379 = vmul.f32 %v2229, %v2336
    %v2380 = vmul.f32 %v2230, %v2340
    %v2381 = vmul.f32 %v2231, %v2328
    %v2382 = vmul.f32 %v2232, %v2332
    %v2383 = vmul.f32 %v2233, %v2336
    %v2384 = vmul.f32 %v2234, %v2340
    %v2385 = vmul.f32 %v2235, %v2328
    %v2386 = vmul.f32 %v2236, %v2332
    %v2387 = vmul.f32 %v2237, %v2336
    %v2388 = vmul.f32 %v2238, %v2340
    %v2389 = vmul.f32 %v2239, %v2328
    %v2390 = vmul.f32 %v2240, %v2332
    %v2391 = vmul.f32 %v2241, %v2336
    %v2392 = vmul.f32 %v2242, %v2340
    %v2393 = vmul.f32 %v2243, %v2328
    %v2394 = vmul.f32 %v2244, %v2332
    %v2395 = vmul.f32 %v2245, %v2336
    %v2396 = vmul.f32 %v2246, %v2340
    %v2397 = vmul.f32 %v2247, %v2328
    %v2398 = vmul.f32 %v2248, %v2332
    %v2399 = vmul.f32 %v2249, %v2336
    %v2400 = vmul.f32 %v2250, %v2340
    %v2401 = vmul.f32 %v2251, %v2328
    %v2402 = vmul.f32 %v2252, %v2332
    %v2403 = vmul.f32 %v2253, %v2336
    %v2404 = vmul.f32 %v2254, %v2340
    %v2405 = vmul.f32 %v2255, %v2328
    %v2406 = vmul.f32 %v2256, %v2332
    %v2407 = vmul.f32 %v2257, %v2336
    %v2408 = vmul.f32 %v2258, %v2340
    %v2409 = vmul.f32 %v2259, %v2328
    %v2410 = vmul.f32 %v2260, %v2332
    %v2411 = vmul.f32 %v2261, %v2336
    %v2412 = vmul.f32 %v2262, %v2340
    %v2413 = vmul.f32 %v2263, %v2328
    %v2414 = vmul.f32 %v2264, %v2332
    %v2415 = vmul.f32 %v2265, %v2336
    %v2416 = vmul.f32 %v2266, %v2340
    %v2417 = vmul.f32 %v2267, %v2328
    %v2418 = vmul.f32 %v2268, %v2332
    %v2419 = vmul.f32 %v2269, %v2336
    %v2420 = vmul.f32 %v2270, %v2340
    %v2421 = vmul.f32 %v2271, %v2328
    %v2422 = vmul.f32 %v2272, %v2332
    %v2423 = vmul.f32 %v2273, %v2336
    %v2424 = vmul.f32 %v2274, %v2340
    %v2425 = vmul.f32 %v2275, %v2328
    %v2426 = vmul.f32 %v2276, %v2332
    %v2427 = vmul.f32 %v2277, %v2336
    %v2428 = vmul.f32 %v2278, %v2340
    %v2429 = vmul.f32 %v2279, %v2328
    %v2430 = vmul.f32 %v2280, %v2332
    %v2431 = vmul.f32 %v2281, %v2336
    %v2432 = vmul.f32 %v2282, %v2340
    %v2433 = vmul.f32 %v2283, %v2328
    %v2434 = vmul.f32 %v2284, %v2332
    %v2435 = vmul.f32 %v2285, %v2336
    %v2436 = vmul.f32 %v2286, %v2340
    %v2437 = vmul.f32 %v2287, %v2328
    %v2438 = vmul.f32 %v2288, %v2332
    %v2439 = vmul.f32 %v2289, %v2336
    %v2440 = vmul.f32 %v2290, %v2340
    %v2441 = vmul.f32 %v2291, %v2328
    %v2442 = vmul.f32 %v2292, %v2332
    %v2443 = vmul.f32 %v2293, %v2336
    %v2444 = vmul.f32 %v2294, %v2340
    %v2445 = vmul.f32 %v2295, %v2328
    %v2446 = vmul.f32 %v2296, %v2332
    %v2447 = vmul.f32 %v2297, %v2336
    %v2448 = vmul.f32 %v2298, %v2340
    %v2449 = vmul.f32 %v2299, %v2328
    %v2450 = vmul.f32 %v2300, %v2332
    %v2451 = vmul.f32 %v2301, %v2336
    %v2452 = vmul.f32 %v2302, %v2340
    %v2453 = vmul.f32 %v2303, %v2328
    %v2454 = vmul.f32 %v2304, %v2332
    %v2455 = vmul.f32 %v2305, %v2336
    %v2456 = vmul.f32 %v2306, %v2340
    %v2457 = vmul.f32 %v2307, %v2328
    %v2458 = vmul.f32 %v2308, %v2332
    %v2459 = vmul.f32 %v2309, %v2336
    %v2460 = vmul.f32 %v2310, %v2340
    %v2461 = vmul.f32 %v2311, %v2328
    %v2462 = vmul.f32 %v2312, %v2332
    %v2463 = vmul.f32 %v2313, %v2336
    %v2464 = vmul.f32 %v2314, %v2340
    %v2465 = vmul.f32 %v2315, %v2328
    %v2466 = vmul.f32 %v2316, %v2332
    %v2467 = vmul.f32 %v2317, %v2336
    %v2468 = vmul.f32 %v2318, %v2340
    %v2469 = vmul.f32 %v2319, %v2328
    %v2470 = vmul.f32 %v2320, %v2332
    %v2471 = vmul.f32 %v2321, %v2336
    %v2472 = vmul.f32 %v2322, %v2340
    %v2473 = vmax.f32 %v2345, %v2349
    %v2474 = vmax.f32 %v2473, %v2353
    %v2475 = vmax.f32 %v2474, %v2357
    %v2476 = vmax.f32 %v2475, %v2361
    %v2477 = vmax.f32 %v2476, %v2365
    %v2478 = vmax.f32 %v2477, %v2369
    %v2479 = vmax.f32 %v2478, %v2373
    %v2480 = vmax.f32 %v2479, %v2377
    %v2481 = vmax.f32 %v2480, %v2381
    %v2482 = vmax.f32 %v2481, %v2385
    %v2483 = vmax.f32 %v2482, %v2389
    %v2484 = vmax.f32 %v2483, %v2393
    %v2485 = vmax.f32 %v2484, %v2397
    %v2486 = vmax.f32 %v2485, %v2401
    %v2487 = vmax.f32 %v2486, %v2405
    %v2488 = vrot.slane %v2487, 4
    %v2489 = vmax.f32 %v2487, %v2488
    %v2490 = vrot.slane %v2489, 2
    %v2491 = vmax.f32 %v2489, %v2490
    %v2492 = vrot.slane %v2491, 1
    %v2493 = vmax.f32 %v2491, %v2492
    %v2494 = vmax.f32 %v2346, %v2350
    %v2495 = vmax.f32 %v2494, %v2354
    %v2496 = vmax.f32 %v2495, %v2358
    %v2497 = vmax.f32 %v2496, %v2362
    %v2498 = vmax.f32 %v2497, %v2366
    %v2499 = vmax.f32 %v2498, %v2370
    %v2500 = vmax.f32 %v2499, %v2374
    %v2501 = vmax.f32 %v2500, %v2378
    %v2502 = vmax.f32 %v2501, %v2382
    %v2503 = vmax.f32 %v2502, %v2386
    %v2504 = vmax.f32 %v2503, %v2390
    %v2505 = vmax.f32 %v2504, %v2394
    %v2506 = vmax.f32 %v2505, %v2398
    %v2507 = vmax.f32 %v2506, %v2402
    %v2508 = vmax.f32 %v2507, %v2406
    %v2509 = vrot.slane %v2508, 4
    %v2510 = vmax.f32 %v2508, %v2509
    %v2511 = vrot.slane %v2510, 2
    %v2512 = vmax.f32 %v2510, %v2511
    %v2513 = vrot.slane %v2512, 1
    %v2514 = vmax.f32 %v2512, %v2513
    %v2515 = vmax.f32 %v2347, %v2351
    %v2516 = vmax.f32 %v2515, %v2355
    %v2517 = vmax.f32 %v2516, %v2359
    %v2518 = vmax.f32 %v2517, %v2363
    %v2519 = vmax.f32 %v2518, %v2367
    %v2520 = vmax.f32 %v2519, %v2371
    %v2521 = vmax.f32 %v2520, %v2375
    %v2522 = vmax.f32 %v2521, %v2379
    %v2523 = vmax.f32 %v2522, %v2383
    %v2524 = vmax.f32 %v2523, %v2387
    %v2525 = vmax.f32 %v2524, %v2391
    %v2526 = vmax.f32 %v2525, %v2395
    %v2527 = vmax.f32 %v2526, %v2399
    %v2528 = vmax.f32 %v2527, %v2403
    %v2529 = vmax.f32 %v2528, %v2407
    %v2530 = vrot.slane %v2529, 4
    %v2531 = vmax.f32 %v2529, %v2530
    %v2532 = vrot.slane %v2531, 2
    %v2533 = vmax.f32 %v2531, %v2532
    %v2534 = vrot.slane %v2533, 1
    %v2535 = vmax.f32 %v2533, %v2534
    %v2536 = vmax.f32 %v2348, %v2352
    %v2537 = vmax.f32 %v2536, %v2356
    %v2538 = vmax.f32 %v2537, %v2360
    %v2539 = vmax.f32 %v2538, %v2364
    %v2540 = vmax.f32 %v2539, %v2368
    %v2541 = vmax.f32 %v2540, %v2372
    %v2542 = vmax.f32 %v2541, %v2376
    %v2543 = vmax.f32 %v2542, %v2380
    %v2544 = vmax.f32 %v2543, %v2384
    %v2545 = vmax.f32 %v2544, %v2388
    %v2546 = vmax.f32 %v2545, %v2392
    %v2547 = vmax.f32 %v2546, %v2396
    %v2548 = vmax.f32 %v2547, %v2400
    %v2549 = vmax.f32 %v2548, %v2404
    %v2550 = vmax.f32 %v2549, %v2408
    %v2551 = vrot.slane %v2550, 4
    %v2552 = vmax.f32 %v2550, %v2551
    %v2553 = vrot.slane %v2552, 2
    %v2554 = vmax.f32 %v2552, %v2553
    %v2555 = vrot.slane %v2554, 1
    %v2556 = vmax.f32 %v2554, %v2555
    %v2557 = vmax.f32 %v2409, %v2413
    %v2558 = vmax.f32 %v2557, %v2417
    %v2559 = vmax.f32 %v2558, %v2421
    %v2560 = vmax.f32 %v2559, %v2425
    %v2561 = vmax.f32 %v2560, %v2429
    %v2562 = vmax.f32 %v2561, %v2433
    %v2563 = vmax.f32 %v2562, %v2437
    %v2564 = vmax.f32 %v2563, %v2441
    %v2565 = vmax.f32 %v2564, %v2445
    %v2566 = vmax.f32 %v2565, %v2449
    %v2567 = vmax.f32 %v2566, %v2453
    %v2568 = vmax.f32 %v2567, %v2457
    %v2569 = vmax.f32 %v2568, %v2461
    %v2570 = vmax.f32 %v2569, %v2465
    %v2571 = vmax.f32 %v2570, %v2469
    %v2572 = vrot.slane %v2571, 4
    %v2573 = vmax.f32 %v2571, %v2572
    %v2574 = vrot.slane %v2573, 2
    %v2575 = vmax.f32 %v2573, %v2574
    %v2576 = vrot.slane %v2575, 1
    %v2577 = vmax.f32 %v2575, %v2576
    %v2578 = vmax.f32 %v2410, %v2414
    %v2579 = vmax.f32 %v2578, %v2418
    %v2580 = vmax.f32 %v2579, %v2422
    %v2581 = vmax.f32 %v2580, %v2426
    %v2582 = vmax.f32 %v2581, %v2430
    %v2583 = vmax.f32 %v2582, %v2434
    %v2584 = vmax.f32 %v2583, %v2438
    %v2585 = vmax.f32 %v2584, %v2442
    %v2586 = vmax.f32 %v2585, %v2446
    %v2587 = vmax.f32 %v2586, %v2450
    %v2588 = vmax.f32 %v2587, %v2454
    %v2589 = vmax.f32 %v2588, %v2458
    %v2590 = vmax.f32 %v2589, %v2462
    %v2591 = vmax.f32 %v2590, %v2466
    %v2592 = vmax.f32 %v2591, %v2470
    %v2593 = vrot.slane %v2592, 4
    %v2594 = vmax.f32 %v2592, %v2593
    %v2595 = vrot.slane %v2594, 2
    %v2596 = vmax.f32 %v2594, %v2595
    %v2597 = vrot.slane %v2596, 1
    %v2598 = vmax.f32 %v2596, %v2597
    %v2599 = vmax.f32 %v2411, %v2415
    %v2600 = vmax.f32 %v2599, %v2419
    %v2601 = vmax.f32 %v2600, %v2423
    %v2602 = vmax.f32 %v2601, %v2427
    %v2603 = vmax.f32 %v2602, %v2431
    %v2604 = vmax.f32 %v2603, %v2435
    %v2605 = vmax.f32 %v2604, %v2439
    %v2606 = vmax.f32 %v2605, %v2443
    %v2607 = vmax.f32 %v2606, %v2447
    %v2608 = vmax.f32 %v2607, %v2451
    %v2609 = vmax.f32 %v2608, %v2455
    %v2610 = vmax.f32 %v2609, %v2459
    %v2611 = vmax.f32 %v2610, %v2463
    %v2612 = vmax.f32 %v2611, %v2467
    %v2613 = vmax.f32 %v2612, %v2471
    %v2614 = vrot.slane %v2613, 4
    %v2615 = vmax.f32 %v2613, %v2614
    %v2616 = vrot.slane %v2615, 2
    %v2617 = vmax.f32 %v2615, %v2616
    %v2618 = vrot.slane %v2617, 1
    %v2619 = vmax.f32 %v2617, %v2618
    %v2620 = vmax.f32 %v2412, %v2416
    %v2621 = vmax.f32 %v2620, %v2420
    %v2622 = vmax.f32 %v2621, %v2424
    %v2623 = vmax.f32 %v2622, %v2428
    %v2624 = vmax.f32 %v2623, %v2432
    %v2625 = vmax.f32 %v2624, %v2436
    %v2626 = vmax.f32 %v2625, %v2440
    %v2627 = vmax.f32 %v2626, %v2444
    %v2628 = vmax.f32 %v2627, %v2448
    %v2629 = vmax.f32 %v2628, %v2452
    %v2630 = vmax.f32 %v2629, %v2456
    %v2631 = vmax.f32 %v2630, %v2460
    %v2632 = vmax.f32 %v2631, %v2464
    %v2633 = vmax.f32 %v2632, %v2468
    %v2634 = vmax.f32 %v2633, %v2472
    %v2635 = vrot.slane %v2634, 4
    %v2636 = vmax.f32 %v2634, %v2635
    %v2637 = vrot.slane %v2636, 2
    %v2638 = vmax.f32 %v2636, %v2637
    %v2639 = vrot.slane %v2638, 1
    %v2640 = vmax.f32 %v2638, %v2639
    %p2641 = scmp.eq.s32.totalorder 0, 0
    // Predicated region
    $region74: #{tpu_custom_call.1} parent=1 // pred_check
      %p2642 = pneg %p2641
    $region75: #{tpu_custom_call.1} parent=1 // pred_check_branch
      %2644 = sbr.rel (%p2642) target = $region77
    $region76: #{tpu_custom_call.1} parent=1 // pred_region
      %2645 = vst [vmem:[#allocation2] sm:$0xff] -inf
    $region77: #{tpu_custom_call.1} parent=1 // pred_fallthru
      _
    %v2646 = vld [vmem:[#allocation2] sm:$0xff]
    %v2655 = vcombine.low %v2493, %v2514
    %v2656 = vcombine.low %v2535, %v2556
    %v2658 = vunpack.c.l.s4 1983009808
    %v2659 = vunpack.c.0.s8 %v2658
    %v2660 = vlaneseq
    %v2661 = vshrl.u32 %v2660, 7
    %v2662 = vsub.s32 %v2659, %v2661
    %v2663 = vrot.slane %v2655, %v2662
    %v2665 = vunpack.c.l.s4 1983009808
    %v2666 = vunpack.c.0.s8 %v2665
    %v2667 = vlaneseq
    %v2668 = vshrl.u32 %v2667, 7
    %v2669 = vsub.s32 %v2666, %v2668
    %v2670 = vrot.slane %v2656, %v2669
    %v2671 = vcombine.low %v2663, %v2670
    %v2672 = vcombine.low %v2577, %v2598
    %v2673 = vcombine.low %v2619, %v2640
    %v2675 = vunpack.c.l.s4 1983009808
    %v2676 = vunpack.c.0.s8 %v2675
    %v2677 = vlaneseq
    %v2678 = vshrl.u32 %v2677, 7
    %v2679 = vsub.s32 %v2676, %v2678
    %v2680 = vrot.slane %v2672, %v2679
    %v2682 = vunpack.c.l.s4 1983009808
    %v2683 = vunpack.c.0.s8 %v2682
    %v2684 = vlaneseq
    %v2685 = vshrl.u32 %v2684, 7
    %v2686 = vsub.s32 %v2683, %v2685
    %v2687 = vrot.slane %v2673, %v2686
    %v2688 = vcombine.low %v2680, %v2687
    %vm2689 = vcmask 1044484
    %v2690 = vsel %vm2689, %v2671, %v2671
    %vm2691 = vcmask 1046534
    %v2692 = vsel %vm2691, %v2671, %v2690
    %v2693 = vrot.slane %v2688, 7
    %vm2694 = vcmask 1041409
    %v2695 = vsel %vm2694, %v2693, %v2692
    %vm2696 = vcmask 1043459
    %v2697 = vsel %vm2696, %v2693, %v2695
    %vm2698 = vcmask 1045509
    %v2699 = vsel %vm2698, %v2693, %v2697
    %vm2700 = vcmask 1047559
    %v2701 = vsel %vm2700, %v2693, %v2699
    %v2703 = vmax.f32 %v2646, %v2701
    %2704 = vst [vmem:[#allocation2] sm:$0xff] %v2703
    // Predicated region
    $region78: #{tpu_custom_call.1} parent=1 // pred_check
      %p2705 = pneg %p2641
    $region79: #{tpu_custom_call.1} parent=1 // pred_check_branch
      %2707 = sbr.rel (%p2705) target = $region81
    $region80: #{tpu_custom_call.1} parent=1 // pred_region
      %v2708 = vld [vmem:[#allocation2] sm:$0xff]
      %v2709 = vld [vmem:[#allocation8] sm:$0xff]
      %v2710 = vld [vmem:[#allocation8 + $0x8] sm:$0xff]
      %v2711 = vld [vmem:[#allocation8 + $0x10] sm:$0xff]
      %v2712 = vld [vmem:[#allocation8 + $0x18] sm:$0xff]
      %v2713 = vld [vmem:[#allocation8 + $0x20] sm:$0xff]
      %v2714 = vld [vmem:[#allocation8 + $0x28] sm:$0xff]
      %v2715 = vld [vmem:[#allocation8 + $0x30] sm:$0xff]
      %v2716 = vld [vmem:[#allocation8 + $0x38] sm:$0xff]
      %v2717 = vld [vmem:[#allocation8 + $0x40] sm:$0xff]
      %v2718 = vld [vmem:[#allocation8 + $0x48] sm:$0xff]
      %v2719 = vld [vmem:[#allocation8 + $0x50] sm:$0xff]
      %v2720 = vld [vmem:[#allocation8 + $0x58] sm:$0xff]
      %v2721 = vld [vmem:[#allocation8 + $0x60] sm:$0xff]
      %v2722 = vld [vmem:[#allocation8 + $0x68] sm:$0xff]
      %v2723 = vld [vmem:[#allocation8 + $0x70] sm:$0xff]
      %v2724 = vld [vmem:[#allocation8 + $0x78] sm:$0xff]
      %v2725 = vld [vmem:[#allocation8 + $0x80] sm:$0xff]
      %v2726 = vld [vmem:[#allocation8 + $0x88] sm:$0xff]
      %v2727 = vld [vmem:[#allocation8 + $0x90] sm:$0xff]
      %v2728 = vld [vmem:[#allocation8 + $0x98] sm:$0xff]
      %v2729 = vld [vmem:[#allocation8 + $0xa0] sm:$0xff]
      %v2730 = vld [vmem:[#allocation8 + $0xa8] sm:$0xff]
      %v2731 = vld [vmem:[#allocation8 + $0xb0] sm:$0xff]
      %v2732 = vld [vmem:[#allocation8 + $0xb8] sm:$0xff]
      %v2733 = vld [vmem:[#allocation8 + $0xc0] sm:$0xff]
      %v2734 = vld [vmem:[#allocation8 + $0xc8] sm:$0xff]
      %v2735 = vld [vmem:[#allocation8 + $0xd0] sm:$0xff]
      %v2736 = vld [vmem:[#allocation8 + $0xd8] sm:$0xff]
      %v2737 = vld [vmem:[#allocation8 + $0xe0] sm:$0xff]
      %v2738 = vld [vmem:[#allocation8 + $0xe8] sm:$0xff]
      %v2739 = vld [vmem:[#allocation8 + $0xf0] sm:$0xff]
      %v2740 = vld [vmem:[#allocation8 + $0xf8] sm:$0xff]
      %v2741 = vld [vmem:[#allocation8 + $0x100] sm:$0xff]
      %v2742 = vld [vmem:[#allocation8 + $0x108] sm:$0xff]
      %v2743 = vld [vmem:[#allocation8 + $0x110] sm:$0xff]
      %v2744 = vld [vmem:[#allocation8 + $0x118] sm:$0xff]
      %v2745 = vld [vmem:[#allocation8 + $0x120] sm:$0xff]
      %v2746 = vld [vmem:[#allocation8 + $0x128] sm:$0xff]
      %v2747 = vld [vmem:[#allocation8 + $0x130] sm:$0xff]
      %v2748 = vld [vmem:[#allocation8 + $0x138] sm:$0xff]
      %v2749 = vld [vmem:[#allocation8 + $0x140] sm:$0xff]
      %v2750 = vld [vmem:[#allocation8 + $0x148] sm:$0xff]
      %v2751 = vld [vmem:[#allocation8 + $0x150] sm:$0xff]
      %v2752 = vld [vmem:[#allocation8 + $0x158] sm:$0xff]
      %v2753 = vld [vmem:[#allocation8 + $0x160] sm:$0xff]
      %v2754 = vld [vmem:[#allocation8 + $0x168] sm:$0xff]
      %v2755 = vld [vmem:[#allocation8 + $0x170] sm:$0xff]
      %v2756 = vld [vmem:[#allocation8 + $0x178] sm:$0xff]
      %v2757 = vld [vmem:[#allocation8 + $0x180] sm:$0xff]
      %v2758 = vld [vmem:[#allocation8 + $0x188] sm:$0xff]
      %v2759 = vld [vmem:[#allocation8 + $0x190] sm:$0xff]
      %v2760 = vld [vmem:[#allocation8 + $0x198] sm:$0xff]
      %v2761 = vld [vmem:[#allocation8 + $0x1a0] sm:$0xff]
      %v2762 = vld [vmem:[#allocation8 + $0x1a8] sm:$0xff]
      %v2763 = vld [vmem:[#allocation8 + $0x1b0] sm:$0xff]
      %v2764 = vld [vmem:[#allocation8 + $0x1b8] sm:$0xff]
      %v2765 = vld [vmem:[#allocation8 + $0x1c0] sm:$0xff]
      %v2766 = vld [vmem:[#allocation8 + $0x1c8] sm:$0xff]
      %v2767 = vld [vmem:[#allocation8 + $0x1d0] sm:$0xff]
      %v2768 = vld [vmem:[#allocation8 + $0x1d8] sm:$0xff]
      %v2769 = vld [vmem:[#allocation8 + $0x1e0] sm:$0xff]
      %v2770 = vld [vmem:[#allocation8 + $0x1e8] sm:$0xff]
      %v2771 = vld [vmem:[#allocation8 + $0x1f0] sm:$0xff]
      %v2772 = vld [vmem:[#allocation8 + $0x1f8] sm:$0xff]
      %v2773 = vld [vmem:[#allocation8 + $0x200] sm:$0xff]
      %v2774 = vld [vmem:[#allocation8 + $0x208] sm:$0xff]
      %v2775 = vld [vmem:[#allocation8 + $0x210] sm:$0xff]
      %v2776 = vld [vmem:[#allocation8 + $0x218] sm:$0xff]
      %v2777 = vld [vmem:[#allocation8 + $0x220] sm:$0xff]
      %v2778 = vld [vmem:[#allocation8 + $0x228] sm:$0xff]
      %v2779 = vld [vmem:[#allocation8 + $0x230] sm:$0xff]
      %v2780 = vld [vmem:[#allocation8 + $0x238] sm:$0xff]
      %v2781 = vld [vmem:[#allocation8 + $0x240] sm:$0xff]
      %v2782 = vld [vmem:[#allocation8 + $0x248] sm:$0xff]
      %v2783 = vld [vmem:[#allocation8 + $0x250] sm:$0xff]
      %v2784 = vld [vmem:[#allocation8 + $0x258] sm:$0xff]
      %v2785 = vld [vmem:[#allocation8 + $0x260] sm:$0xff]
      %v2786 = vld [vmem:[#allocation8 + $0x268] sm:$0xff]
      %v2787 = vld [vmem:[#allocation8 + $0x270] sm:$0xff]
      %v2788 = vld [vmem:[#allocation8 + $0x278] sm:$0xff]
      %v2789 = vld [vmem:[#allocation8 + $0x280] sm:$0xff]
      %v2790 = vld [vmem:[#allocation8 + $0x288] sm:$0xff]
      %v2791 = vld [vmem:[#allocation8 + $0x290] sm:$0xff]
      %v2792 = vld [vmem:[#allocation8 + $0x298] sm:$0xff]
      %v2793 = vld [vmem:[#allocation8 + $0x2a0] sm:$0xff]
      %v2794 = vld [vmem:[#allocation8 + $0x2a8] sm:$0xff]
      %v2795 = vld [vmem:[#allocation8 + $0x2b0] sm:$0xff]
      %v2796 = vld [vmem:[#allocation8 + $0x2b8] sm:$0xff]
      %v2797 = vld [vmem:[#allocation8 + $0x2c0] sm:$0xff]
      %v2798 = vld [vmem:[#allocation8 + $0x2c8] sm:$0xff]
      %v2799 = vld [vmem:[#allocation8 + $0x2d0] sm:$0xff]
      %v2800 = vld [vmem:[#allocation8 + $0x2d8] sm:$0xff]
      %v2801 = vld [vmem:[#allocation8 + $0x2e0] sm:$0xff]
      %v2802 = vld [vmem:[#allocation8 + $0x2e8] sm:$0xff]
      %v2803 = vld [vmem:[#allocation8 + $0x2f0] sm:$0xff]
      %v2804 = vld [vmem:[#allocation8 + $0x2f8] sm:$0xff]
      %v2805 = vld [vmem:[#allocation8 + $0x300] sm:$0xff]
      %v2806 = vld [vmem:[#allocation8 + $0x308] sm:$0xff]
      %v2807 = vld [vmem:[#allocation8 + $0x310] sm:$0xff]
      %v2808 = vld [vmem:[#allocation8 + $0x318] sm:$0xff]
      %v2809 = vld [vmem:[#allocation8 + $0x320] sm:$0xff]
      %v2810 = vld [vmem:[#allocation8 + $0x328] sm:$0xff]
      %v2811 = vld [vmem:[#allocation8 + $0x330] sm:$0xff]
      %v2812 = vld [vmem:[#allocation8 + $0x338] sm:$0xff]
      %v2813 = vld [vmem:[#allocation8 + $0x340] sm:$0xff]
      %v2814 = vld [vmem:[#allocation8 + $0x348] sm:$0xff]
      %v2815 = vld [vmem:[#allocation8 + $0x350] sm:$0xff]
      %v2816 = vld [vmem:[#allocation8 + $0x358] sm:$0xff]
      %v2817 = vld [vmem:[#allocation8 + $0x360] sm:$0xff]
      %v2818 = vld [vmem:[#allocation8 + $0x368] sm:$0xff]
      %v2819 = vld [vmem:[#allocation8 + $0x370] sm:$0xff]
      %v2820 = vld [vmem:[#allocation8 + $0x378] sm:$0xff]
      %v2821 = vld [vmem:[#allocation8 + $0x380] sm:$0xff]
      %v2822 = vld [vmem:[#allocation8 + $0x388] sm:$0xff]
      %v2823 = vld [vmem:[#allocation8 + $0x390] sm:$0xff]
      %v2824 = vld [vmem:[#allocation8 + $0x398] sm:$0xff]
      %v2825 = vld [vmem:[#allocation8 + $0x3a0] sm:$0xff]
      %v2826 = vld [vmem:[#allocation8 + $0x3a8] sm:$0xff]
      %v2827 = vld [vmem:[#allocation8 + $0x3b0] sm:$0xff]
      %v2828 = vld [vmem:[#allocation8 + $0x3b8] sm:$0xff]
      %v2829 = vld [vmem:[#allocation8 + $0x3c0] sm:$0xff]
      %v2830 = vld [vmem:[#allocation8 + $0x3c8] sm:$0xff]
      %v2831 = vld [vmem:[#allocation8 + $0x3d0] sm:$0xff]
      %v2832 = vld [vmem:[#allocation8 + $0x3d8] sm:$0xff]
      %v2833 = vld [vmem:[#allocation8 + $0x3e0] sm:$0xff]
      %v2834 = vld [vmem:[#allocation8 + $0x3e8] sm:$0xff]
      %v2835 = vld [vmem:[#allocation8 + $0x3f0] sm:$0xff]
      %v2836 = vld [vmem:[#allocation8 + $0x3f8] sm:$0xff]
      %v2837 = vld [vmem:[%s11] sm:$0x3]
      %v2839 = vlaneseq
      %v2840 = vshrl.u32 %v2839, 7
      %v2841 = vsub.s32 0, %v2840
      %v2842 = vrot.slane %v2837, %v2841
      %v2843 = vlaneseq
      %v2844 = vshrl.u32 %v2843, 7
      %v2845 = vsub.s32 1, %v2844
      %v2846 = vrot.slane %v2837, %v2845
      %v2850 = vcombine.high %v2708, %v2708
      %v2852 = vunpack.c.l.s4 1983009808
      %v2853 = vunpack.c.0.s8 %v2852
      %v2854 = vlaneseq
      %v2855 = vshrl.u32 %v2854, 7
      %v2856 = vsub.s32 %v2853, %v2855
      %v2857 = vrot.slane %v2708, %v2856
      %v2859 = vunpack.c.l.s4 1983009808
      %v2860 = vunpack.c.0.s8 %v2859
      %v2861 = vlaneseq
      %v2862 = vshrl.u32 %v2861, 7
      %v2863 = vsub.s32 %v2860, %v2862
      %v2864 = vrot.slane %v2850, %v2863
      %v2865 = vcombine.high %v2857, %v2857
      %v2866 = vcombine.high %v2864, %v2864
      %2871 = vmatprep.subr.mxu0 %v2710
      %2872 = vmatpush1.msra.mxu0 %v2709
      %2873 = vmatprep.subr.mxu0 %v2712
      %2874 = vmatpush1.msra.mxu0 %v2711
      %2875 = vmatprep.subr.mxu0 %v2714
      %2876 = vmatpush1.msra.mxu0 %v2713
      %2877 = vmatprep.subr.mxu0 %v2716
      %2878 = vmatpush1.msra.mxu0 %v2715
      %2879 = vmatprep.subr.mxu0 %v2718
      %2880 = vmatpush1.msra.mxu0 %v2717
      %2881 = vmatprep.subr.mxu0 %v2720
      %2882 = vmatpush1.msra.mxu0 %v2719
      %2883 = vmatprep.subr.mxu0 %v2722
      %2884 = vmatpush1.msra.mxu0 %v2721
      %2885 = vmatprep.subr.mxu0 %v2724
      %2886 = vmatpush1.msra.mxu0 %v2723
      %2887 = vmatprep.subr.mxu0 %v2726
      %2888 = vmatpush1.msra.mxu0 %v2725
      %2889 = vmatprep.subr.mxu0 %v2728
      %2890 = vmatpush1.msra.mxu0 %v2727
      %2891 = vmatprep.subr.mxu0 %v2730
      %2892 = vmatpush1.msra.mxu0 %v2729
      %2893 = vmatprep.subr.mxu0 %v2732
      %2894 = vmatpush1.msra.mxu0 %v2731
      %2895 = vmatprep.subr.mxu0 %v2734
      %2896 = vmatpush1.msra.mxu0 %v2733
      %2897 = vmatprep.subr.mxu0 %v2736
      %2898 = vmatpush1.msra.mxu0 %v2735
      %2899 = vmatprep.subr.mxu0 %v2738
      %2900 = vmatpush1.msra.mxu0 %v2737
      %2901 = vmatprep.subr.mxu0 %v2740
      %2902 = vmatpush1.msra.mxu0 %v2739
      %2903 = vmatprep.subr.mxu0 %v2742
      %2904 = vmatpush1.msra.mxu0 %v2741
      %2905 = vmatprep.subr.mxu0 %v2744
      %2906 = vmatpush1.msra.mxu0 %v2743
      %2907 = vmatprep.subr.mxu0 %v2746
      %2908 = vmatpush1.msra.mxu0 %v2745
      %2909 = vmatprep.subr.mxu0 %v2748
      %2910 = vmatpush1.msra.mxu0 %v2747
      %2911 = vmatprep.subr.mxu0 %v2750
      %2912 = vmatpush1.msra.mxu0 %v2749
      %2913 = vmatprep.subr.mxu0 %v2752
      %2914 = vmatpush1.msra.mxu0 %v2751
      %2915 = vmatprep.subr.mxu0 %v2754
      %2916 = vmatpush1.msra.mxu0 %v2753
      %2917 = vmatprep.subr.mxu0 %v2756
      %2918 = vmatpush1.msra.mxu0 %v2755
      %2919 = vmatprep.subr.mxu0 %v2758
      %2920 = vmatpush1.msra.mxu0 %v2757
      %2921 = vmatprep.subr.mxu0 %v2760
      %2922 = vmatpush1.msra.mxu0 %v2759
      %2923 = vmatprep.subr.mxu0 %v2762
      %2924 = vmatpush1.msra.mxu0 %v2761
      %2925 = vmatprep.subr.mxu0 %v2764
      %2926 = vmatpush1.msra.mxu0 %v2763
      %2927 = vmatprep.subr.mxu0 %v2766
      %2928 = vmatpush1.msra.mxu0 %v2765
      %2929 = vmatprep.subr.mxu0 %v2768
      %2930 = vmatpush1.msra.mxu0 %v2767
      %2931 = vmatprep.subr.mxu0 %v2770
      %2932 = vmatpush1.msra.mxu0 %v2769
      %2933 = vmatprep.subr.mxu0 %v2772
      %2934 = vmatpush1.msra.mxu0 %v2771
      %2935 = vmatprep.mubr.f32.mxu0 %v2865
      %2936 = vmatmul.mubr.f32.gmra.mrb[0].mxu0 %v2857
      %v2937 = vpop.f32.mrb[0].mxu0
      %v2938 = vadd.f32 %v2842, %v2937
      %v2939 = vpop.f32.mrb[0].mxu0
      %v2940 = vadd.f32 %v2846, %v2939
      %2941 = vdwg.mxu0
      %2942 = vmatprep.subr.mxu0 %v2774
      %2943 = vmatpush1.msra.mxu0 %v2773
      %2944 = vmatprep.subr.mxu0 %v2776
      %2945 = vmatpush1.msra.mxu0 %v2775
      %2946 = vmatprep.subr.mxu0 %v2778
      %2947 = vmatpush1.msra.mxu0 %v2777
      %2948 = vmatprep.subr.mxu0 %v2780
      %2949 = vmatpush1.msra.mxu0 %v2779
      %2950 = vmatprep.subr.mxu0 %v2782
      %2951 = vmatpush1.msra.mxu0 %v2781
      %2952 = vmatprep.subr.mxu0 %v2784
      %2953 = vmatpush1.msra.mxu0 %v2783
      %2954 = vmatprep.subr.mxu0 %v2786
      %2955 = vmatpush1.msra.mxu0 %v2785
      %2956 = vmatprep.subr.mxu0 %v2788
      %2957 = vmatpush1.msra.mxu0 %v2787
      %2958 = vmatprep.subr.mxu0 %v2790
      %2959 = vmatpush1.msra.mxu0 %v2789
      %2960 = vmatprep.subr.mxu0 %v2792
      %2961 = vmatpush1.msra.mxu0 %v2791
      %2962 = vmatprep.subr.mxu0 %v2794
      %2963 = vmatpush1.msra.mxu0 %v2793
      %2964 = vmatprep.subr.mxu0 %v2796
      %2965 = vmatpush1.msra.mxu0 %v2795
      %2966 = vmatprep.subr.mxu0 %v2798
      %2967 = vmatpush1.msra.mxu0 %v2797
      %2968 = vmatprep.subr.mxu0 %v2800
      %2969 = vmatpush1.msra.mxu0 %v2799
      %2970 = vmatprep.subr.mxu0 %v2802
      %2971 = vmatpush1.msra.mxu0 %v2801
      %2972 = vmatprep.subr.mxu0 %v2804
      %2973 = vmatpush1.msra.mxu0 %v2803
      %2974 = vmatprep.subr.mxu0 %v2806
      %2975 = vmatpush1.msra.mxu0 %v2805
      %2976 = vmatprep.subr.mxu0 %v2808
      %2977 = vmatpush1.msra.mxu0 %v2807
      %2978 = vmatprep.subr.mxu0 %v2810
      %2979 = vmatpush1.msra.mxu0 %v2809
      %2980 = vmatprep.subr.mxu0 %v2812
      %2981 = vmatpush1.msra.mxu0 %v2811
      %2982 = vmatprep.subr.mxu0 %v2814
      %2983 = vmatpush1.msra.mxu0 %v2813
      %2984 = vmatprep.subr.mxu0 %v2816
      %2985 = vmatpush1.msra.mxu0 %v2815
      %2986 = vmatprep.subr.mxu0 %v2818
      %2987 = vmatpush1.msra.mxu0 %v2817
      %2988 = vmatprep.subr.mxu0 %v2820
      %2989 = vmatpush1.msra.mxu0 %v2819
      %2990 = vmatprep.subr.mxu0 %v2822
      %2991 = vmatpush1.msra.mxu0 %v2821
      %2992 = vmatprep.subr.mxu0 %v2824
      %2993 = vmatpush1.msra.mxu0 %v2823
      %2994 = vmatprep.subr.mxu0 %v2826
      %2995 = vmatpush1.msra.mxu0 %v2825
      %2996 = vmatprep.subr.mxu0 %v2828
      %2997 = vmatpush1.msra.mxu0 %v2827
      %2998 = vmatprep.subr.mxu0 %v2830
      %2999 = vmatpush1.msra.mxu0 %v2829
      %3000 = vmatprep.subr.mxu0 %v2832
      %3001 = vmatpush1.msra.mxu0 %v2831
      %3002 = vmatprep.subr.mxu0 %v2834
      %3003 = vmatpush1.msra.mxu0 %v2833
      %3004 = vmatprep.subr.mxu0 %v2836
      %3005 = vmatpush1.msra.mxu0 %v2835
      %3006 = vmatprep.mubr.f32.mxu0 %v2866
      %3007 = vmatmul.mubr.f32.gmra.mrb[0].mxu0 %v2864
      %v3008 = vpop.f32.mrb[0].mxu0
      %v3009 = vadd.f32 %v2938, %v3008
      %v3010 = vpop.f32.mrb[0].mxu0
      %v3011 = vadd.f32 %v2940, %v3010
      %3012 = vdwg.mxu0
      %v3013 = vmax.f32 %v3009, 0.0
      %v3014 = vmax.f32 %v3011, 0.0
      %v3015 = vld [vmem:[#allocation9] sm:$0xff]
      %v3016 = vld [vmem:[#allocation9 + $0x8] sm:$0xff]
      %v3017 = vld [vmem:[#allocation9 + $0x10] sm:$0xff]
      %v3018 = vld [vmem:[#allocation9 + $0x18] sm:$0xff]
      %v3019 = vld [vmem:[#allocation9 + $0x20] sm:$0xff]
      %v3020 = vld [vmem:[#allocation9 + $0x28] sm:$0xff]
      %v3021 = vld [vmem:[#allocation9 + $0x30] sm:$0xff]
      %v3022 = vld [vmem:[#allocation9 + $0x38] sm:$0xff]
      %v3023 = vld [vmem:[#allocation9 + $0x40] sm:$0xff]
      %v3024 = vld [vmem:[#allocation9 + $0x48] sm:$0xff]
      %v3025 = vld [vmem:[#allocation9 + $0x50] sm:$0xff]
      %v3026 = vld [vmem:[#allocation9 + $0x58] sm:$0xff]
      %v3027 = vld [vmem:[#allocation9 + $0x60] sm:$0xff]
      %v3028 = vld [vmem:[#allocation9 + $0x68] sm:$0xff]
      %v3029 = vld [vmem:[#allocation9 + $0x70] sm:$0xff]
      %v3030 = vld [vmem:[#allocation9 + $0x78] sm:$0xff]
      %v3031 = vld [vmem:[#allocation9 + $0x80] sm:$0xff]
      %v3032 = vld [vmem:[#allocation9 + $0x88] sm:$0xff]
      %v3033 = vld [vmem:[#allocation9 + $0x90] sm:$0xff]
      %v3034 = vld [vmem:[#allocation9 + $0x98] sm:$0xff]
      %v3035 = vld [vmem:[#allocation9 + $0xa0] sm:$0xff]
      %v3036 = vld [vmem:[#allocation9 + $0xa8] sm:$0xff]
      %v3037 = vld [vmem:[#allocation9 + $0xb0] sm:$0xff]
      %v3038 = vld [vmem:[#allocation9 + $0xb8] sm:$0xff]
      %v3039 = vld [vmem:[#allocation9 + $0xc0] sm:$0xff]
      %v3040 = vld [vmem:[#allocation9 + $0xc8] sm:$0xff]
      %v3041 = vld [vmem:[#allocation9 + $0xd0] sm:$0xff]
      %v3042 = vld [vmem:[#allocation9 + $0xd8] sm:$0xff]
      %v3043 = vld [vmem:[#allocation9 + $0xe0] sm:$0xff]
      %v3044 = vld [vmem:[#allocation9 + $0xe8] sm:$0xff]
      %v3045 = vld [vmem:[#allocation9 + $0xf0] sm:$0xff]
      %v3046 = vld [vmem:[#allocation9 + $0xf8] sm:$0xff]
      %v3047 = vld [vmem:[%s13] sm:$0x1]
      %v3049 = vlaneseq
      %v3050 = vshrl.u32 %v3049, 7
      %v3051 = vsub.s32 0, %v3050
      %v3052 = vrot.slane %v3047, %v3051
      %3054 = vmatprep.subr.mxu0 0.0
      %3055 = vmatpush1.msra.mxu0 %v3015
      %3056 = vmatprep.subr.mxu0 0.0
      %3057 = vmatpush1.msra.mxu0 %v3016
      %3058 = vmatprep.subr.mxu0 0.0
      %3059 = vmatpush1.msra.mxu0 %v3017
      %3060 = vmatprep.subr.mxu0 0.0
      %3061 = vmatpush1.msra.mxu0 %v3018
      %3062 = vmatprep.subr.mxu0 0.0
      %3063 = vmatpush1.msra.mxu0 %v3019
      %3064 = vmatprep.subr.mxu0 0.0
      %3065 = vmatpush1.msra.mxu0 %v3020
      %3066 = vmatprep.subr.mxu0 0.0
      %3067 = vmatpush1.msra.mxu0 %v3021
      %3068 = vmatprep.subr.mxu0 0.0
      %3069 = vmatpush1.msra.mxu0 %v3022
      %3070 = vmatprep.subr.mxu0 0.0
      %3071 = vmatpush1.msra.mxu0 %v3023
      %3072 = vmatprep.subr.mxu0 0.0
      %3073 = vmatpush1.msra.mxu0 %v3024
      %3074 = vmatprep.subr.mxu0 0.0
      %3075 = vmatpush1.msra.mxu0 %v3025
      %3076 = vmatprep.subr.mxu0 0.0
      %3077 = vmatpush1.msra.mxu0 %v3026
      %3078 = vmatprep.subr.mxu0 0.0
      %3079 = vmatpush1.msra.mxu0 %v3027
      %3080 = vmatprep.subr.mxu0 0.0
      %3081 = vmatpush1.msra.mxu0 %v3028
      %3082 = vmatprep.subr.mxu0 0.0
      %3083 = vmatpush1.msra.mxu0 %v3029
      %3084 = vmatprep.subr.mxu0 0.0
      %3085 = vmatpush1.msra.mxu0 %v3030
      %3086 = vmatprep.subr.mxu0 0.0
      %3087 = vmatpush1.msra.mxu0 %v3031
      %3088 = vmatprep.subr.mxu0 0.0
      %3089 = vmatpush1.msra.mxu0 %v3032
      %3090 = vmatprep.subr.mxu0 0.0
      %3091 = vmatpush1.msra.mxu0 %v3033
      %3092 = vmatprep.subr.mxu0 0.0
      %3093 = vmatpush1.msra.mxu0 %v3034
      %3094 = vmatprep.subr.mxu0 0.0
      %3095 = vmatpush1.msra.mxu0 %v3035
      %3096 = vmatprep.subr.mxu0 0.0
      %3097 = vmatpush1.msra.mxu0 %v3036
      %3098 = vmatprep.subr.mxu0 0.0
      %3099 = vmatpush1.msra.mxu0 %v3037
      %3100 = vmatprep.subr.mxu0 0.0
      %3101 = vmatpush1.msra.mxu0 %v3038
      %3102 = vmatprep.subr.mxu0 0.0
      %3103 = vmatpush1.msra.mxu0 %v3039
      %3104 = vmatprep.subr.mxu0 0.0
      %3105 = vmatpush1.msra.mxu0 %v3040
      %3106 = vmatprep.subr.mxu0 0.0
      %3107 = vmatpush1.msra.mxu0 %v3041
      %3108 = vmatprep.subr.mxu0 0.0
      %3109 = vmatpush1.msra.mxu0 %v3042
      %3110 = vmatprep.subr.mxu0 0.0
      %3111 = vmatpush1.msra.mxu0 %v3043
      %3112 = vmatprep.subr.mxu0 0.0
      %3113 = vmatpush1.msra.mxu0 %v3044
      %3114 = vmatprep.subr.mxu0 0.0
      %3115 = vmatpush1.msra.mxu0 %v3045
      %3116 = vmatprep.subr.mxu0 0.0
      %3117 = vmatpush1.msra.mxu0 %v3046
      %3118 = vmatprep.mubr.f32.mxu0 %v3014
      %3119 = vmatmul.mubr.f32.gmra.mrb[0].mxu0 %v3013
      %v3120 = vpop.f32.mrb[0].mxu0
      %v3121 = vadd.f32 %v3052, %v3120
      %v3122 = vpop.f32.mrb[0].mxu0
      %3123 = vdwg.mxu0
      %3124 = vst [vmem:[#allocation11] sm:$0x3] %v3121
    $region81: #{tpu_custom_call.1} parent=1 // pred_fallthru
      _
    // Predicated region
    $region82: #{tpu_custom_call.1} parent=1 // pred_check
      _
    $region83: #{tpu_custom_call.1} parent=1 // pred_check_branch
      %3126 = sbr.rel (0) target = $region85
    $region84: #{tpu_custom_call.1} parent=1 // pred_region
      %s3128 = ssub.s32 32, 32
      %3129 = vsyncadd [#allocation5], %s3128
      %s3131 = sshll.u32 [#allocation11], 4
      %s3132 = int_to_ptr.vmem [resolvable:$true] %s3131
      %3134 = dma.vmem_to_hbm [thread:$0]  %s3132, 32, %s14, [#allocation5]
    $region85: #{tpu_custom_call.1} parent=1 // pred_fallthru
      _
    // Predicated region
    $region86: #{tpu_custom_call.1} parent=1 // pred_check
      _
    $region87: #{tpu_custom_call.1} parent=1 // pred_check_branch
      %3136 = sbr.rel (0) target = $region89
    $region88: #{tpu_custom_call.1} parent=1 // pred_region
      %3137 = dma.done [#allocation5], 32
    $region89: #{tpu_custom_call.1} parent=1 // pred_fallthru
      _
    %3138 = vsyncpa [#allocation4], 1
    %3139 = vsyncpa [#allocation7], 1
    %3140 = vsyncpa [#allocation10], 1
    %3141 = vsyncpa [#allocation5], 1

</llo_original>
